<compile_context>
chip_gen: v7x
topology: tpu7x:2x2x1
jax: 0.10.0
libtpu: 0.0.40
codegen_flags: <defaults>
</compile_context>

<pallas_src>
import jax
import jax.numpy as jnp
from jax import lax
from jax.experimental import pallas as pl
from jax.experimental.pallas import tpu as pltpu


def _round_up(x, m):
    return ((x + m - 1) // m) * m


def _gat_kernel(src_col_ref, dst_col_ref, dst_row_ref,            # int32 id tiles
                nft_ref, eft_ref, w_ref, b_ref, a2m_ref, hexp_ref,  # f32 inputs
                out_ref,                                           # f32 output
                m_scr, msg_scr, den_scr):                          # VMEM scratch
    f32 = jnp.float32
    NEG = -1e30

    t = pl.program_id(0)
    n_tiles = pl.num_programs(0)

    TE, F = eft_ref.shape
    N = nft_ref.shape[0]
    H = a2m_ref.shape[1]

    # ---- init persistent accumulators on the first tile --------------------
    @pl.when(t == 0)
    def _init():
        m_scr[...] = jnp.full(m_scr.shape, NEG, f32)       # running per-dst max
        msg_scr[...] = jnp.zeros(msg_scr.shape, f32)       # sum_e p * epath
        den_scr[...] = jnp.zeros(den_scr.shape, f32)       # sum_e p

    # ---- one-hot incidence built in VMEM (padded edge ids == N -> all-zero) -
    src = src_col_ref[...]                                  # (TE, 1) int32
    dst = dst_col_ref[...]                                  # (TE, 1) int32
    dst_r = dst_row_ref[...]                                # (1, TE) int32

    lane_nodes = lax.broadcasted_iota(jnp.int32, (TE, N), 1)
    onehot_src = (lane_nodes == src).astype(f32)            # (TE, N) edge-major
    onehot_dst = (lane_nodes == dst).astype(f32)            # (TE, N)
    sub_nodes = lax.broadcasted_iota(jnp.int32, (N, TE), 0)
    onehot_dst_t = (sub_nodes == dst_r).astype(f32)         # (N, TE) node-major

    # ---- gather endpoint node rows (MXU, replaces the per-edge gather loop) -
    nftv = nft_ref[...]                                     # (N, F) resident
    start = jnp.dot(onehot_src, nftv, preferred_element_type=f32)   # (TE, F)
    end = jnp.dot(onehot_dst, nftv, preferred_element_type=f32)     # (TE, F)
    eftv = eft_ref[...]                                     # (TE, F) streamed

    # ---- path encoding + folded attn1 (split K=3F matmul, no concatenate) ---
    w = w_ref[...]                                          # (3F, F+H)
    y = (jnp.dot(start, w[:F], preferred_element_type=f32)
         + jnp.dot(eftv, w[F:2 * F], preferred_element_type=f32)
         + jnp.dot(end, w[2 * F:], preferred_element_type=f32)
         + b_ref[...])                                      # (TE, F+H)
    ep = y[:, :F]                                           # edge path encodings
    a = y[:, F:] + jnp.dot(ep, a2m_ref[...], preferred_element_type=f32)  # a1+a2
    a = jnp.where(a > 0, a, 0.01 * a)                       # leaky_relu(0.01)
    valid = dst < N                                         # padded edges -> False
    a = jnp.where(valid, a, 0.0)

    # ---- exact per-destination tile max (vectorized, online softmax) --------
    # Lane-pad the (TE, H) logits to (TE, 128) with a tiny selector matmul so
    # the edge-major -> node-major flip is a fully (8,128)-aligned transpose.
    LP = _round_up(H, 128)
    sel = (lax.broadcasted_iota(jnp.int32, (H, LP), 0)
           == lax.broadcasted_iota(jnp.int32, (H, LP), 1)).astype(f32)   # [I_H | 0]
    a_t = jnp.dot(a, sel, preferred_element_type=f32).T      # (LP, TE)

    head_iota = lax.broadcasted_iota(jnp.int32, (N, H), 1)
    m_tile = jnp.full((N, H), NEG, f32)
    for h in range(H):                                       # H is tiny & static
        masked = jnp.where(onehot_dst_t > 0.5, a_t[h:h + 1, :], NEG)   # (N, TE)
        m_h = jnp.max(masked, axis=1, keepdims=True)                    # (N, 1)
        m_tile = jnp.where(head_iota == h, m_h, m_tile)

    m_old = m_scr[...]
    m_new = jnp.maximum(m_old, m_tile)                       # (N, H)
    m_scr[...] = m_new
    scale = jnp.exp(m_old - m_new)                           # (N, H), <= 1
    hexpv = hexp_ref[...]                                    # (H, F)
    scale_f = jnp.dot(scale, hexpv, preferred_element_type=f32)   # (N, F)

    # ---- numerators / messages for this tile (all MXU / VPU, no loops) ------
    mg = jnp.dot(onehot_dst, m_new, preferred_element_type=f32)   # (TE, H) m[dst]
    p = jnp.exp(a - mg)                                            # <= 1 for real edges
    p_f = jnp.dot(p, hexpv, preferred_element_type=f32)            # (TE, F)

    # rescale old accumulators to the new max, then scatter-add this tile
    msg_scr[...] = (msg_scr[...] * scale_f
                    + jnp.dot(onehot_dst_t, ep * p_f, preferred_element_type=f32))
    den_scr[...] = (den_scr[...] * scale
                    + jnp.dot(onehot_dst_t, p, preferred_element_type=f32))

    # TODO(synk): attn_drop (nn.Dropout p=0.3) is identity in eval mode; training
    # parity would Bernoulli-mask `p` with pltpu.prng_seed / prng_random_bits.

    # ---- finalize on the last tile: normalize, residual, relu ---------------
    @pl.when(t == n_tiles - 1)
    def _finalize():
        den = den_scr[...]
        den = jnp.where(den > 0.0, den, 1.0)                 # zero in-degree -> 0 msg
        inv = pl.reciprocal(den, approx=False)               # (N, H)
        inv_f = jnp.dot(inv, hexpv, preferred_element_type=f32)   # (N, F)
        out_ref[...] = jnp.maximum(msg_scr[...] * inv_f + nftv, 0.0)


def gat_forward(nft, eft, src_ids, dst_ids, params, num_heads, *, edge_tile=256):
    f32 = jnp.float32
    N, F = nft.shape
    E = int(eft.shape[0])
    H = num_heads
    D = F // H
    FO = F + H                       # path-encoding cols + folded attn1 cols

    # 128-aligned edge tiles (fills the MXU and keeps lane-oriented id blocks legal)
    TE = _round_up(max(1, min(edge_tile, E)), 128)
    E_pad = _round_up(E, TE)
    n_tiles = E_pad // TE
    pad = E_pad - E

    eft_p = jnp.pad(eft.astype(f32), ((0, pad), (0, 0)))
    # pad ids with the sentinel N -> padded edges get all-zero one-hot rows/cols
    src_flat = jnp.pad(src_ids.astype(jnp.int32), (0, pad), constant_values=N)
    dst_flat = jnp.pad(dst_ids.astype(jnp.int32), (0, pad), constant_values=N)
    src_col = src_flat.reshape(E_pad, 1)
    dst_col = dst_flat.reshape(E_pad, 1)
    dst_row = dst_flat.reshape(1, E_pad)

    Wp = params["Wp"].astype(f32)                 # (3F, F)   y = x @ Wp + bp
    bp = params["bp"].astype(f32).reshape(F)      # (F,)
    Wa1 = params["Wa1"].astype(f32)               # (F, H)
    attn2 = params["attn2"].astype(f32)           # (H, D)

    # fold attn1 into the path-encoding matmul (extra H output columns, fed
    # only by the `start` chunk; attn1 has no bias)
    W_aug = jnp.zeros((3 * F, FO), f32).at[:, :F].set(Wp).at[:F, F:].set(Wa1)
    b_aug = jnp.concatenate([bp, jnp.zeros((H,), f32)]).reshape(1, FO)
    hexp = jnp.repeat(jnp.eye(H, dtype=f32), D, axis=1)       # (H, F) head expand
    a2m = hexp.T * attn2.reshape(F)[:, None]                  # (F, H) block-diag attn2

    # ---- VMEM budget & cost estimate from the actual sizes ------------------
    resident_w = 2 * N * F + 3 * F * FO + FO + F * H + H * F + N * (F + 2 * H)
    streamed_w = TE * (F + 3)
    temps_w = 4 * TE * N + TE * (4 * F + FO + 2 * 128 + 4 * H) + N * (2 * F + 6 * H)
    vmem_bytes = 4 * (2 * resident_w + 4 * streamed_w + temps_w)
    vmem_limit = int(min(96 * 2 ** 20, max(32 * 2 ** 20, 2 * vmem_bytes)))

    flops_tile = (4 * TE * N * F                 # endpoint one-hot gathers
                  + 6 * TE * F * FO              # split path-encoding + attn1
                  + 2 * TE * F * H               # a2 = ep @ a2m
                  + 2 * TE * N * H               # per-edge max gather
                  + 2 * TE * H * F               # head-expand of p
                  + 2 * N * H * F                # head-expand of scale
                  + 2 * N * TE * (F + H))        # one-hot scatter-accumulate
    flops = int(n_tiles * flops_tile + 2 * N * H * F)
    transcendentals = int(n_tiles * (TE * H + N * H) + N * H)
    bytes_accessed = int(4 * (2 * N * F + E_pad * F + 3 * E_pad
                              + 3 * F * FO + FO + F * H + H * F))

    grid_spec = pltpu.PrefetchScalarGridSpec(
        num_scalar_prefetch=0,
        grid=(n_tiles,),
        in_specs=[
            pl.BlockSpec((TE, 1), lambda t: (t, 0)),        # src ids (column form)
            pl.BlockSpec((TE, 1), lambda t: (t, 0)),        # dst ids (column form)
            pl.BlockSpec((1, TE), lambda t: (0, t)),        # dst ids (row form)
            pl.BlockSpec((N, F), lambda t: (0, 0)),         # nft (VMEM resident)
            pl.BlockSpec((TE, F), lambda t: (t, 0)),        # eft tile (streamed)
            pl.BlockSpec((3 * F, FO), lambda t: (0, 0)),    # W_aug
            pl.BlockSpec((1, FO), lambda t: (0, 0)),        # b_aug
            pl.BlockSpec((F, H), lambda t: (0, 0)),         # a2m
            pl.BlockSpec((H, F), lambda t: (0, 0)),         # hexp
        ],
        out_specs=pl.BlockSpec((N, F), lambda t: (0, 0)),
        scratch_shapes=[
            pltpu.VMEM((N, H), f32),     # running per-dst max
            pltpu.VMEM((N, F), f32),     # message accumulator
            pltpu.VMEM((N, H), f32),     # softmax denominator accumulator
        ],
    )

    out = pl.pallas_call(
        _gat_kernel,
        out_shape=jax.ShapeDtypeStruct((N, F), f32),
        grid_spec=grid_spec,
        compiler_params=pltpu.CompilerParams(
            dimension_semantics=("arbitrary",),
            vmem_limit_bytes=vmem_limit),
        cost_estimate=pl.CostEstimate(
            flops=flops,
            transcendentals=transcendentals,
            bytes_accessed=bytes_accessed),
    )(src_col, dst_col, dst_row, nft.astype(f32), eft_p, W_aug, b_aug, a2m, hexp)
    return out


def gat_reference(nft, eft, src_ids, dst_ids, Wp, bp, Wa1, attn2, H):
    """Pure-JAX reference matching the PyTorch/DGL forward (eval mode)."""
    N, F = nft.shape
    E = eft.shape[0]
    D = F // H
    start = nft[src_ids]
    end = nft[dst_ids]
    x = jnp.concatenate([start, eft, end], axis=1)
    ep = x @ Wp + bp
    epaths = ep.reshape(E, H, D)
    a1 = start @ Wa1
    a2 = (epaths * attn2[None]).sum(-1)
    a = a1 + a2
    a = jnp.where(a > 0, a, 0.01 * a)
    mx = jnp.full((N, H), -jnp.inf).at[dst_ids].max(a)
    aexp = jnp.exp(a - mx[dst_ids])
    den = jnp.zeros((N, H)).at[dst_ids].add(aexp)
    att = aexp / den[dst_ids]
    ft = epaths * att[:, :, None]
    nnft = jnp.zeros((N, H, D)).at[dst_ids].add(ft)
    return jax.nn.relu(nnft.reshape(N, F) + nft)


if __name__ == "__main__":
    ft_dim, num_heads = 32, 4
    N, E = 16, 300
    D = ft_dim // num_heads

    key = jax.random.PRNGKey(0)
    ks = jax.random.split(key, 8)
    nft = jax.random.normal(ks[0], (N, ft_dim), jnp.float32)
    eft = jax.random.normal(ks[1], (E, ft_dim), jnp.float32)
    src_ids = jax.random.randint(ks[2], (E,), 0, N)
    dst_ids = jax.random.randint(ks[3], (E,), 0, N)

    # deterministic parameter init (shapes from GAT.__init__)
    Wp = jax.random.normal(ks[4], (3 * ft_dim, ft_dim), jnp.float32) / jnp.sqrt(3.0 * ft_dim)
    bp = jax.random.normal(ks[5], (ft_dim,), jnp.float32) * 0.01
    gain = 1.414
    Wa1 = jax.random.normal(ks[6], (ft_dim, num_heads), jnp.float32) * (
        gain * (2.0 / (ft_dim + num_heads)) ** 0.5)
    attn2 = jax.random.normal(ks[7], (num_heads, D), jnp.float32) * (
        gain * (2.0 / (num_heads + D)) ** 0.5)

    params = {"Wp": Wp, "bp": bp, "Wa1": Wa1, "attn2": attn2}

    # edge_tile=128, E=300 -> E_pad=384, 3 tiles: exercises the multi-tile
    # online-softmax rescaling, the one-hot scatter accumulation and the
    # padded-edge (sentinel id) path.
    out = gat_forward(nft, eft, src_ids, dst_ids, params, num_heads, edge_tile=128)
    out = jax.block_until_ready(out)

    ref = gat_reference(nft, eft, src_ids, dst_ids, Wp, bp, Wa1, attn2, num_heads)
    ref = jax.block_until_ready(ref)

    assert out.shape == (N, ft_dim) and out.dtype == jnp.float32
    err = jnp.max(jnp.abs(out - ref))
    assert jnp.allclose(out, ref, atol=1e-4, rtol=1e-4), f"max abs err = {err}"
    print("KERNEL_OK")
</pallas_src>

<mosaic_0001>
module attributes {stable_mosaic.version = 11 : i64} {
  func.func @_gat_kernel(%arg0: i32, %arg1: memref<128x1xi32, #tpu.memory_space<vmem>>, %arg2: memref<128x1xi32, #tpu.memory_space<vmem>>, %arg3: memref<1x128xi32, #tpu.memory_space<vmem>>, %arg4: memref<16x32xf32, #tpu.memory_space<vmem>>, %arg5: memref<128x32xf32, #tpu.memory_space<vmem>>, %arg6: memref<96x36xf32, #tpu.memory_space<vmem>>, %arg7: memref<1x36xf32, #tpu.memory_space<vmem>>, %arg8: memref<32x4xf32, #tpu.memory_space<vmem>>, %arg9: memref<4x32xf32, #tpu.memory_space<vmem>>, %arg10: memref<16x32xf32, #tpu.memory_space<vmem>>, %arg11: memref<16x4xf32, #tpu.memory_space<vmem>>, %arg12: memref<16x32xf32, #tpu.memory_space<vmem>>, %arg13: memref<16x4xf32, #tpu.memory_space<vmem>>) attributes {dimension_semantics = [#tpu.dimension_semantics<arbitrary>], iteration_bounds = array<i64: 3>, scalar_prefetch = 0 : i64, scratch_operands = 3 : i64, tpu.core_type = #tpu.core_type<tc>, window_params = [{transform_indices = @transform_0, window_bounds = array<i64: 128, 1>}, {transform_indices = @transform_1, window_bounds = array<i64: 128, 1>}, {transform_indices = @transform_2, window_bounds = array<i64: 1, 128>}, {pipeline_mode = #tpu.pipeline_mode<synchronous>, transform_indices = @transform_3, window_bounds = array<i64: 16, 32>}, {transform_indices = @transform_4, window_bounds = array<i64: 128, 32>}, {pipeline_mode = #tpu.pipeline_mode<synchronous>, transform_indices = @transform_5, window_bounds = array<i64: 96, 36>}, {pipeline_mode = #tpu.pipeline_mode<synchronous>, transform_indices = @transform_6, window_bounds = array<i64: 1, 36>}, {pipeline_mode = #tpu.pipeline_mode<synchronous>, transform_indices = @transform_7, window_bounds = array<i64: 32, 4>}, {pipeline_mode = #tpu.pipeline_mode<synchronous>, transform_indices = @transform_8, window_bounds = array<i64: 4, 32>}, {pipeline_mode = #tpu.pipeline_mode<synchronous>, transform_indices = @transform_9, window_bounds = array<i64: 16, 32>}]} {
    %c0_i32 = arith.constant 0 : i32
    %0 = arith.cmpi eq, %arg0, %c0_i32 : i32
    %1 = arith.extui %0 : i1 to i32
    %c0_i32_0 = arith.constant 0 : i32
    %2 = arith.cmpi ne, %1, %c0_i32_0 : i32
    scf.if %2 {
      %cst_60 = arith.constant -1.000000e+30 : f32
      %142 = vector.broadcast %cst_60 : f32 to vector<16x4xf32>
      %c0_61 = arith.constant 0 : index
      %c0_62 = arith.constant 0 : index
      %143 = vector.load %arg11[%c0_61, %c0_62] : memref<16x4xf32, #tpu.memory_space<vmem>>, vector<16x4xf32>
      tpu.vector_store %arg11[%c0_61, %c0_62], %142 {strides = array<i32>} : memref<16x4xf32, #tpu.memory_space<vmem>>, vector<16x4xf32>,
      %cst_63 = arith.constant 0.000000e+00 : f32
      %144 = vector.broadcast %cst_63 : f32 to vector<16x32xf32>
      %c0_64 = arith.constant 0 : index
      %c0_65 = arith.constant 0 : index
      %145 = vector.load %arg12[%c0_64, %c0_65] : memref<16x32xf32, #tpu.memory_space<vmem>>, vector<16x32xf32>
      tpu.vector_store %arg12[%c0_64, %c0_65], %144 {strides = array<i32>} : memref<16x32xf32, #tpu.memory_space<vmem>>, vector<16x32xf32>,
      %cst_66 = arith.constant 0.000000e+00 : f32
      %146 = vector.broadcast %cst_66 : f32 to vector<16x4xf32>
      %c0_67 = arith.constant 0 : index
      %c0_68 = arith.constant 0 : index
      %147 = vector.load %arg13[%c0_67, %c0_68] : memref<16x4xf32, #tpu.memory_space<vmem>>, vector<16x4xf32>
      tpu.vector_store %arg13[%c0_67, %c0_68], %146 {strides = array<i32>} : memref<16x4xf32, #tpu.memory_space<vmem>>, vector<16x4xf32>,
    } else {
    }
    %c0 = arith.constant 0 : index
    %c0_1 = arith.constant 0 : index
    %3 = vector.load %arg1[%c0, %c0_1] : memref<128x1xi32, #tpu.memory_space<vmem>>, vector<128x1xi32>
    %c0_2 = arith.constant 0 : index
    %c0_3 = arith.constant 0 : index
    %4 = vector.load %arg2[%c0_2, %c0_3] : memref<128x1xi32, #tpu.memory_space<vmem>>, vector<128x1xi32>
    %c0_4 = arith.constant 0 : index
    %c0_5 = arith.constant 0 : index
    %5 = vector.load %arg3[%c0_4, %c0_5] : memref<1x128xi32, #tpu.memory_space<vmem>>, vector<1x128xi32>
    %6 = tpu.iota {dimensions = array<i32: 1>} : vector<128x16xi32>
    %7 = vector.broadcast %3 : vector<128x1xi32> to vector<128x16xi32>
    %8 = arith.cmpi eq, %6, %7 : vector<128x16xi32>
    %9 = arith.extui %8 : vector<128x16xi1> to vector<128x16xi32>
    %10 = arith.sitofp %9 : vector<128x16xi32> to vector<128x16xf32>
    %11 = vector.broadcast %4 : vector<128x1xi32> to vector<128x16xi32>
    %12 = arith.cmpi eq, %6, %11 : vector<128x16xi32>
    %13 = arith.extui %12 : vector<128x16xi1> to vector<128x16xi32>
    %14 = arith.sitofp %13 : vector<128x16xi32> to vector<128x16xf32>
    %15 = tpu.iota {dimensions = array<i32: 0>} : vector<16x128xi32>
    %16 = vector.broadcast %5 : vector<1x128xi32> to vector<16x128xi32>
    %17 = arith.cmpi eq, %15, %16 : vector<16x128xi32>
    %18 = arith.extui %17 : vector<16x128xi1> to vector<16x128xi32>
    %19 = arith.sitofp %18 : vector<16x128xi32> to vector<16x128xf32>
    %c0_6 = arith.constant 0 : index
    %c0_7 = arith.constant 0 : index
    %20 = vector.load %arg4[%c0_6, %c0_7] : memref<16x32xf32, #tpu.memory_space<vmem>>, vector<16x32xf32>
    %cst = arith.constant dense<0.000000e+00> : vector<128x32xf32>
    %21 = tpu.matmul %10, %20, %cst {dimension_numbers = #tpu.dot_dimension_numbers<[1], [0], [0], [1], [0, 0, 1, 1], [], []>} : vector<128x16xf32>, vector<16x32xf32>, vector<128x32xf32> -> vector<128x32xf32>
    %cst_8 = arith.constant dense<0.000000e+00> : vector<128x32xf32>
    %22 = tpu.matmul %14, %20, %cst_8 {dimension_numbers = #tpu.dot_dimension_numbers<[1], [0], [0], [1], [0, 0, 1, 1], [], []>} : vector<128x16xf32>, vector<16x32xf32>, vector<128x32xf32> -> vector<128x32xf32>
    %c0_9 = arith.constant 0 : index
    %c0_10 = arith.constant 0 : index
    %23 = vector.load %arg5[%c0_9, %c0_10] : memref<128x32xf32, #tpu.memory_space<vmem>>, vector<128x32xf32>
    %c0_11 = arith.constant 0 : index
    %c0_12 = arith.constant 0 : index
    %24 = vector.load %arg6[%c0_11, %c0_12] : memref<96x36xf32, #tpu.memory_space<vmem>>, vector<96x36xf32>
    %25 = vector.extract_strided_slice %24 {offsets = [0, 0], sizes = [32, 36], strides = [1, 1]} : vector<96x36xf32> to vector<32x36xf32>
    %cst_13 = arith.constant dense<0.000000e+00> : vector<128x36xf32>
    %26 = tpu.matmul %21, %25, %cst_13 {dimension_numbers = #tpu.dot_dimension_numbers<[1], [0], [0], [1], [0, 0, 1, 1], [], []>} : vector<128x32xf32>, vector<32x36xf32>, vector<128x36xf32> -> vector<128x36xf32>
    %27 = vector.extract_strided_slice %24 {offsets = [32, 0], sizes = [32, 36], strides = [1, 1]} : vector<96x36xf32> to vector<32x36xf32>
    %cst_14 = arith.constant dense<0.000000e+00> : vector<128x36xf32>
    %28 = tpu.matmul %23, %27, %cst_14 {dimension_numbers = #tpu.dot_dimension_numbers<[1], [0], [0], [1], [0, 0, 1, 1], [], []>} : vector<128x32xf32>, vector<32x36xf32>, vector<128x36xf32> -> vector<128x36xf32>
    %29 = arith.addf %26, %28 : vector<128x36xf32>
    %30 = vector.extract_strided_slice %24 {offsets = [64, 0], sizes = [32, 36], strides = [1, 1]} : vector<96x36xf32> to vector<32x36xf32>
    %cst_15 = arith.constant dense<0.000000e+00> : vector<128x36xf32>
    %31 = tpu.matmul %22, %30, %cst_15 {dimension_numbers = #tpu.dot_dimension_numbers<[1], [0], [0], [1], [0, 0, 1, 1], [], []>} : vector<128x32xf32>, vector<32x36xf32>, vector<128x36xf32> -> vector<128x36xf32>
    %32 = arith.addf %29, %31 : vector<128x36xf32>
    %c0_16 = arith.constant 0 : index
    %c0_17 = arith.constant 0 : index
    %33 = vector.load %arg7[%c0_16, %c0_17] : memref<1x36xf32, #tpu.memory_space<vmem>>, vector<1x36xf32>
    %34 = vector.broadcast %33 : vector<1x36xf32> to vector<128x36xf32>
    %35 = arith.addf %32, %34 : vector<128x36xf32>
    %36 = vector.extract_strided_slice %35 {offsets = [0, 0], sizes = [128, 32], strides = [1, 1]} : vector<128x36xf32> to vector<128x32xf32>
    %37 = vector.extract_strided_slice %35 {offsets = [0, 32], sizes = [128, 4], strides = [1, 1]} : vector<128x36xf32> to vector<128x4xf32>
    %c0_18 = arith.constant 0 : index
    %c0_19 = arith.constant 0 : index
    %38 = vector.load %arg8[%c0_18, %c0_19] : memref<32x4xf32, #tpu.memory_space<vmem>>, vector<32x4xf32>
    %cst_20 = arith.constant dense<0.000000e+00> : vector<128x4xf32>
    %39 = tpu.matmul %36, %38, %cst_20 {dimension_numbers = #tpu.dot_dimension_numbers<[1], [0], [0], [1], [0, 0, 1, 1], [], []>} : vector<128x32xf32>, vector<32x4xf32>, vector<128x4xf32> -> vector<128x4xf32>
    %40 = arith.addf %37, %39 : vector<128x4xf32>
    %cst_21 = arith.constant 0.000000e+00 : f32
    %41 = vector.broadcast %cst_21 : f32 to vector<128x4xf32>
    %42 = arith.cmpf ogt, %40, %41 : vector<128x4xf32>
    %cst_22 = arith.constant 0.00999999977 : f32
    %43 = vector.broadcast %cst_22 : f32 to vector<128x4xf32>
    %44 = arith.mulf %43, %40 : vector<128x4xf32>
    %45 = arith.select %42, %40, %44 : vector<128x4xi1>, vector<128x4xf32>
    %c16_i32 = arith.constant 16 : i32
    %46 = vector.broadcast %c16_i32 : i32 to vector<128x1xi32>
    %47 = arith.cmpi slt, %4, %46 : vector<128x1xi32>
    %cst_23 = arith.constant 0.000000e+00 : f32
    %48 = vector.shape_cast %47 : vector<128x1xi1> to vector<128x1xi1>
    %49 = vector.broadcast %48 : vector<128x1xi1> to vector<128x4xi1>
    %50 = vector.broadcast %cst_23 : f32 to vector<128x4xf32>
    %51 = arith.select %49, %45, %50 : vector<128x4xi1>, vector<128x4xf32>
    %52 = tpu.iota {dimensions = array<i32: 0>} : vector<4x128xi32>
    %53 = tpu.iota {dimensions = array<i32: 1>} : vector<4x128xi32>
    %54 = arith.cmpi eq, %52, %53 : vector<4x128xi32>
    %55 = arith.extui %54 : vector<4x128xi1> to vector<4x128xi32>
    %56 = arith.sitofp %55 : vector<4x128xi32> to vector<4x128xf32>
    %cst_24 = arith.constant dense<0.000000e+00> : vector<128x128xf32>
    %57 = tpu.matmul %51, %56, %cst_24 {dimension_numbers = #tpu.dot_dimension_numbers<[1], [0], [0], [1], [0, 0, 1, 1], [], []>} : vector<128x4xf32>, vector<4x128xf32>, vector<128x128xf32> -> vector<128x128xf32>
    %58 = tpu.transpose %57, [1, 0] : vector<128x128xf32> -> vector<128x128xf32>
    %59 = tpu.iota {dimensions = array<i32: 1>} : vector<16x4xi32>
    %cst_25 = arith.constant -1.000000e+30 : f32
    %60 = vector.broadcast %cst_25 : f32 to vector<16x4xf32>
    %cst_26 = arith.constant 5.000000e-01 : f32
    %61 = vector.broadcast %cst_26 : f32 to vector<16x128xf32>
    %62 = arith.cmpf ogt, %19, %61 : vector<16x128xf32>
    %63 = vector.extract_strided_slice %58 {offsets = [0, 0], sizes = [1, 128], strides = [1, 1]} : vector<128x128xf32> to vector<1x128xf32>
    %cst_27 = arith.constant -1.000000e+30 : f32
    %64 = vector.shape_cast %63 : vector<1x128xf32> to vector<1x128xf32>
    %65 = vector.broadcast %64 : vector<1x128xf32> to vector<16x128xf32>
    %66 = vector.broadcast %cst_27 : f32 to vector<16x128xf32>
    %67 = arith.select %62, %65, %66 : vector<16x128xi1>, vector<16x128xf32>
    %cst_28 = arith.constant dense<0xFF800000> : vector<16xf32>
    %68 = vector.multi_reduction <maximumf>, %67, %cst_28 [1] : vector<16x128xf32> to vector<16xf32>
    %69 = vector.shape_cast %68 : vector<16xf32> to vector<16x1xf32>
    %c0_i32_29 = arith.constant 0 : i32
    %70 = vector.broadcast %c0_i32_29 : i32 to vector<16x4xi32>
    %71 = arith.cmpi eq, %59, %70 : vector<16x4xi32>
    %72 = vector.shape_cast %69 : vector<16x1xf32> to vector<16x1xf32>
    %73 = vector.broadcast %72 : vector<16x1xf32> to vector<16x4xf32>
    %74 = arith.select %71, %73, %60 : vector<16x4xi1>, vector<16x4xf32>
    %cst_30 = arith.constant 5.000000e-01 : f32
    %75 = vector.broadcast %cst_30 : f32 to vector<16x128xf32>
    %76 = arith.cmpf ogt, %19, %75 : vector<16x128xf32>
    %77 = vector.extract_strided_slice %58 {offsets = [1, 0], sizes = [1, 128], strides = [1, 1]} : vector<128x128xf32> to vector<1x128xf32>
    %cst_31 = arith.constant -1.000000e+30 : f32
    %78 = vector.shape_cast %77 : vector<1x128xf32> to vector<1x128xf32>
    %79 = vector.broadcast %78 : vector<1x128xf32> to vector<16x128xf32>
    %80 = vector.broadcast %cst_31 : f32 to vector<16x128xf32>
    %81 = arith.select %76, %79, %80 : vector<16x128xi1>, vector<16x128xf32>
    %cst_32 = arith.constant dense<0xFF800000> : vector<16xf32>
    %82 = vector.multi_reduction <maximumf>, %81, %cst_32 [1] : vector<16x128xf32> to vector<16xf32>
    %83 = vector.shape_cast %82 : vector<16xf32> to vector<16x1xf32>
    %c1_i32 = arith.constant 1 : i32
    %84 = vector.broadcast %c1_i32 : i32 to vector<16x4xi32>
    %85 = arith.cmpi eq, %59, %84 : vector<16x4xi32>
    %86 = vector.shape_cast %83 : vector<16x1xf32> to vector<16x1xf32>
    %87 = vector.broadcast %86 : vector<16x1xf32> to vector<16x4xf32>
    %88 = arith.select %85, %87, %74 : vector<16x4xi1>, vector<16x4xf32>
    %cst_33 = arith.constant 5.000000e-01 : f32
    %89 = vector.broadcast %cst_33 : f32 to vector<16x128xf32>
    %90 = arith.cmpf ogt, %19, %89 : vector<16x128xf32>
    %91 = vector.extract_strided_slice %58 {offsets = [2, 0], sizes = [1, 128], strides = [1, 1]} : vector<128x128xf32> to vector<1x128xf32>
    %cst_34 = arith.constant -1.000000e+30 : f32
    %92 = vector.shape_cast %91 : vector<1x128xf32> to vector<1x128xf32>
    %93 = vector.broadcast %92 : vector<1x128xf32> to vector<16x128xf32>
    %94 = vector.broadcast %cst_34 : f32 to vector<16x128xf32>
    %95 = arith.select %90, %93, %94 : vector<16x128xi1>, vector<16x128xf32>
    %cst_35 = arith.constant dense<0xFF800000> : vector<16xf32>
    %96 = vector.multi_reduction <maximumf>, %95, %cst_35 [1] : vector<16x128xf32> to vector<16xf32>
    %97 = vector.shape_cast %96 : vector<16xf32> to vector<16x1xf32>
    %c2_i32 = arith.constant 2 : i32
    %98 = vector.broadcast %c2_i32 : i32 to vector<16x4xi32>
    %99 = arith.cmpi eq, %59, %98 : vector<16x4xi32>
    %100 = vector.shape_cast %97 : vector<16x1xf32> to vector<16x1xf32>
    %101 = vector.broadcast %100 : vector<16x1xf32> to vector<16x4xf32>
    %102 = arith.select %99, %101, %88 : vector<16x4xi1>, vector<16x4xf32>
    %cst_36 = arith.constant 5.000000e-01 : f32
    %103 = vector.broadcast %cst_36 : f32 to vector<16x128xf32>
    %104 = arith.cmpf ogt, %19, %103 : vector<16x128xf32>
    %105 = vector.extract_strided_slice %58 {offsets = [3, 0], sizes = [1, 128], strides = [1, 1]} : vector<128x128xf32> to vector<1x128xf32>
    %cst_37 = arith.constant -1.000000e+30 : f32
    %106 = vector.shape_cast %105 : vector<1x128xf32> to vector<1x128xf32>
    %107 = vector.broadcast %106 : vector<1x128xf32> to vector<16x128xf32>
    %108 = vector.broadcast %cst_37 : f32 to vector<16x128xf32>
    %109 = arith.select %104, %107, %108 : vector<16x128xi1>, vector<16x128xf32>
    %cst_38 = arith.constant dense<0xFF800000> : vector<16xf32>
    %110 = vector.multi_reduction <maximumf>, %109, %cst_38 [1] : vector<16x128xf32> to vector<16xf32>
    %111 = vector.shape_cast %110 : vector<16xf32> to vector<16x1xf32>
    %c3_i32 = arith.constant 3 : i32
    %112 = vector.broadcast %c3_i32 : i32 to vector<16x4xi32>
    %113 = arith.cmpi eq, %59, %112 : vector<16x4xi32>
    %114 = vector.shape_cast %111 : vector<16x1xf32> to vector<16x1xf32>
    %115 = vector.broadcast %114 : vector<16x1xf32> to vector<16x4xf32>
    %116 = arith.select %113, %115, %102 : vector<16x4xi1>, vector<16x4xf32>
    %c0_39 = arith.constant 0 : index
    %c0_40 = arith.constant 0 : index
    %117 = vector.load %arg11[%c0_39, %c0_40] : memref<16x4xf32, #tpu.memory_space<vmem>>, vector<16x4xf32>
    %118 = arith.maximumf %117, %116 : vector<16x4xf32>
    %c0_41 = arith.constant 0 : index
    %c0_42 = arith.constant 0 : index
    %119 = vector.load %arg11[%c0_41, %c0_42] : memref<16x4xf32, #tpu.memory_space<vmem>>, vector<16x4xf32>
    tpu.vector_store %arg11[%c0_41, %c0_42], %118 {strides = array<i32>} : memref<16x4xf32, #tpu.memory_space<vmem>>, vector<16x4xf32>,
    %120 = arith.subf %117, %118 : vector<16x4xf32>
    %121 = math.exp %120 : vector<16x4xf32>
    %c0_43 = arith.constant 0 : index
    %c0_44 = arith.constant 0 : index
    %122 = vector.load %arg9[%c0_43, %c0_44] : memref<4x32xf32, #tpu.memory_space<vmem>>, vector<4x32xf32>
    %cst_45 = arith.constant dense<0.000000e+00> : vector<16x32xf32>
    %123 = tpu.matmul %121, %122, %cst_45 {dimension_numbers = #tpu.dot_dimension_numbers<[1], [0], [0], [1], [0, 0, 1, 1], [], []>} : vector<16x4xf32>, vector<4x32xf32>, vector<16x32xf32> -> vector<16x32xf32>
    %cst_46 = arith.constant dense<0.000000e+00> : vector<128x4xf32>
    %124 = tpu.matmul %14, %118, %cst_46 {dimension_numbers = #tpu.dot_dimension_numbers<[1], [0], [0], [1], [0, 0, 1, 1], [], []>} : vector<128x16xf32>, vector<16x4xf32>, vector<128x4xf32> -> vector<128x4xf32>
    %125 = arith.subf %51, %124 : vector<128x4xf32>
    %126 = math.exp %125 : vector<128x4xf32>
    %cst_47 = arith.constant dense<0.000000e+00> : vector<128x32xf32>
    %127 = tpu.matmul %126, %122, %cst_47 {dimension_numbers = #tpu.dot_dimension_numbers<[1], [0], [0], [1], [0, 0, 1, 1], [], []>} : vector<128x4xf32>, vector<4x32xf32>, vector<128x32xf32> -> vector<128x32xf32>
    %c0_48 = arith.constant 0 : index
    %c0_49 = arith.constant 0 : index
    %128 = vector.load %arg12[%c0_48, %c0_49] : memref<16x32xf32, #tpu.memory_space<vmem>>, vector<16x32xf32>
    %129 = arith.mulf %128, %123 : vector<16x32xf32>
    %130 = arith.mulf %36, %127 : vector<128x32xf32>
    %cst_50 = arith.constant dense<0.000000e+00> : vector<16x32xf32>
    %131 = tpu.matmul %19, %130, %cst_50 {dimension_numbers = #tpu.dot_dimension_numbers<[1], [0], [0], [1], [0, 0, 1, 1], [], []>} : vector<16x128xf32>, vector<128x32xf32>, vector<16x32xf32> -> vector<16x32xf32>
    %132 = arith.addf %129, %131 : vector<16x32xf32>
    %c0_51 = arith.constant 0 : index
    %c0_52 = arith.constant 0 : index
    %133 = vector.load %arg12[%c0_51, %c0_52] : memref<16x32xf32, #tpu.memory_space<vmem>>, vector<16x32xf32>
    tpu.vector_store %arg12[%c0_51, %c0_52], %132 {strides = array<i32>} : memref<16x32xf32, #tpu.memory_space<vmem>>, vector<16x32xf32>,
    %c0_53 = arith.constant 0 : index
    %c0_54 = arith.constant 0 : index
    %134 = vector.load %arg13[%c0_53, %c0_54] : memref<16x4xf32, #tpu.memory_space<vmem>>, vector<16x4xf32>
    %135 = arith.mulf %134, %121 : vector<16x4xf32>
    %cst_55 = arith.constant dense<0.000000e+00> : vector<16x4xf32>
    %136 = tpu.matmul %19, %126, %cst_55 {dimension_numbers = #tpu.dot_dimension_numbers<[1], [0], [0], [1], [0, 0, 1, 1], [], []>} : vector<16x128xf32>, vector<128x4xf32>, vector<16x4xf32> -> vector<16x4xf32>
    %137 = arith.addf %135, %136 : vector<16x4xf32>
    %c0_56 = arith.constant 0 : index
    %c0_57 = arith.constant 0 : index
    %138 = vector.load %arg13[%c0_56, %c0_57] : memref<16x4xf32, #tpu.memory_space<vmem>>, vector<16x4xf32>
    tpu.vector_store %arg13[%c0_56, %c0_57], %137 {strides = array<i32>} : memref<16x4xf32, #tpu.memory_space<vmem>>, vector<16x4xf32>,
    %c2_i32_58 = arith.constant 2 : i32
    %139 = arith.cmpi eq, %arg0, %c2_i32_58 : i32
    %140 = arith.extui %139 : i1 to i32
    %c0_i32_59 = arith.constant 0 : i32
    %141 = arith.cmpi ne, %140, %c0_i32_59 : i32
    scf.if %141 {
      %c0_60 = arith.constant 0 : index
      %c0_61 = arith.constant 0 : index
      %142 = vector.load %arg13[%c0_60, %c0_61] : memref<16x4xf32, #tpu.memory_space<vmem>>, vector<16x4xf32>
      %cst_62 = arith.constant 0.000000e+00 : f32
      %143 = vector.broadcast %cst_62 : f32 to vector<16x4xf32>
      %144 = arith.cmpf ogt, %142, %143 : vector<16x4xf32>
      %cst_63 = arith.constant 1.000000e+00 : f32
      %145 = vector.broadcast %cst_63 : f32 to vector<16x4xf32>
      %146 = arith.select %144, %142, %145 : vector<16x4xi1>, vector<16x4xf32>
      %147 = tpu.reciprocal %146 : vector<16x4xf32> -> vector<16x4xf32>
      %cst_64 = arith.constant dense<0.000000e+00> : vector<16x32xf32>
      %148 = tpu.matmul %147, %122, %cst_64 {dimension_numbers = #tpu.dot_dimension_numbers<[1], [0], [0], [1], [0, 0, 1, 1], [], []>} : vector<16x4xf32>, vector<4x32xf32>, vector<16x32xf32> -> vector<16x32xf32>
      %c0_65 = arith.constant 0 : index
      %c0_66 = arith.constant 0 : index
      %149 = vector.load %arg12[%c0_65, %c0_66] : memref<16x32xf32, #tpu.memory_space<vmem>>, vector<16x32xf32>
      %150 = arith.mulf %149, %148 : vector<16x32xf32>
      %151 = arith.addf %150, %20 : vector<16x32xf32>
      %cst_67 = arith.constant 0.000000e+00 : f32
      %152 = vector.broadcast %cst_67 : f32 to vector<16x32xf32>
      %153 = arith.maximumf %151, %152 : vector<16x32xf32>
      %c0_68 = arith.constant 0 : index
      %c0_69 = arith.constant 0 : index
      %154 = vector.load %arg10[%c0_68, %c0_69] : memref<16x32xf32, #tpu.memory_space<vmem>>, vector<16x32xf32>
      tpu.vector_store %arg10[%c0_68, %c0_69], %153 {strides = array<i32>} : memref<16x32xf32, #tpu.memory_space<vmem>>, vector<16x32xf32>,
    } else {
    }
    return
  }
  func.func @transform_0(%arg0: i32) -> (i32, i32) {
    %c0_i32 = arith.constant 0 : i32
    %c0_i32_0 = arith.constant 0 : i32
    return %arg0, %c0_i32 : i32, i32
  }
  func.func @transform_1(%arg0: i32) -> (i32, i32) {
    %c0_i32 = arith.constant 0 : i32
    %c0_i32_0 = arith.constant 0 : i32
    return %arg0, %c0_i32 : i32, i32
  }
  func.func @transform_2(%arg0: i32) -> (i32, i32) {
    %c0_i32 = arith.constant 0 : i32
    %c0_i32_0 = arith.constant 0 : i32
    return %c0_i32, %arg0 : i32, i32
  }
  func.func @transform_3(%arg0: i32) -> (i32, i32) {
    %c0_i32 = arith.constant 0 : i32
    %c0_i32_0 = arith.constant 0 : i32
    %c0_i32_1 = arith.constant 0 : i32
    return %c0_i32, %c0_i32_0 : i32, i32
  }
  func.func @transform_4(%arg0: i32) -> (i32, i32) {
    %c0_i32 = arith.constant 0 : i32
    %c0_i32_0 = arith.constant 0 : i32
    return %arg0, %c0_i32 : i32, i32
  }
  func.func @transform_5(%arg0: i32) -> (i32, i32) {
    %c0_i32 = arith.constant 0 : i32
    %c0_i32_0 = arith.constant 0 : i32
    %c0_i32_1 = arith.constant 0 : i32
    return %c0_i32, %c0_i32_0 : i32, i32
  }
  func.func @transform_6(%arg0: i32) -> (i32, i32) {
    %c0_i32 = arith.constant 0 : i32
    %c0_i32_0 = arith.constant 0 : i32
    %c0_i32_1 = arith.constant 0 : i32
    return %c0_i32, %c0_i32_0 : i32, i32
  }
  func.func @transform_7(%arg0: i32) -> (i32, i32) {
    %c0_i32 = arith.constant 0 : i32
    %c0_i32_0 = arith.constant 0 : i32
    %c0_i32_1 = arith.constant 0 : i32
    return %c0_i32, %c0_i32_0 : i32, i32
  }
  func.func @transform_8(%arg0: i32) -> (i32, i32) {
    %c0_i32 = arith.constant 0 : i32
    %c0_i32_0 = arith.constant 0 : i32
    %c0_i32_1 = arith.constant 0 : i32
    return %c0_i32, %c0_i32_0 : i32, i32
  }
  func.func @transform_9(%arg0: i32) -> (i32, i32) {
    %c0_i32 = arith.constant 0 : i32
    %c0_i32_0 = arith.constant 0 : i32
    %c0_i32_1 = arith.constant 0 : i32
    return %c0_i32, %c0_i32_0 : i32, i32
  }
}

</mosaic_0001>

<llo_original>
// kernel: tpu_custom_call.1
$region0: #{tpu_custom_call.1}
  #allocation0 [shape = 'u32[]', space=smem, size = 0x4, offset = 0x4, fixed_abs, tag = 'smem constant byte address 0x4 - core index']
  #allocation1 [shape = 'u32[144,128]{1,0:T(1,128)}', space=vmem, size = 0x12000, scoped, tag = 'internal scratch']
  #allocation2 [shape = 'f32[16,4]{1,0:T(8,128)}', space=vmem, size = 0x2000, scoped, tag = 'scratch operand']
  #allocation3 [shape = 'f32[16,32]{1,0:T(8,128)}', space=vmem, size = 0x2000, scoped, tag = 'scratch operand']
  #allocation4 [shape = 'f32[16,4]{1,0:T(8,128)}', space=vmem, size = 0x2000, scoped, tag = 'scratch operand']
  %s0 = inlined_call_operand.vmem [shape: s32[384,1], index: 0, kind: input, shape index: {}]
  %s1 = inlined_call_operand.vmem [shape: s32[384,1], index: 1, kind: input, shape index: {}]
  %s2 = inlined_call_operand.vmem [shape: s32[1,384], index: 2, kind: input, shape index: {}]
  %s3 = inlined_call_operand.vmem [shape: f32[16,32], index: 3, kind: input, shape index: {}]
  %s4 = inlined_call_operand.vmem [shape: f32[384,32], index: 4, kind: input, shape index: {}]
  %s5 = inlined_call_operand.vmem [shape: f32[96,36], index: 5, kind: input, shape index: {}]
  %s6 = inlined_call_operand.vmem [shape: f32[1,36], index: 6, kind: input, shape index: {}]
  %s7 = inlined_call_operand.vmem [shape: f32[32,4], index: 7, kind: input, shape index: {}]
  %s8 = inlined_call_operand.vmem [shape: f32[4,32], index: 8, kind: input, shape index: {}]
  %s9 = inlined_call_operand.hbm [shape: f32[16,32], index: 9, kind: output, shape index: {}]
  %s10 = sld [smem:[#allocation0]]
  $region77: #{tpu_custom_call.1} parent=0
    _
  %s12 = ssub.s32 1, %s10
  %s13 = scalar_select 0, %s12, %s10
  $region1: #{tpu_custom_call.1} parent=0
    #allocation5 [shape = 'u8[8192]{0}', space=vmem, size = 0x2000, scoped, tag = 'output window, operand 0, single buffered']
    #allocation6 [shape = 's32[2]{0}', space=sflag, size = 0x8, scoped, tag = 'scoped memory for tpu_custom_call.1']
    %14 = vsyncpa [#allocation6], 0
    loop: start=0, step=1, limit=5
    $region2: #{tpu_custom_call.1} parent=1 // loop_pre_header
      _
    $region3: #{tpu_custom_call.1} parent=1 // loop_header
      %s16 = sphi 0, %s20
      %p17 = scmp.ge.s32.totalorder %s16, 5
      %s26 = sphi 0, %s28
      %s29 = sphi 0, %s26
      %s30 = sphi 0, %s29
      %s46 = sphi 0, %s30
      %s52 = sphi 0, %s54
      %s55 = sphi 0, %s52
      %s56 = sphi 0, %s55
      %s72 = sphi 0, %s56
      %s78 = sphi 0, %s80
      %s81 = sphi 0, %s78
      %s82 = sphi 0, %s81
      %s98 = sphi 0, %s82
      %s102 = sphi 0, %s102
      %s104 = sphi 0, %s102
      %s105 = sphi 0, %s104
      %s119 = sphi 0, %s105
      %s125 = sphi 0, %s127
      %s128 = sphi 0, %s125
      %s129 = sphi 0, %s128
      %s145 = sphi 0, %s129
      %s149 = sphi 0, %s149
      %s151 = sphi 0, %s149
      %s152 = sphi 0, %s151
      %s166 = sphi 0, %s152
      %s170 = sphi 0, %s170
      %s172 = sphi 0, %s170
      %s173 = sphi 0, %s172
      %s187 = sphi 0, %s173
      %s191 = sphi 0, %s191
      %s193 = sphi 0, %s191
      %s194 = sphi 0, %s193
      %s208 = sphi 0, %s194
      %s212 = sphi 0, %s212
      %s214 = sphi 0, %s212
      %s215 = sphi 0, %s214
      %s229 = sphi 0, %s215
      %s233 = sphi 0, %s233
      %s235 = sphi 0, %s233
      %s236 = sphi 0, %s235
      %s250 = sphi 0, %s236
    $region4: #{tpu_custom_call.1} parent=1 // loop_header_branch
      %19 = sbr.rel (%p17) target = $region8
    $region5: #{tpu_custom_call.1} parent=1 // loop_body
      %s21 = ssub.s32 %s16, 1
      %s22 = ssub.s32 %s16, 2
      %s23 = sadd.s32 %s16, 1
      %s24 = ssub.s32 %s16, %s23
      %p25 = scmp.eq.s32.totalorder %s24, 0
      %s27 = sadd.s32 %s26, 1
      %s28 = scalar_select %p25, %s26, %s27
      %p31 = pneg %p25
      %p32 = scmp.eq.s32.totalorder %s16, 2
      %p33 = por %p31, %p32
      %p34 = scmp.ne.s32.totalorder %s26, %s29
      %p35 = scmp.eq.s32.totalorder %s16, 0
      %p36 = por %p34, %p35
      %p37 = scmp.ne.s32.totalorder %s26, %s29
      %p38 = scmp.eq.s32.totalorder %s21, 2
      %p39 = por %p37, %p38
      %p40 = scmp.ne.s32.totalorder %s29, %s30
      %p41 = scmp.eq.s32.totalorder %s21, 0
      %p42 = por %p40, %p41
      %p43 = scmp.ne.s32.totalorder %s29, %s30
      %p44 = scmp.eq.s32.totalorder %s22, 2
      %p45 = por %p43, %p44
      %p47 = scmp.ne.s32.totalorder %s30, %s46
      %p48 = scmp.eq.s32.totalorder %s22, 0
      %p49 = por %p47, %p48
      %s50 = ssub.s32 %s16, %s23
      %p51 = scmp.eq.s32.totalorder %s50, 0
      %s53 = sadd.s32 %s52, 1
      %s54 = scalar_select %p51, %s52, %s53
      %p57 = pneg %p51
      %p58 = scmp.eq.s32.totalorder %s16, 2
      %p59 = por %p57, %p58
      %p60 = scmp.ne.s32.totalorder %s52, %s55
      %p61 = scmp.eq.s32.totalorder %s16, 0
      %p62 = por %p60, %p61
      %p63 = scmp.ne.s32.totalorder %s52, %s55
      %p64 = scmp.eq.s32.totalorder %s21, 2
      %p65 = por %p63, %p64
      %p66 = scmp.ne.s32.totalorder %s55, %s56
      %p67 = scmp.eq.s32.totalorder %s21, 0
      %p68 = por %p66, %p67
      %p69 = scmp.ne.s32.totalorder %s55, %s56
      %p70 = scmp.eq.s32.totalorder %s22, 2
      %p71 = por %p69, %p70
      %p73 = scmp.ne.s32.totalorder %s56, %s72
      %p74 = scmp.eq.s32.totalorder %s22, 0
      %p75 = por %p73, %p74
      %s76 = ssub.s32 %s16, %s23
      %p77 = scmp.eq.s32.totalorder %s76, 0
      %s79 = sadd.s32 %s78, 1
      %s80 = scalar_select %p77, %s78, %s79
      %p83 = pneg %p77
      %p84 = scmp.eq.s32.totalorder %s16, 2
      %p85 = por %p83, %p84
      %p86 = scmp.ne.s32.totalorder %s78, %s81
      %p87 = scmp.eq.s32.totalorder %s16, 0
      %p88 = por %p86, %p87
      %p89 = scmp.ne.s32.totalorder %s78, %s81
      %p90 = scmp.eq.s32.totalorder %s21, 2
      %p91 = por %p89, %p90
      %p92 = scmp.ne.s32.totalorder %s81, %s82
      %p93 = scmp.eq.s32.totalorder %s21, 0
      %p94 = por %p92, %p93
      %p95 = scmp.ne.s32.totalorder %s81, %s82
      %p96 = scmp.eq.s32.totalorder %s22, 2
      %p97 = por %p95, %p96
      %p99 = scmp.ne.s32.totalorder %s82, %s98
      %p100 = scmp.eq.s32.totalorder %s22, 0
      %p101 = por %p99, %p100
      %s103 = sadd.s32 %s102, 1
      %p106 = scmp.eq.s32.totalorder %s16, 2
      %p107 = scmp.ne.s32.totalorder %s102, %s104
      %p108 = scmp.eq.s32.totalorder %s16, 0
      %p109 = por %p107, %p108
      %p110 = scmp.ne.s32.totalorder %s102, %s104
      %p111 = scmp.eq.s32.totalorder %s21, 2
      %p112 = por %p110, %p111
      %p113 = scmp.ne.s32.totalorder %s104, %s105
      %p114 = scmp.eq.s32.totalorder %s21, 0
      %p115 = por %p113, %p114
      %p116 = scmp.ne.s32.totalorder %s104, %s105
      %p117 = scmp.eq.s32.totalorder %s22, 2
      %p118 = por %p116, %p117
      %p120 = scmp.ne.s32.totalorder %s105, %s119
      %p121 = scmp.eq.s32.totalorder %s22, 0
      %p122 = por %p120, %p121
      %s123 = ssub.s32 %s16, %s23
      %p124 = scmp.eq.s32.totalorder %s123, 0
      %s126 = sadd.s32 %s125, 1
      %s127 = scalar_select %p124, %s125, %s126
      %p130 = pneg %p124
      %p131 = scmp.eq.s32.totalorder %s16, 2
      %p132 = por %p130, %p131
      %p133 = scmp.ne.s32.totalorder %s125, %s128
      %p134 = scmp.eq.s32.totalorder %s16, 0
      %p135 = por %p133, %p134
      %p136 = scmp.ne.s32.totalorder %s125, %s128
      %p137 = scmp.eq.s32.totalorder %s21, 2
      %p138 = por %p136, %p137
      %p139 = scmp.ne.s32.totalorder %s128, %s129
      %p140 = scmp.eq.s32.totalorder %s21, 0
      %p141 = por %p139, %p140
      %p142 = scmp.ne.s32.totalorder %s128, %s129
      %p143 = scmp.eq.s32.totalorder %s22, 2
      %p144 = por %p142, %p143
      %p146 = scmp.ne.s32.totalorder %s129, %s145
      %p147 = scmp.eq.s32.totalorder %s22, 0
      %p148 = por %p146, %p147
      %s150 = sadd.s32 %s149, 1
      %p153 = scmp.eq.s32.totalorder %s16, 2
      %p154 = scmp.ne.s32.totalorder %s149, %s151
      %p155 = scmp.eq.s32.totalorder %s16, 0
      %p156 = por %p154, %p155
      %p157 = scmp.ne.s32.totalorder %s149, %s151
      %p158 = scmp.eq.s32.totalorder %s21, 2
      %p159 = por %p157, %p158
      %p160 = scmp.ne.s32.totalorder %s151, %s152
      %p161 = scmp.eq.s32.totalorder %s21, 0
      %p162 = por %p160, %p161
      %p163 = scmp.ne.s32.totalorder %s151, %s152
      %p164 = scmp.eq.s32.totalorder %s22, 2
      %p165 = por %p163, %p164
      %p167 = scmp.ne.s32.totalorder %s152, %s166
      %p168 = scmp.eq.s32.totalorder %s22, 0
      %p169 = por %p167, %p168
      %s171 = sadd.s32 %s170, 1
      %p174 = scmp.eq.s32.totalorder %s16, 2
      %p175 = scmp.ne.s32.totalorder %s170, %s172
      %p176 = scmp.eq.s32.totalorder %s16, 0
      %p177 = por %p175, %p176
      %p178 = scmp.ne.s32.totalorder %s170, %s172
      %p179 = scmp.eq.s32.totalorder %s21, 2
      %p180 = por %p178, %p179
      %p181 = scmp.ne.s32.totalorder %s172, %s173
      %p182 = scmp.eq.s32.totalorder %s21, 0
      %p183 = por %p181, %p182
      %p184 = scmp.ne.s32.totalorder %s172, %s173
      %p185 = scmp.eq.s32.totalorder %s22, 2
      %p186 = por %p184, %p185
      %p188 = scmp.ne.s32.totalorder %s173, %s187
      %p189 = scmp.eq.s32.totalorder %s22, 0
      %p190 = por %p188, %p189
      %s192 = sadd.s32 %s191, 1
      %p195 = scmp.eq.s32.totalorder %s16, 2
      %p196 = scmp.ne.s32.totalorder %s191, %s193
      %p197 = scmp.eq.s32.totalorder %s16, 0
      %p198 = por %p196, %p197
      %p199 = scmp.ne.s32.totalorder %s191, %s193
      %p200 = scmp.eq.s32.totalorder %s21, 2
      %p201 = por %p199, %p200
      %p202 = scmp.ne.s32.totalorder %s193, %s194
      %p203 = scmp.eq.s32.totalorder %s21, 0
      %p204 = por %p202, %p203
      %p205 = scmp.ne.s32.totalorder %s193, %s194
      %p206 = scmp.eq.s32.totalorder %s22, 2
      %p207 = por %p205, %p206
      %p209 = scmp.ne.s32.totalorder %s194, %s208
      %p210 = scmp.eq.s32.totalorder %s22, 0
      %p211 = por %p209, %p210
      %s213 = sadd.s32 %s212, 1
      %p216 = scmp.eq.s32.totalorder %s16, 2
      %p217 = scmp.ne.s32.totalorder %s212, %s214
      %p218 = scmp.eq.s32.totalorder %s16, 0
      %p219 = por %p217, %p218
      %p220 = scmp.ne.s32.totalorder %s212, %s214
      %p221 = scmp.eq.s32.totalorder %s21, 2
      %p222 = por %p220, %p221
      %p223 = scmp.ne.s32.totalorder %s214, %s215
      %p224 = scmp.eq.s32.totalorder %s21, 0
      %p225 = por %p223, %p224
      %p226 = scmp.ne.s32.totalorder %s214, %s215
      %p227 = scmp.eq.s32.totalorder %s22, 2
      %p228 = por %p226, %p227
      %p230 = scmp.ne.s32.totalorder %s215, %s229
      %p231 = scmp.eq.s32.totalorder %s22, 0
      %p232 = por %p230, %p231
      %s234 = sadd.s32 %s233, 1
      %p237 = scmp.eq.s32.totalorder %s16, 2
      %p238 = scmp.ne.s32.totalorder %s233, %s235
      %p239 = scmp.eq.s32.totalorder %s16, 0
      %p240 = por %p238, %p239
      %p241 = scmp.ne.s32.totalorder %s233, %s235
      %p242 = scmp.eq.s32.totalorder %s21, 2
      %p243 = por %p241, %p242
      %p244 = scmp.ne.s32.totalorder %s235, %s236
      %p245 = scmp.eq.s32.totalorder %s21, 0
      %p246 = por %p244, %p245
      %p247 = scmp.ne.s32.totalorder %s235, %s236
      %p248 = scmp.eq.s32.totalorder %s22, 2
      %p249 = por %p247, %p248
      %p251 = scmp.ne.s32.totalorder %s236, %s250
      %p252 = scmp.eq.s32.totalorder %s22, 0
      %p253 = por %p251, %p252
      %p254 = scmp.le.s32.totalorder 1, %s16
      %p255 = scmp.lt.s32.totalorder %s16, 4
      %p256 = pnand %p254, %p255
      %p257 = pneg %p256
      // Predicated region
      $region9: #{tpu_custom_call.1} parent=5 // pred_check
        _
      $region10: #{tpu_custom_call.1} parent=5 // pred_check_branch
        %259 = sbr.rel (%p256) target = $region12
      $region11: #{tpu_custom_call.1} parent=5 // pred_region
        %s260 = ssub.s32 %s16, 1
        // Predicated region
        $region13: #{tpu_custom_call.1} parent=11 // pred_check
          %p261 = pneg %p115
        $region14: #{tpu_custom_call.1} parent=11 // pred_check_branch
          %263 = sbr.rel (%p261) target = $region16
        $region15: #{tpu_custom_call.1} parent=11 // pred_region
          _
        $region16: #{tpu_custom_call.1} parent=11 // pred_fallthru
          _
        // Predicated region
        $region17: #{tpu_custom_call.1} parent=11 // pred_check
          %p264 = pneg %p162
        $region18: #{tpu_custom_call.1} parent=11 // pred_check_branch
          %266 = sbr.rel (%p264) target = $region20
        $region19: #{tpu_custom_call.1} parent=11 // pred_region
          _
        $region20: #{tpu_custom_call.1} parent=11 // pred_fallthru
          _
        // Predicated region
        $region21: #{tpu_custom_call.1} parent=11 // pred_check
          %p267 = pneg %p183
        $region22: #{tpu_custom_call.1} parent=11 // pred_check_branch
          %269 = sbr.rel (%p267) target = $region24
        $region23: #{tpu_custom_call.1} parent=11 // pred_region
          _
        $region24: #{tpu_custom_call.1} parent=11 // pred_fallthru
          _
        // Predicated region
        $region25: #{tpu_custom_call.1} parent=11 // pred_check
          %p270 = pneg %p204
        $region26: #{tpu_custom_call.1} parent=11 // pred_check_branch
          %272 = sbr.rel (%p270) target = $region28
        $region27: #{tpu_custom_call.1} parent=11 // pred_region
          _
        $region28: #{tpu_custom_call.1} parent=11 // pred_fallthru
          _
        // Predicated region
        $region29: #{tpu_custom_call.1} parent=11 // pred_check
          %p273 = pneg %p225
        $region30: #{tpu_custom_call.1} parent=11 // pred_check_branch
          %275 = sbr.rel (%p273) target = $region32
        $region31: #{tpu_custom_call.1} parent=11 // pred_region
          _
        $region32: #{tpu_custom_call.1} parent=11 // pred_fallthru
          _
      $region12: #{tpu_custom_call.1} parent=5 // pred_fallthru
        _
      %p276 = scmp.lt.s32.totalorder %s16, 3
      // Predicated region
      $region33: #{tpu_custom_call.1} parent=5 // pred_check
        %p277 = pneg %p276
      $region34: #{tpu_custom_call.1} parent=5 // pred_check_branch
        %279 = sbr.rel (%p277) target = $region36
      $region35: #{tpu_custom_call.1} parent=5 // pred_region
        // Predicated region
        $region37: #{tpu_custom_call.1} parent=35 // pred_check
          %p280 = pneg %p36
        $region38: #{tpu_custom_call.1} parent=35 // pred_check_branch
          %282 = sbr.rel (%p280) target = $region40
        $region39: #{tpu_custom_call.1} parent=35 // pred_region
          %s283 = smul.u32 16, %s16
          %p284 = scmp.lt.s32.totalorder %s283, 47
          %s285 = scalar_select %p284, %s283, 47
          %s286 = smul.addr %s285, 8
          %s287 = scalar_lea.vmem %s0, %s286
          %s288 = smul.u32 16, %s16
        $region40: #{tpu_custom_call.1} parent=35 // pred_fallthru
          _
        // Predicated region
        $region41: #{tpu_custom_call.1} parent=35 // pred_check
          %p289 = pneg %p62
        $region42: #{tpu_custom_call.1} parent=35 // pred_check_branch
          %291 = sbr.rel (%p289) target = $region44
        $region43: #{tpu_custom_call.1} parent=35 // pred_region
          %s292 = smul.u32 16, %s16
          %p293 = scmp.lt.s32.totalorder %s292, 47
          %s294 = scalar_select %p293, %s292, 47
          %s295 = smul.addr %s294, 8
          %s296 = scalar_lea.vmem %s1, %s295
          %s297 = smul.u32 16, %s16
        $region44: #{tpu_custom_call.1} parent=35 // pred_fallthru
          _
        // Predicated region
        $region45: #{tpu_custom_call.1} parent=35 // pred_check
          %p298 = pneg %p88
        $region46: #{tpu_custom_call.1} parent=35 // pred_check_branch
          %300 = sbr.rel (%p298) target = $region48
        $region47: #{tpu_custom_call.1} parent=35 // pred_region
          %p301 = scmp.lt.s32.totalorder %s16, 2
          %s302 = scalar_select %p301, %s16, 2
          %s303 = scalar_lea.vmem %s2, %s302
        $region48: #{tpu_custom_call.1} parent=35 // pred_fallthru
          _
        // Predicated region
        $region49: #{tpu_custom_call.1} parent=35 // pred_check
          %p304 = pneg %p135
        $region50: #{tpu_custom_call.1} parent=35 // pred_check_branch
          %306 = sbr.rel (%p304) target = $region52
        $region51: #{tpu_custom_call.1} parent=35 // pred_region
          %s307 = smul.u32 16, %s16
          %p308 = scmp.lt.s32.totalorder %s307, 47
          %s309 = scalar_select %p308, %s307, 47
          %s310 = smul.addr %s309, 8
          %s311 = scalar_lea.vmem %s4, %s310
          %s312 = smul.u32 16, %s16
        $region52: #{tpu_custom_call.1} parent=35 // pred_fallthru
          _
      $region36: #{tpu_custom_call.1} parent=5 // pred_fallthru
        _
      %p313 = scmp.le.s32.totalorder 1, %s16
      %p314 = scmp.lt.s32.totalorder %s16, 4
      %p315 = pnand %p313, %p314
      %p316 = pneg %p315
      // Predicated region
      $region53: #{tpu_custom_call.1} parent=5 // pred_check
        _
      $region54: #{tpu_custom_call.1} parent=5 // pred_check_branch
        %318 = sbr.rel (%p315) target = $region56
      $region55: #{tpu_custom_call.1} parent=5 // pred_region
        %s319 = ssub.s32 %s16, 1
        %s320 = smul.u32 16, %s21
        %p321 = scmp.lt.s32.totalorder %s320, 47
        %s322 = scalar_select %p321, %s320, 47
        %s323 = smul.addr %s322, 8
        %s324 = scalar_lea.vmem %s0, %s323
        %p325 = pneg %p42
        %p326 = pneg %p39
        %s327 = smul.u32 16, %s21
        %p328 = scmp.lt.s32.totalorder %s327, 47
        %s329 = scalar_select %p328, %s327, 47
        %s330 = smul.addr %s329, 8
        %s331 = scalar_lea.vmem %s1, %s330
        %p332 = pneg %p68
        %p333 = pneg %p65
        %p334 = scmp.lt.s32.totalorder %s21, 2
        %s335 = scalar_select %p334, %s21, 2
        %s336 = scalar_lea.vmem %s2, %s335
        %p337 = pneg %p94
        %p338 = pneg %p91
        %p339 = pneg %p115
        %p340 = pneg %p112
        %s341 = smul.u32 16, %s21
        %p342 = scmp.lt.s32.totalorder %s341, 47
        %s343 = scalar_select %p342, %s341, 47
        %s344 = smul.addr %s343, 8
        %s345 = scalar_lea.vmem %s4, %s344
        %p346 = pneg %p141
        %p347 = pneg %p138
        %p348 = pneg %p162
        %p349 = pneg %p159
        %p350 = pneg %p183
        %p351 = pneg %p180
        %p352 = pneg %p204
        %p353 = pneg %p201
        %p354 = pneg %p225
        %p355 = pneg %p222
        %p356 = pneg %p246
        %p357 = pneg %p243
        %s358 = smul.u32 16, %s21
        %p359 = scmp.lt.s32.totalorder %s358, 47
        %s360 = scalar_select %p359, %s358, 47
        %s361 = smul.addr %s360, 8
        %s362 = scalar_lea.vmem %s0, %s361
        %s363 = smul.u32 16, %s21
        %s364 = smul.u32 16, %s21
        %p365 = scmp.lt.s32.totalorder %s364, 47
        %s366 = scalar_select %p365, %s364, 47
        %s367 = smul.addr %s366, 8
        %s368 = scalar_lea.vmem %s1, %s367
        %s369 = smul.u32 16, %s21
        %p370 = scmp.lt.s32.totalorder %s21, 2
        %s371 = scalar_select %p370, %s21, 2
        %s372 = scalar_lea.vmem %s2, %s371
        %s373 = smul.u32 16, %s21
        %p374 = scmp.lt.s32.totalorder %s373, 47
        %s375 = scalar_select %p374, %s373, 47
        %s376 = smul.addr %s375, 8
        %s377 = scalar_lea.vmem %s4, %s376
        %s378 = smul.u32 16, %s21
        %p379 = scmp.eq.s32.totalorder %s21, 0
        // Predicated region
        $region57: #{tpu_custom_call.1} parent=55 // pred_check
          %p380 = pneg %p379
        $region58: #{tpu_custom_call.1} parent=55 // pred_check_branch
          %382 = sbr.rel (%p380) target = $region60
        $region59: #{tpu_custom_call.1} parent=55 // pred_region
          %vm383 = vcmask 31744
          %384 = vst.msk [vmem:[#allocation2] sm:$0xff] %vm383, -1e+30
          %385 = vst.msk [vmem:[#allocation2 + $0x8] sm:$0xff] %vm383, -1e+30
          %vm386 = vcmask 261120
          %387 = vst.msk [vmem:[#allocation3] sm:$0xff] %vm386, 0.0
          %388 = vst.msk [vmem:[#allocation3 + $0x8] sm:$0xff] %vm386, 0.0
          %389 = vst.msk [vmem:[#allocation4] sm:$0xff] %vm383, 0.0
          %390 = vst.msk [vmem:[#allocation4 + $0x8] sm:$0xff] %vm383, 0.0
        $region60: #{tpu_custom_call.1} parent=55 // pred_fallthru
          _
        %v391 = vld [vmem:[%s362] sm:$0xff]
        %v392 = vld [vmem:[%s362 + $0x8] sm:$0xff]
        %v393 = vld [vmem:[%s362 + $0x10] sm:$0xff]
        %v394 = vld [vmem:[%s362 + $0x18] sm:$0xff]
        %v395 = vld [vmem:[%s362 + $0x20] sm:$0xff]
        %v396 = vld [vmem:[%s362 + $0x28] sm:$0xff]
        %v397 = vld [vmem:[%s362 + $0x30] sm:$0xff]
        %v398 = vld [vmem:[%s362 + $0x38] sm:$0xff]
        %v399 = vld [vmem:[%s362 + $0x40] sm:$0xff]
        %v400 = vld [vmem:[%s362 + $0x48] sm:$0xff]
        %v401 = vld [vmem:[%s362 + $0x50] sm:$0xff]
        %v402 = vld [vmem:[%s362 + $0x58] sm:$0xff]
        %v403 = vld [vmem:[%s362 + $0x60] sm:$0xff]
        %v404 = vld [vmem:[%s362 + $0x68] sm:$0xff]
        %v405 = vld [vmem:[%s362 + $0x70] sm:$0xff]
        %v406 = vld [vmem:[%s362 + $0x78] sm:$0xff]
        %v407 = vld [vmem:[%s368] sm:$0xff]
        %v408 = vld [vmem:[%s368 + $0x8] sm:$0xff]
        %v409 = vld [vmem:[%s368 + $0x10] sm:$0xff]
        %v410 = vld [vmem:[%s368 + $0x18] sm:$0xff]
        %v411 = vld [vmem:[%s368 + $0x20] sm:$0xff]
        %v412 = vld [vmem:[%s368 + $0x28] sm:$0xff]
        %v413 = vld [vmem:[%s368 + $0x30] sm:$0xff]
        %v414 = vld [vmem:[%s368 + $0x38] sm:$0xff]
        %v415 = vld [vmem:[%s368 + $0x40] sm:$0xff]
        %v416 = vld [vmem:[%s368 + $0x48] sm:$0xff]
        %v417 = vld [vmem:[%s368 + $0x50] sm:$0xff]
        %v418 = vld [vmem:[%s368 + $0x58] sm:$0xff]
        %v419 = vld [vmem:[%s368 + $0x60] sm:$0xff]
        %v420 = vld [vmem:[%s368 + $0x68] sm:$0xff]
        %v421 = vld [vmem:[%s368 + $0x70] sm:$0xff]
        %v422 = vld [vmem:[%s368 + $0x78] sm:$0xff]
        %v423 = vld [vmem:[%s372] sm:$0x1]
        %v424 = vlaneseq
        %v425 = vand.u32 %v424, 127
        %426 = vset.pattern.permute.xlu0 0
        %427 = vperm.xlu0 %426, %v391
        %v428 = vpop.permute.xlu0 %427
        %429 = vset.pattern.permute.xlu0 0
        %430 = vperm.xlu0 %429, %v392
        %v431 = vpop.permute.xlu0 %430
        %432 = vset.pattern.permute.xlu0 0
        %433 = vperm.xlu0 %432, %v393
        %v434 = vpop.permute.xlu0 %433
        %435 = vset.pattern.permute.xlu0 0
        %436 = vperm.xlu0 %435, %v394
        %v437 = vpop.permute.xlu0 %436
        %438 = vset.pattern.permute.xlu0 0
        %439 = vperm.xlu0 %438, %v395
        %v440 = vpop.permute.xlu0 %439
        %441 = vset.pattern.permute.xlu0 0
        %442 = vperm.xlu0 %441, %v396
        %v443 = vpop.permute.xlu0 %442
        %444 = vset.pattern.permute.xlu0 0
        %445 = vperm.xlu0 %444, %v397
        %v446 = vpop.permute.xlu0 %445
        %447 = vset.pattern.permute.xlu0 0
        %448 = vperm.xlu0 %447, %v398
        %v449 = vpop.permute.xlu0 %448
        %450 = vset.pattern.permute.xlu0 0
        %451 = vperm.xlu0 %450, %v399
        %v452 = vpop.permute.xlu0 %451
        %453 = vset.pattern.permute.xlu0 0
        %454 = vperm.xlu0 %453, %v400
        %v455 = vpop.permute.xlu0 %454
        %456 = vset.pattern.permute.xlu0 0
        %457 = vperm.xlu0 %456, %v401
        %v458 = vpop.permute.xlu0 %457
        %459 = vset.pattern.permute.xlu0 0
        %460 = vperm.xlu0 %459, %v402
        %v461 = vpop.permute.xlu0 %460
        %462 = vset.pattern.permute.xlu0 0
        %463 = vperm.xlu0 %462, %v403
        %v464 = vpop.permute.xlu0 %463
        %465 = vset.pattern.permute.xlu0 0
        %466 = vperm.xlu0 %465, %v404
        %v467 = vpop.permute.xlu0 %466
        %468 = vset.pattern.permute.xlu0 0
        %469 = vperm.xlu0 %468, %v405
        %v470 = vpop.permute.xlu0 %469
        %471 = vset.pattern.permute.xlu0 0
        %472 = vperm.xlu0 %471, %v406
        %v473 = vpop.permute.xlu0 %472
        %vm474 = vcmp.eq.s32.totalorder %v425, %v428
        %vm475 = vcmp.eq.s32.totalorder %v425, %v431
        %vm476 = vcmp.eq.s32.totalorder %v425, %v434
        %vm477 = vcmp.eq.s32.totalorder %v425, %v437
        %vm478 = vcmp.eq.s32.totalorder %v425, %v440
        %vm479 = vcmp.eq.s32.totalorder %v425, %v443
        %vm480 = vcmp.eq.s32.totalorder %v425, %v446
        %vm481 = vcmp.eq.s32.totalorder %v425, %v449
        %vm482 = vcmp.eq.s32.totalorder %v425, %v452
        %vm483 = vcmp.eq.s32.totalorder %v425, %v455
        %vm484 = vcmp.eq.s32.totalorder %v425, %v458
        %vm485 = vcmp.eq.s32.totalorder %v425, %v461
        %vm486 = vcmp.eq.s32.totalorder %v425, %v464
        %vm487 = vcmp.eq.s32.totalorder %v425, %v467
        %vm488 = vcmp.eq.s32.totalorder %v425, %v470
        %vm489 = vcmp.eq.s32.totalorder %v425, %v473
        %v490 = vsel %vm474, 1, 0
        %v491 = vsel %vm475, 1, 0
        %v492 = vsel %vm476, 1, 0
        %v493 = vsel %vm477, 1, 0
        %v494 = vsel %vm478, 1, 0
        %v495 = vsel %vm479, 1, 0
        %v496 = vsel %vm480, 1, 0
        %v497 = vsel %vm481, 1, 0
        %v498 = vsel %vm482, 1, 0
        %v499 = vsel %vm483, 1, 0
        %v500 = vsel %vm484, 1, 0
        %v501 = vsel %vm485, 1, 0
        %v502 = vsel %vm486, 1, 0
        %v503 = vsel %vm487, 1, 0
        %v504 = vsel %vm488, 1, 0
        %v505 = vsel %vm489, 1, 0
        %v506 = vcvt.s32.f32 %v490
        %v507 = vcvt.s32.f32 %v491
        %v508 = vcvt.s32.f32 %v492
        %v509 = vcvt.s32.f32 %v493
        %v510 = vcvt.s32.f32 %v494
        %v511 = vcvt.s32.f32 %v495
        %v512 = vcvt.s32.f32 %v496
        %v513 = vcvt.s32.f32 %v497
        %v514 = vcvt.s32.f32 %v498
        %v515 = vcvt.s32.f32 %v499
        %v516 = vcvt.s32.f32 %v500
        %v517 = vcvt.s32.f32 %v501
        %v518 = vcvt.s32.f32 %v502
        %v519 = vcvt.s32.f32 %v503
        %v520 = vcvt.s32.f32 %v504
        %v521 = vcvt.s32.f32 %v505
        %522 = vset.pattern.permute.xlu0 0
        %523 = vperm.xlu0 %522, %v407
        %v524 = vpop.permute.xlu0 %523
        %525 = vset.pattern.permute.xlu0 0
        %526 = vperm.xlu0 %525, %v408
        %v527 = vpop.permute.xlu0 %526
        %528 = vset.pattern.permute.xlu0 0
        %529 = vperm.xlu0 %528, %v409
        %v530 = vpop.permute.xlu0 %529
        %531 = vset.pattern.permute.xlu0 0
        %532 = vperm.xlu0 %531, %v410
        %v533 = vpop.permute.xlu0 %532
        %534 = vset.pattern.permute.xlu0 0
        %535 = vperm.xlu0 %534, %v411
        %v536 = vpop.permute.xlu0 %535
        %537 = vset.pattern.permute.xlu0 0
        %538 = vperm.xlu0 %537, %v412
        %v539 = vpop.permute.xlu0 %538
        %540 = vset.pattern.permute.xlu0 0
        %541 = vperm.xlu0 %540, %v413
        %v542 = vpop.permute.xlu0 %541
        %543 = vset.pattern.permute.xlu0 0
        %544 = vperm.xlu0 %543, %v414
        %v545 = vpop.permute.xlu0 %544
        %546 = vset.pattern.permute.xlu0 0
        %547 = vperm.xlu0 %546, %v415
        %v548 = vpop.permute.xlu0 %547
        %549 = vset.pattern.permute.xlu0 0
        %550 = vperm.xlu0 %549, %v416
        %v551 = vpop.permute.xlu0 %550
        %552 = vset.pattern.permute.xlu0 0
        %553 = vperm.xlu0 %552, %v417
        %v554 = vpop.permute.xlu0 %553
        %555 = vset.pattern.permute.xlu0 0
        %556 = vperm.xlu0 %555, %v418
        %v557 = vpop.permute.xlu0 %556
        %558 = vset.pattern.permute.xlu0 0
        %559 = vperm.xlu0 %558, %v419
        %v560 = vpop.permute.xlu0 %559
        %561 = vset.pattern.permute.xlu0 0
        %562 = vperm.xlu0 %561, %v420
        %v563 = vpop.permute.xlu0 %562
        %564 = vset.pattern.permute.xlu0 0
        %565 = vperm.xlu0 %564, %v421
        %v566 = vpop.permute.xlu0 %565
        %567 = vset.pattern.permute.xlu0 0
        %568 = vperm.xlu0 %567, %v422
        %v569 = vpop.permute.xlu0 %568
        %vm570 = vcmp.eq.s32.totalorder %v425, %v524
        %vm571 = vcmp.eq.s32.totalorder %v425, %v527
        %vm572 = vcmp.eq.s32.totalorder %v425, %v530
        %vm573 = vcmp.eq.s32.totalorder %v425, %v533
        %vm574 = vcmp.eq.s32.totalorder %v425, %v536
        %vm575 = vcmp.eq.s32.totalorder %v425, %v539
        %vm576 = vcmp.eq.s32.totalorder %v425, %v542
        %vm577 = vcmp.eq.s32.totalorder %v425, %v545
        %vm578 = vcmp.eq.s32.totalorder %v425, %v548
        %vm579 = vcmp.eq.s32.totalorder %v425, %v551
        %vm580 = vcmp.eq.s32.totalorder %v425, %v554
        %vm581 = vcmp.eq.s32.totalorder %v425, %v557
        %vm582 = vcmp.eq.s32.totalorder %v425, %v560
        %vm583 = vcmp.eq.s32.totalorder %v425, %v563
        %vm584 = vcmp.eq.s32.totalorder %v425, %v566
        %vm585 = vcmp.eq.s32.totalorder %v425, %v569
        %v586 = vsel %vm570, 1, 0
        %v587 = vsel %vm571, 1, 0
        %v588 = vsel %vm572, 1, 0
        %v589 = vsel %vm573, 1, 0
        %v590 = vsel %vm574, 1, 0
        %v591 = vsel %vm575, 1, 0
        %v592 = vsel %vm576, 1, 0
        %v593 = vsel %vm577, 1, 0
        %v594 = vsel %vm578, 1, 0
        %v595 = vsel %vm579, 1, 0
        %v596 = vsel %vm580, 1, 0
        %v597 = vsel %vm581, 1, 0
        %v598 = vsel %vm582, 1, 0
        %v599 = vsel %vm583, 1, 0
        %v600 = vsel %vm584, 1, 0
        %v601 = vsel %vm585, 1, 0
        %v602 = vcvt.s32.f32 %v586
        %v603 = vcvt.s32.f32 %v587
        %v604 = vcvt.s32.f32 %v588
        %v605 = vcvt.s32.f32 %v589
        %v606 = vcvt.s32.f32 %v590
        %v607 = vcvt.s32.f32 %v591
        %v608 = vcvt.s32.f32 %v592
        %v609 = vcvt.s32.f32 %v593
        %v610 = vcvt.s32.f32 %v594
        %v611 = vcvt.s32.f32 %v595
        %v612 = vcvt.s32.f32 %v596
        %v613 = vcvt.s32.f32 %v597
        %v614 = vcvt.s32.f32 %v598
        %v615 = vcvt.s32.f32 %v599
        %v616 = vcvt.s32.f32 %v600
        %v617 = vcvt.s32.f32 %v601
        %v618 = vlaneseq
        %v619 = vshrl.u32 %v618, 7
        %v620 = vadd.s32 %v619, 8
        %v621 = vlaneseq
        %v622 = vshrl.u32 %v621, 7
        %v623 = vsub.s32 0, %v622
        %v624 = vrot.slane %v423, %v623
        %vm625 = vcmp.eq.s32.totalorder %v619, %v624
        %vm626 = vcmp.eq.s32.totalorder %v620, %v624
        %v627 = vsel %vm625, 1, 0
        %v628 = vsel %vm626, 1, 0
        %v629 = vcvt.s32.f32 %v627
        %v630 = vcvt.s32.f32 %v628
        %v631 = vld [vmem:[%s3] sm:$0xff]
        %v632 = vld [vmem:[%s3 + $0x8] sm:$0xff]
        %vm633 = vcmask 130048
        %v635 = vsel %vm633, %v506, 0
        %v638 = vsel %vm633, %v507, 0
        %v641 = vsel %vm633, %v508, 0
        %v644 = vsel %vm633, %v509, 0
        %v647 = vsel %vm633, %v510, 0
        %v650 = vsel %vm633, %v511, 0
        %v653 = vsel %vm633, %v512, 0
        %v656 = vsel %vm633, %v513, 0
        %v659 = vsel %vm633, %v514, 0
        %v662 = vsel %vm633, %v515, 0
        %v665 = vsel %vm633, %v516, 0
        %v668 = vsel %vm633, %v517, 0
        %v671 = vsel %vm633, %v518, 0
        %v674 = vsel %vm633, %v519, 0
        %v677 = vsel %vm633, %v520, 0
        %v680 = vsel %vm633, %v521, 0
        %682 = vmatprep.subr.mxu0 0.0
        %683 = vmatpush1.msra.mxu0 %v631
        %684 = vmatprep.subr.mxu0 0.0
        %685 = vmatpush1.msra.mxu0 %v632
        %686 = vmatprep.subr.mxu0 0.0
        %687 = vmatpush1.msra.mxu0 0.0
        %688 = vmatprep.subr.mxu0 0.0
        %689 = vmatpush1.msra.mxu0 0.0
        %690 = vmatprep.subr.mxu0 0.0
        %691 = vmatpush1.msra.mxu0 0.0
        %692 = vmatprep.subr.mxu0 0.0
        %693 = vmatpush1.msra.mxu0 0.0
        %694 = vmatprep.subr.mxu0 0.0
        %695 = vmatpush1.msra.mxu0 0.0
        %696 = vmatprep.subr.mxu0 0.0
        %697 = vmatpush1.msra.mxu0 0.0
        %698 = vmatprep.subr.mxu0 0.0
        %699 = vmatpush1.msra.mxu0 0.0
        %700 = vmatprep.subr.mxu0 0.0
        %701 = vmatpush1.msra.mxu0 0.0
        %702 = vmatprep.subr.mxu0 0.0
        %703 = vmatpush1.msra.mxu0 0.0
        %704 = vmatprep.subr.mxu0 0.0
        %705 = vmatpush1.msra.mxu0 0.0
        %706 = vmatprep.subr.mxu0 0.0
        %707 = vmatpush1.msra.mxu0 0.0
        %708 = vmatprep.subr.mxu0 0.0
        %709 = vmatpush1.msra.mxu0 0.0
        %710 = vmatprep.subr.mxu0 0.0
        %711 = vmatpush1.msra.mxu0 0.0
        %712 = vmatprep.subr.mxu0 0.0
        %713 = vmatpush1.msra.mxu0 0.0
        %714 = vmatprep.subr.mxu0 0.0
        %715 = vmatpush1.msra.mxu0 0.0
        %716 = vmatprep.subr.mxu0 0.0
        %717 = vmatpush1.msra.mxu0 0.0
        %718 = vmatprep.subr.mxu0 0.0
        %719 = vmatpush1.msra.mxu0 0.0
        %720 = vmatprep.subr.mxu0 0.0
        %721 = vmatpush1.msra.mxu0 0.0
        %722 = vmatprep.subr.mxu0 0.0
        %723 = vmatpush1.msra.mxu0 0.0
        %724 = vmatprep.subr.mxu0 0.0
        %725 = vmatpush1.msra.mxu0 0.0
        %726 = vmatprep.subr.mxu0 0.0
        %727 = vmatpush1.msra.mxu0 0.0
        %728 = vmatprep.subr.mxu0 0.0
        %729 = vmatpush1.msra.mxu0 0.0
        %730 = vmatprep.subr.mxu0 0.0
        %731 = vmatpush1.msra.mxu0 0.0
        %732 = vmatprep.subr.mxu0 0.0
        %733 = vmatpush1.msra.mxu0 0.0
        %734 = vmatprep.subr.mxu0 0.0
        %735 = vmatpush1.msra.mxu0 0.0
        %736 = vmatprep.subr.mxu0 0.0
        %737 = vmatpush1.msra.mxu0 0.0
        %738 = vmatprep.subr.mxu0 0.0
        %739 = vmatpush1.msra.mxu0 0.0
        %740 = vmatprep.subr.mxu0 0.0
        %741 = vmatpush1.msra.mxu0 0.0
        %742 = vmatprep.subr.mxu0 0.0
        %743 = vmatpush1.msra.mxu0 0.0
        %744 = vmatprep.subr.mxu0 0.0
        %745 = vmatpush1.msra.mxu0 0.0
        %746 = vmatprep.mubr.f32.mxu0 0.0
        %747 = vmatmul.mubr.f32.gmra.mrb[0].mxu0 %v635
        %v748 = vpop.f32.mrb[0].mxu0
        %v749 = vadd.f32 0.0, %v748
        %v750 = vpop.f32.mrb[0].mxu0
        %751 = vmatprep.mubr.f32.mxu0 0.0
        %752 = vmatmul.mubr.f32.gmra.mrb[0].mxu0 %v638
        %v753 = vpop.f32.mrb[0].mxu0
        %v754 = vadd.f32 0.0, %v753
        %v755 = vpop.f32.mrb[0].mxu0
        %756 = vmatprep.mubr.f32.mxu0 0.0
        %757 = vmatmul.mubr.f32.gmra.mrb[0].mxu0 %v641
        %v758 = vpop.f32.mrb[0].mxu0
        %v759 = vadd.f32 0.0, %v758
        %v760 = vpop.f32.mrb[0].mxu0
        %761 = vmatprep.mubr.f32.mxu0 0.0
        %762 = vmatmul.mubr.f32.gmra.mrb[0].mxu0 %v644
        %v763 = vpop.f32.mrb[0].mxu0
        %v764 = vadd.f32 0.0, %v763
        %v765 = vpop.f32.mrb[0].mxu0
        %766 = vmatprep.mubr.f32.mxu0 0.0
        %767 = vmatmul.mubr.f32.gmra.mrb[0].mxu0 %v647
        %v768 = vpop.f32.mrb[0].mxu0
        %v769 = vadd.f32 0.0, %v768
        %v770 = vpop.f32.mrb[0].mxu0
        %771 = vmatprep.mubr.f32.mxu0 0.0
        %772 = vmatmul.mubr.f32.gmra.mrb[0].mxu0 %v650
        %v773 = vpop.f32.mrb[0].mxu0
        %v774 = vadd.f32 0.0, %v773
        %v775 = vpop.f32.mrb[0].mxu0
        %776 = vmatprep.mubr.f32.mxu0 0.0
        %777 = vmatmul.mubr.f32.gmra.mrb[0].mxu0 %v653
        %v778 = vpop.f32.mrb[0].mxu0
        %v779 = vadd.f32 0.0, %v778
        %v780 = vpop.f32.mrb[0].mxu0
        %781 = vmatprep.mubr.f32.mxu0 0.0
        %782 = vmatmul.mubr.f32.gmra.mrb[0].mxu0 %v656
        %v783 = vpop.f32.mrb[0].mxu0
        %v784 = vadd.f32 0.0, %v783
        %v785 = vpop.f32.mrb[0].mxu0
        %786 = vmatprep.mubr.f32.mxu0 0.0
        %787 = vmatmul.mubr.f32.gmra.mrb[0].mxu0 %v659
        %v788 = vpop.f32.mrb[0].mxu0
        %v789 = vadd.f32 0.0, %v788
        %v790 = vpop.f32.mrb[0].mxu0
        %791 = vmatprep.mubr.f32.mxu0 0.0
        %792 = vmatmul.mubr.f32.gmra.mrb[0].mxu0 %v662
        %v793 = vpop.f32.mrb[0].mxu0
        %v794 = vadd.f32 0.0, %v793
        %v795 = vpop.f32.mrb[0].mxu0
        %796 = vmatprep.mubr.f32.mxu0 0.0
        %797 = vmatmul.mubr.f32.gmra.mrb[0].mxu0 %v665
        %v798 = vpop.f32.mrb[0].mxu0
        %v799 = vadd.f32 0.0, %v798
        %v800 = vpop.f32.mrb[0].mxu0
        %801 = vmatprep.mubr.f32.mxu0 0.0
        %802 = vmatmul.mubr.f32.gmra.mrb[0].mxu0 %v668
        %v803 = vpop.f32.mrb[0].mxu0
        %v804 = vadd.f32 0.0, %v803
        %v805 = vpop.f32.mrb[0].mxu0
        %806 = vmatprep.mubr.f32.mxu0 0.0
        %807 = vmatmul.mubr.f32.gmra.mrb[0].mxu0 %v671
        %v808 = vpop.f32.mrb[0].mxu0
        %v809 = vadd.f32 0.0, %v808
        %v810 = vpop.f32.mrb[0].mxu0
        %811 = vmatprep.mubr.f32.mxu0 0.0
        %812 = vmatmul.mubr.f32.gmra.mrb[0].mxu0 %v674
        %v813 = vpop.f32.mrb[0].mxu0
        %v814 = vadd.f32 0.0, %v813
        %v815 = vpop.f32.mrb[0].mxu0
        %816 = vmatprep.mubr.f32.mxu0 0.0
        %817 = vmatmul.mubr.f32.gmra.mrb[0].mxu0 %v677
        %v818 = vpop.f32.mrb[0].mxu0
        %v819 = vadd.f32 0.0, %v818
        %v820 = vpop.f32.mrb[0].mxu0
        %821 = vmatprep.mubr.f32.mxu0 0.0
        %822 = vmatmul.mubr.f32.gmra.mrb[0].mxu0 %v680
        %v823 = vpop.f32.mrb[0].mxu0
        %v824 = vadd.f32 0.0, %v823
        %v825 = vpop.f32.mrb[0].mxu0
        %826 = vdwg.mxu0
        %v828 = vsel %vm633, %v602, 0
        %v831 = vsel %vm633, %v603, 0
        %v834 = vsel %vm633, %v604, 0
        %v837 = vsel %vm633, %v605, 0
        %v840 = vsel %vm633, %v606, 0
        %v843 = vsel %vm633, %v607, 0
        %v846 = vsel %vm633, %v608, 0
        %v849 = vsel %vm633, %v609, 0
        %v852 = vsel %vm633, %v610, 0
        %v855 = vsel %vm633, %v611, 0
        %v858 = vsel %vm633, %v612, 0
        %v861 = vsel %vm633, %v613, 0
        %v864 = vsel %vm633, %v614, 0
        %v867 = vsel %vm633, %v615, 0
        %v870 = vsel %vm633, %v616, 0
        %v873 = vsel %vm633, %v617, 0
        %875 = vmatprep.subr.mxu0 0.0
        %876 = vmatpush1.msra.mxu0 %v631
        %877 = vmatprep.subr.mxu0 0.0
        %878 = vmatpush1.msra.mxu0 %v632
        %879 = vmatprep.subr.mxu0 0.0
        %880 = vmatpush1.msra.mxu0 0.0
        %881 = vmatprep.subr.mxu0 0.0
        %882 = vmatpush1.msra.mxu0 0.0
        %883 = vmatprep.subr.mxu0 0.0
        %884 = vmatpush1.msra.mxu0 0.0
        %885 = vmatprep.subr.mxu0 0.0
        %886 = vmatpush1.msra.mxu0 0.0
        %887 = vmatprep.subr.mxu0 0.0
        %888 = vmatpush1.msra.mxu0 0.0
        %889 = vmatprep.subr.mxu0 0.0
        %890 = vmatpush1.msra.mxu0 0.0
        %891 = vmatprep.subr.mxu0 0.0
        %892 = vmatpush1.msra.mxu0 0.0
        %893 = vmatprep.subr.mxu0 0.0
        %894 = vmatpush1.msra.mxu0 0.0
        %895 = vmatprep.subr.mxu0 0.0
        %896 = vmatpush1.msra.mxu0 0.0
        %897 = vmatprep.subr.mxu0 0.0
        %898 = vmatpush1.msra.mxu0 0.0
        %899 = vmatprep.subr.mxu0 0.0
        %900 = vmatpush1.msra.mxu0 0.0
        %901 = vmatprep.subr.mxu0 0.0
        %902 = vmatpush1.msra.mxu0 0.0
        %903 = vmatprep.subr.mxu0 0.0
        %904 = vmatpush1.msra.mxu0 0.0
        %905 = vmatprep.subr.mxu0 0.0
        %906 = vmatpush1.msra.mxu0 0.0
        %907 = vmatprep.subr.mxu0 0.0
        %908 = vmatpush1.msra.mxu0 0.0
        %909 = vmatprep.subr.mxu0 0.0
        %910 = vmatpush1.msra.mxu0 0.0
        %911 = vmatprep.subr.mxu0 0.0
        %912 = vmatpush1.msra.mxu0 0.0
        %913 = vmatprep.subr.mxu0 0.0
        %914 = vmatpush1.msra.mxu0 0.0
        %915 = vmatprep.subr.mxu0 0.0
        %916 = vmatpush1.msra.mxu0 0.0
        %917 = vmatprep.subr.mxu0 0.0
        %918 = vmatpush1.msra.mxu0 0.0
        %919 = vmatprep.subr.mxu0 0.0
        %920 = vmatpush1.msra.mxu0 0.0
        %921 = vmatprep.subr.mxu0 0.0
        %922 = vmatpush1.msra.mxu0 0.0
        %923 = vmatprep.subr.mxu0 0.0
        %924 = vmatpush1.msra.mxu0 0.0
        %925 = vmatprep.subr.mxu0 0.0
        %926 = vmatpush1.msra.mxu0 0.0
        %927 = vmatprep.subr.mxu0 0.0
        %928 = vmatpush1.msra.mxu0 0.0
        %929 = vmatprep.subr.mxu0 0.0
        %930 = vmatpush1.msra.mxu0 0.0
        %931 = vmatprep.subr.mxu0 0.0
        %932 = vmatpush1.msra.mxu0 0.0
        %933 = vmatprep.subr.mxu0 0.0
        %934 = vmatpush1.msra.mxu0 0.0
        %935 = vmatprep.subr.mxu0 0.0
        %936 = vmatpush1.msra.mxu0 0.0
        %937 = vmatprep.subr.mxu0 0.0
        %938 = vmatpush1.msra.mxu0 0.0
        %939 = vmatprep.mubr.f32.mxu0 0.0
        %940 = vmatmul.mubr.f32.gmra.mrb[0].mxu0 %v828
        %v941 = vpop.f32.mrb[0].mxu0
        %v942 = vadd.f32 0.0, %v941
        %v943 = vpop.f32.mrb[0].mxu0
        %944 = vmatprep.mubr.f32.mxu0 0.0
        %945 = vmatmul.mubr.f32.gmra.mrb[0].mxu0 %v831
        %v946 = vpop.f32.mrb[0].mxu0
        %v947 = vadd.f32 0.0, %v946
        %v948 = vpop.f32.mrb[0].mxu0
        %949 = vmatprep.mubr.f32.mxu0 0.0
        %950 = vmatmul.mubr.f32.gmra.mrb[0].mxu0 %v834
        %v951 = vpop.f32.mrb[0].mxu0
        %v952 = vadd.f32 0.0, %v951
        %v953 = vpop.f32.mrb[0].mxu0
        %954 = vmatprep.mubr.f32.mxu0 0.0
        %955 = vmatmul.mubr.f32.gmra.mrb[0].mxu0 %v837
        %v956 = vpop.f32.mrb[0].mxu0
        %v957 = vadd.f32 0.0, %v956
        %v958 = vpop.f32.mrb[0].mxu0
        %959 = vmatprep.mubr.f32.mxu0 0.0
        %960 = vmatmul.mubr.f32.gmra.mrb[0].mxu0 %v840
        %v961 = vpop.f32.mrb[0].mxu0
        %v962 = vadd.f32 0.0, %v961
        %v963 = vpop.f32.mrb[0].mxu0
        %964 = vmatprep.mubr.f32.mxu0 0.0
        %965 = vmatmul.mubr.f32.gmra.mrb[0].mxu0 %v843
        %v966 = vpop.f32.mrb[0].mxu0
        %v967 = vadd.f32 0.0, %v966
        %v968 = vpop.f32.mrb[0].mxu0
        %969 = vmatprep.mubr.f32.mxu0 0.0
        %970 = vmatmul.mubr.f32.gmra.mrb[0].mxu0 %v846
        %v971 = vpop.f32.mrb[0].mxu0
        %v972 = vadd.f32 0.0, %v971
        %v973 = vpop.f32.mrb[0].mxu0
        %974 = vmatprep.mubr.f32.mxu0 0.0
        %975 = vmatmul.mubr.f32.gmra.mrb[0].mxu0 %v849
        %v976 = vpop.f32.mrb[0].mxu0
        %v977 = vadd.f32 0.0, %v976
        %v978 = vpop.f32.mrb[0].mxu0
        %979 = vmatprep.mubr.f32.mxu0 0.0
        %980 = vmatmul.mubr.f32.gmra.mrb[0].mxu0 %v852
        %v981 = vpop.f32.mrb[0].mxu0
        %v982 = vadd.f32 0.0, %v981
        %v983 = vpop.f32.mrb[0].mxu0
        %984 = vmatprep.mubr.f32.mxu0 0.0
        %985 = vmatmul.mubr.f32.gmra.mrb[0].mxu0 %v855
        %v986 = vpop.f32.mrb[0].mxu0
        %v987 = vadd.f32 0.0, %v986
        %v988 = vpop.f32.mrb[0].mxu0
        %989 = vmatprep.mubr.f32.mxu0 0.0
        %990 = vmatmul.mubr.f32.gmra.mrb[0].mxu0 %v858
        %v991 = vpop.f32.mrb[0].mxu0
        %v992 = vadd.f32 0.0, %v991
        %v993 = vpop.f32.mrb[0].mxu0
        %994 = vmatprep.mubr.f32.mxu0 0.0
        %995 = vmatmul.mubr.f32.gmra.mrb[0].mxu0 %v861
        %v996 = vpop.f32.mrb[0].mxu0
        %v997 = vadd.f32 0.0, %v996
        %v998 = vpop.f32.mrb[0].mxu0
        %999 = vmatprep.mubr.f32.mxu0 0.0
        %1000 = vmatmul.mubr.f32.gmra.mrb[0].mxu0 %v864
        %v1001 = vpop.f32.mrb[0].mxu0
        %v1002 = vadd.f32 0.0, %v1001
        %v1003 = vpop.f32.mrb[0].mxu0
        %1004 = vmatprep.mubr.f32.mxu0 0.0
        %1005 = vmatmul.mubr.f32.gmra.mrb[0].mxu0 %v867
        %v1006 = vpop.f32.mrb[0].mxu0
        %v1007 = vadd.f32 0.0, %v1006
        %v1008 = vpop.f32.mrb[0].mxu0
        %1009 = vmatprep.mubr.f32.mxu0 0.0
        %1010 = vmatmul.mubr.f32.gmra.mrb[0].mxu0 %v870
        %v1011 = vpop.f32.mrb[0].mxu0
        %v1012 = vadd.f32 0.0, %v1011
        %v1013 = vpop.f32.mrb[0].mxu0
        %1014 = vmatprep.mubr.f32.mxu0 0.0
        %1015 = vmatmul.mubr.f32.gmra.mrb[0].mxu0 %v873
        %v1016 = vpop.f32.mrb[0].mxu0
        %v1017 = vadd.f32 0.0, %v1016
        %v1018 = vpop.f32.mrb[0].mxu0
        %1019 = vdwg.mxu0
        %v1020 = vld [vmem:[%s377] sm:$0xff]
        %v1021 = vld [vmem:[%s377 + $0x8] sm:$0xff]
        %v1022 = vld [vmem:[%s377 + $0x10] sm:$0xff]
        %v1023 = vld [vmem:[%s377 + $0x18] sm:$0xff]
        %v1024 = vld [vmem:[%s377 + $0x20] sm:$0xff]
        %v1025 = vld [vmem:[%s377 + $0x28] sm:$0xff]
        %v1026 = vld [vmem:[%s377 + $0x30] sm:$0xff]
        %v1027 = vld [vmem:[%s377 + $0x38] sm:$0xff]
        %v1028 = vld [vmem:[%s377 + $0x40] sm:$0xff]
        %v1029 = vld [vmem:[%s377 + $0x48] sm:$0xff]
        %v1030 = vld [vmem:[%s377 + $0x50] sm:$0xff]
        %v1031 = vld [vmem:[%s377 + $0x58] sm:$0xff]
        %v1032 = vld [vmem:[%s377 + $0x60] sm:$0xff]
        %v1033 = vld [vmem:[%s377 + $0x68] sm:$0xff]
        %v1034 = vld [vmem:[%s377 + $0x70] sm:$0xff]
        %v1035 = vld [vmem:[%s377 + $0x78] sm:$0xff]
        %v1036 = vld [vmem:[%s5] sm:$0xff]
        %v1037 = vld [vmem:[%s5 + $0x8] sm:$0xff]
        %v1038 = vld [vmem:[%s5 + $0x10] sm:$0xff]
        %v1039 = vld [vmem:[%s5 + $0x18] sm:$0xff]
        %v1040 = vld [vmem:[%s5 + $0x20] sm:$0xff]
        %v1041 = vld [vmem:[%s5 + $0x28] sm:$0xff]
        %v1042 = vld [vmem:[%s5 + $0x30] sm:$0xff]
        %v1043 = vld [vmem:[%s5 + $0x38] sm:$0xff]
        %v1044 = vld [vmem:[%s5 + $0x40] sm:$0xff]
        %v1045 = vld [vmem:[%s5 + $0x48] sm:$0xff]
        %v1046 = vld [vmem:[%s5 + $0x50] sm:$0xff]
        %v1047 = vld [vmem:[%s5 + $0x58] sm:$0xff]
        %vm1048 = vcmask 261120
        %v1050 = vsel %vm1048, %v1020, 0
        %v1053 = vsel %vm1048, %v1021, 0
        %v1056 = vsel %vm1048, %v1022, 0
        %v1059 = vsel %vm1048, %v1023, 0
        %v1062 = vsel %vm1048, %v1024, 0
        %v1065 = vsel %vm1048, %v1025, 0
        %v1068 = vsel %vm1048, %v1026, 0
        %v1071 = vsel %vm1048, %v1027, 0
        %v1074 = vsel %vm1048, %v1028, 0
        %v1077 = vsel %vm1048, %v1029, 0
        %v1080 = vsel %vm1048, %v1030, 0
        %v1083 = vsel %vm1048, %v1031, 0
        %v1086 = vsel %vm1048, %v1032, 0
        %v1089 = vsel %vm1048, %v1033, 0
        %v1092 = vsel %vm1048, %v1034, 0
        %v1095 = vsel %vm1048, %v1035, 0
        %1097 = vmatprep.subr.mxu0 0.0
        %1098 = vmatpush1.msra.mxu0 %v1040
        %1099 = vmatprep.subr.mxu0 0.0
        %1100 = vmatpush1.msra.mxu0 %v1041
        %1101 = vmatprep.subr.mxu0 0.0
        %1102 = vmatpush1.msra.mxu0 %v1042
        %1103 = vmatprep.subr.mxu0 0.0
        %1104 = vmatpush1.msra.mxu0 %v1043
        %1105 = vmatprep.subr.mxu0 0.0
        %1106 = vmatpush1.msra.mxu0 0.0
        %1107 = vmatprep.subr.mxu0 0.0
        %1108 = vmatpush1.msra.mxu0 0.0
        %1109 = vmatprep.subr.mxu0 0.0
        %1110 = vmatpush1.msra.mxu0 0.0
        %1111 = vmatprep.subr.mxu0 0.0
        %1112 = vmatpush1.msra.mxu0 0.0
        %1113 = vmatprep.subr.mxu0 0.0
        %1114 = vmatpush1.msra.mxu0 0.0
        %1115 = vmatprep.subr.mxu0 0.0
        %1116 = vmatpush1.msra.mxu0 0.0
        %1117 = vmatprep.subr.mxu0 0.0
        %1118 = vmatpush1.msra.mxu0 0.0
        %1119 = vmatprep.subr.mxu0 0.0
        %1120 = vmatpush1.msra.mxu0 0.0
        %1121 = vmatprep.subr.mxu0 0.0
        %1122 = vmatpush1.msra.mxu0 0.0
        %1123 = vmatprep.subr.mxu0 0.0
        %1124 = vmatpush1.msra.mxu0 0.0
        %1125 = vmatprep.subr.mxu0 0.0
        %1126 = vmatpush1.msra.mxu0 0.0
        %1127 = vmatprep.subr.mxu0 0.0
        %1128 = vmatpush1.msra.mxu0 0.0
        %1129 = vmatprep.subr.mxu0 0.0
        %1130 = vmatpush1.msra.mxu0 0.0
        %1131 = vmatprep.subr.mxu0 0.0
        %1132 = vmatpush1.msra.mxu0 0.0
        %1133 = vmatprep.subr.mxu0 0.0
        %1134 = vmatpush1.msra.mxu0 0.0
        %1135 = vmatprep.subr.mxu0 0.0
        %1136 = vmatpush1.msra.mxu0 0.0
        %1137 = vmatprep.subr.mxu0 0.0
        %1138 = vmatpush1.msra.mxu0 0.0
        %1139 = vmatprep.subr.mxu0 0.0
        %1140 = vmatpush1.msra.mxu0 0.0
        %1141 = vmatprep.subr.mxu0 0.0
        %1142 = vmatpush1.msra.mxu0 0.0
        %1143 = vmatprep.subr.mxu0 0.0
        %1144 = vmatpush1.msra.mxu0 0.0
        %1145 = vmatprep.subr.mxu0 0.0
        %1146 = vmatpush1.msra.mxu0 0.0
        %1147 = vmatprep.subr.mxu0 0.0
        %1148 = vmatpush1.msra.mxu0 0.0
        %1149 = vmatprep.subr.mxu0 0.0
        %1150 = vmatpush1.msra.mxu0 0.0
        %1151 = vmatprep.subr.mxu0 0.0
        %1152 = vmatpush1.msra.mxu0 0.0
        %1153 = vmatprep.subr.mxu0 0.0
        %1154 = vmatpush1.msra.mxu0 0.0
        %1155 = vmatprep.subr.mxu0 0.0
        %1156 = vmatpush1.msra.mxu0 0.0
        %1157 = vmatprep.subr.mxu0 0.0
        %1158 = vmatpush1.msra.mxu0 0.0
        %1159 = vmatprep.subr.mxu0 0.0
        %1160 = vmatpush1.msra.mxu0 0.0
        %1161 = vmatprep.mubr.f32.mxu0 0.0
        %1162 = vmatmul.mubr.f32.gmra.mrb[0].mxu0 %v1050
        %v1163 = vpop.f32.mrb[0].mxu0
        %v1164 = vadd.f32 0.0, %v1163
        %v1165 = vpop.f32.mrb[0].mxu0
        %1166 = vmatprep.mubr.f32.mxu0 0.0
        %1167 = vmatmul.mubr.f32.gmra.mrb[0].mxu0 %v1053
        %v1168 = vpop.f32.mrb[0].mxu0
        %v1169 = vadd.f32 0.0, %v1168
        %v1170 = vpop.f32.mrb[0].mxu0
        %1171 = vmatprep.mubr.f32.mxu0 0.0
        %1172 = vmatmul.mubr.f32.gmra.mrb[0].mxu0 %v1056
        %v1173 = vpop.f32.mrb[0].mxu0
        %v1174 = vadd.f32 0.0, %v1173
        %v1175 = vpop.f32.mrb[0].mxu0
        %1176 = vmatprep.mubr.f32.mxu0 0.0
        %1177 = vmatmul.mubr.f32.gmra.mrb[0].mxu0 %v1059
        %v1178 = vpop.f32.mrb[0].mxu0
        %v1179 = vadd.f32 0.0, %v1178
        %v1180 = vpop.f32.mrb[0].mxu0
        %1181 = vmatprep.mubr.f32.mxu0 0.0
        %1182 = vmatmul.mubr.f32.gmra.mrb[0].mxu0 %v1062
        %v1183 = vpop.f32.mrb[0].mxu0
        %v1184 = vadd.f32 0.0, %v1183
        %v1185 = vpop.f32.mrb[0].mxu0
        %1186 = vmatprep.mubr.f32.mxu0 0.0
        %1187 = vmatmul.mubr.f32.gmra.mrb[0].mxu0 %v1065
        %v1188 = vpop.f32.mrb[0].mxu0
        %v1189 = vadd.f32 0.0, %v1188
        %v1190 = vpop.f32.mrb[0].mxu0
        %1191 = vmatprep.mubr.f32.mxu0 0.0
        %1192 = vmatmul.mubr.f32.gmra.mrb[0].mxu0 %v1068
        %v1193 = vpop.f32.mrb[0].mxu0
        %v1194 = vadd.f32 0.0, %v1193
        %v1195 = vpop.f32.mrb[0].mxu0
        %1196 = vmatprep.mubr.f32.mxu0 0.0
        %1197 = vmatmul.mubr.f32.gmra.mrb[0].mxu0 %v1071
        %v1198 = vpop.f32.mrb[0].mxu0
        %v1199 = vadd.f32 0.0, %v1198
        %v1200 = vpop.f32.mrb[0].mxu0
        %1201 = vmatprep.mubr.f32.mxu0 0.0
        %1202 = vmatmul.mubr.f32.gmra.mrb[0].mxu0 %v1074
        %v1203 = vpop.f32.mrb[0].mxu0
        %v1204 = vadd.f32 0.0, %v1203
        %v1205 = vpop.f32.mrb[0].mxu0
        %1206 = vmatprep.mubr.f32.mxu0 0.0
        %1207 = vmatmul.mubr.f32.gmra.mrb[0].mxu0 %v1077
        %v1208 = vpop.f32.mrb[0].mxu0
        %v1209 = vadd.f32 0.0, %v1208
        %v1210 = vpop.f32.mrb[0].mxu0
        %1211 = vmatprep.mubr.f32.mxu0 0.0
        %1212 = vmatmul.mubr.f32.gmra.mrb[0].mxu0 %v1080
        %v1213 = vpop.f32.mrb[0].mxu0
        %v1214 = vadd.f32 0.0, %v1213
        %v1215 = vpop.f32.mrb[0].mxu0
        %1216 = vmatprep.mubr.f32.mxu0 0.0
        %1217 = vmatmul.mubr.f32.gmra.mrb[0].mxu0 %v1083
        %v1218 = vpop.f32.mrb[0].mxu0
        %v1219 = vadd.f32 0.0, %v1218
        %v1220 = vpop.f32.mrb[0].mxu0
        %1221 = vmatprep.mubr.f32.mxu0 0.0
        %1222 = vmatmul.mubr.f32.gmra.mrb[0].mxu0 %v1086
        %v1223 = vpop.f32.mrb[0].mxu0
        %v1224 = vadd.f32 0.0, %v1223
        %v1225 = vpop.f32.mrb[0].mxu0
        %1226 = vmatprep.mubr.f32.mxu0 0.0
        %1227 = vmatmul.mubr.f32.gmra.mrb[0].mxu0 %v1089
        %v1228 = vpop.f32.mrb[0].mxu0
        %v1229 = vadd.f32 0.0, %v1228
        %v1230 = vpop.f32.mrb[0].mxu0
        %1231 = vmatprep.mubr.f32.mxu0 0.0
        %1232 = vmatmul.mubr.f32.gmra.mrb[0].mxu0 %v1092
        %v1233 = vpop.f32.mrb[0].mxu0
        %v1234 = vadd.f32 0.0, %v1233
        %v1235 = vpop.f32.mrb[0].mxu0
        %1236 = vmatprep.mubr.f32.mxu0 0.0
        %1237 = vmatmul.mubr.f32.gmra.mrb[0].mxu0 %v1095
        %v1238 = vpop.f32.mrb[0].mxu0
        %v1239 = vadd.f32 0.0, %v1238
        %v1240 = vpop.f32.mrb[0].mxu0
        %1241 = vdwg.mxu0
        %v1243 = vsel %vm1048, %v749, 0
        %v1246 = vsel %vm1048, %v754, 0
        %v1249 = vsel %vm1048, %v759, 0
        %v1252 = vsel %vm1048, %v764, 0
        %v1255 = vsel %vm1048, %v769, 0
        %v1258 = vsel %vm1048, %v774, 0
        %v1261 = vsel %vm1048, %v779, 0
        %v1264 = vsel %vm1048, %v784, 0
        %v1267 = vsel %vm1048, %v789, 0
        %v1270 = vsel %vm1048, %v794, 0
        %v1273 = vsel %vm1048, %v799, 0
        %v1276 = vsel %vm1048, %v804, 0
        %v1279 = vsel %vm1048, %v809, 0
        %v1282 = vsel %vm1048, %v814, 0
        %v1285 = vsel %vm1048, %v819, 0
        %v1288 = vsel %vm1048, %v824, 0
        %1290 = vmatprep.subr.mxu0 0.0
        %1291 = vmatpush1.msra.mxu0 %v1036
        %1292 = vmatprep.subr.mxu0 0.0
        %1293 = vmatpush1.msra.mxu0 %v1037
        %1294 = vmatprep.subr.mxu0 0.0
        %1295 = vmatpush1.msra.mxu0 %v1038
        %1296 = vmatprep.subr.mxu0 0.0
        %1297 = vmatpush1.msra.mxu0 %v1039
        %1298 = vmatprep.subr.mxu0 0.0
        %1299 = vmatpush1.msra.mxu0 0.0
        %1300 = vmatprep.subr.mxu0 0.0
        %1301 = vmatpush1.msra.mxu0 0.0
        %1302 = vmatprep.subr.mxu0 0.0
        %1303 = vmatpush1.msra.mxu0 0.0
        %1304 = vmatprep.subr.mxu0 0.0
        %1305 = vmatpush1.msra.mxu0 0.0
        %1306 = vmatprep.subr.mxu0 0.0
        %1307 = vmatpush1.msra.mxu0 0.0
        %1308 = vmatprep.subr.mxu0 0.0
        %1309 = vmatpush1.msra.mxu0 0.0
        %1310 = vmatprep.subr.mxu0 0.0
        %1311 = vmatpush1.msra.mxu0 0.0
        %1312 = vmatprep.subr.mxu0 0.0
        %1313 = vmatpush1.msra.mxu0 0.0
        %1314 = vmatprep.subr.mxu0 0.0
        %1315 = vmatpush1.msra.mxu0 0.0
        %1316 = vmatprep.subr.mxu0 0.0
        %1317 = vmatpush1.msra.mxu0 0.0
        %1318 = vmatprep.subr.mxu0 0.0
        %1319 = vmatpush1.msra.mxu0 0.0
        %1320 = vmatprep.subr.mxu0 0.0
        %1321 = vmatpush1.msra.mxu0 0.0
        %1322 = vmatprep.subr.mxu0 0.0
        %1323 = vmatpush1.msra.mxu0 0.0
        %1324 = vmatprep.subr.mxu0 0.0
        %1325 = vmatpush1.msra.mxu0 0.0
        %1326 = vmatprep.subr.mxu0 0.0
        %1327 = vmatpush1.msra.mxu0 0.0
        %1328 = vmatprep.subr.mxu0 0.0
        %1329 = vmatpush1.msra.mxu0 0.0
        %1330 = vmatprep.subr.mxu0 0.0
        %1331 = vmatpush1.msra.mxu0 0.0
        %1332 = vmatprep.subr.mxu0 0.0
        %1333 = vmatpush1.msra.mxu0 0.0
        %1334 = vmatprep.subr.mxu0 0.0
        %1335 = vmatpush1.msra.mxu0 0.0
        %1336 = vmatprep.subr.mxu0 0.0
        %1337 = vmatpush1.msra.mxu0 0.0
        %1338 = vmatprep.subr.mxu0 0.0
        %1339 = vmatpush1.msra.mxu0 0.0
        %1340 = vmatprep.subr.mxu0 0.0
        %1341 = vmatpush1.msra.mxu0 0.0
        %1342 = vmatprep.subr.mxu0 0.0
        %1343 = vmatpush1.msra.mxu0 0.0
        %1344 = vmatprep.subr.mxu0 0.0
        %1345 = vmatpush1.msra.mxu0 0.0
        %1346 = vmatprep.subr.mxu0 0.0
        %1347 = vmatpush1.msra.mxu0 0.0
        %1348 = vmatprep.subr.mxu0 0.0
        %1349 = vmatpush1.msra.mxu0 0.0
        %1350 = vmatprep.subr.mxu0 0.0
        %1351 = vmatpush1.msra.mxu0 0.0
        %1352 = vmatprep.subr.mxu0 0.0
        %1353 = vmatpush1.msra.mxu0 0.0
        %1354 = vmatprep.mubr.f32.mxu0 0.0
        %1355 = vmatmul.mubr.f32.gmra.mrb[0].mxu0 %v1243
        %v1356 = vpop.f32.mrb[0].mxu0
        %v1357 = vadd.f32 %v1164, %v1356
        %v1358 = vpop.f32.mrb[0].mxu0
        %1359 = vmatprep.mubr.f32.mxu0 0.0
        %1360 = vmatmul.mubr.f32.gmra.mrb[0].mxu0 %v1246
        %v1361 = vpop.f32.mrb[0].mxu0
        %v1362 = vadd.f32 %v1169, %v1361
        %v1363 = vpop.f32.mrb[0].mxu0
        %1364 = vmatprep.mubr.f32.mxu0 0.0
        %1365 = vmatmul.mubr.f32.gmra.mrb[0].mxu0 %v1249
        %v1366 = vpop.f32.mrb[0].mxu0
        %v1367 = vadd.f32 %v1174, %v1366
        %v1368 = vpop.f32.mrb[0].mxu0
        %1369 = vmatprep.mubr.f32.mxu0 0.0
        %1370 = vmatmul.mubr.f32.gmra.mrb[0].mxu0 %v1252
        %v1371 = vpop.f32.mrb[0].mxu0
        %v1372 = vadd.f32 %v1179, %v1371
        %v1373 = vpop.f32.mrb[0].mxu0
        %1374 = vmatprep.mubr.f32.mxu0 0.0
        %1375 = vmatmul.mubr.f32.gmra.mrb[0].mxu0 %v1255
        %v1376 = vpop.f32.mrb[0].mxu0
        %v1377 = vadd.f32 %v1184, %v1376
        %v1378 = vpop.f32.mrb[0].mxu0
        %1379 = vmatprep.mubr.f32.mxu0 0.0
        %1380 = vmatmul.mubr.f32.gmra.mrb[0].mxu0 %v1258
        %v1381 = vpop.f32.mrb[0].mxu0
        %v1382 = vadd.f32 %v1189, %v1381
        %v1383 = vpop.f32.mrb[0].mxu0
        %1384 = vmatprep.mubr.f32.mxu0 0.0
        %1385 = vmatmul.mubr.f32.gmra.mrb[0].mxu0 %v1261
        %v1386 = vpop.f32.mrb[0].mxu0
        %v1387 = vadd.f32 %v1194, %v1386
        %v1388 = vpop.f32.mrb[0].mxu0
        %1389 = vmatprep.mubr.f32.mxu0 0.0
        %1390 = vmatmul.mubr.f32.gmra.mrb[0].mxu0 %v1264
        %v1391 = vpop.f32.mrb[0].mxu0
        %v1392 = vadd.f32 %v1199, %v1391
        %v1393 = vpop.f32.mrb[0].mxu0
        %1394 = vmatprep.mubr.f32.mxu0 0.0
        %1395 = vmatmul.mubr.f32.gmra.mrb[0].mxu0 %v1267
        %v1396 = vpop.f32.mrb[0].mxu0
        %v1397 = vadd.f32 %v1204, %v1396
        %v1398 = vpop.f32.mrb[0].mxu0
        %1399 = vmatprep.mubr.f32.mxu0 0.0
        %1400 = vmatmul.mubr.f32.gmra.mrb[0].mxu0 %v1270
        %v1401 = vpop.f32.mrb[0].mxu0
        %v1402 = vadd.f32 %v1209, %v1401
        %v1403 = vpop.f32.mrb[0].mxu0
        %1404 = vmatprep.mubr.f32.mxu0 0.0
        %1405 = vmatmul.mubr.f32.gmra.mrb[0].mxu0 %v1273
        %v1406 = vpop.f32.mrb[0].mxu0
        %v1407 = vadd.f32 %v1214, %v1406
        %v1408 = vpop.f32.mrb[0].mxu0
        %1409 = vmatprep.mubr.f32.mxu0 0.0
        %1410 = vmatmul.mubr.f32.gmra.mrb[0].mxu0 %v1276
        %v1411 = vpop.f32.mrb[0].mxu0
        %v1412 = vadd.f32 %v1219, %v1411
        %v1413 = vpop.f32.mrb[0].mxu0
        %1414 = vmatprep.mubr.f32.mxu0 0.0
        %1415 = vmatmul.mubr.f32.gmra.mrb[0].mxu0 %v1279
        %v1416 = vpop.f32.mrb[0].mxu0
        %v1417 = vadd.f32 %v1224, %v1416
        %v1418 = vpop.f32.mrb[0].mxu0
        %1419 = vmatprep.mubr.f32.mxu0 0.0
        %1420 = vmatmul.mubr.f32.gmra.mrb[0].mxu0 %v1282
        %v1421 = vpop.f32.mrb[0].mxu0
        %v1422 = vadd.f32 %v1229, %v1421
        %v1423 = vpop.f32.mrb[0].mxu0
        %1424 = vmatprep.mubr.f32.mxu0 0.0
        %1425 = vmatmul.mubr.f32.gmra.mrb[0].mxu0 %v1285
        %v1426 = vpop.f32.mrb[0].mxu0
        %v1427 = vadd.f32 %v1234, %v1426
        %v1428 = vpop.f32.mrb[0].mxu0
        %1429 = vmatprep.mubr.f32.mxu0 0.0
        %1430 = vmatmul.mubr.f32.gmra.mrb[0].mxu0 %v1288
        %v1431 = vpop.f32.mrb[0].mxu0
        %v1432 = vadd.f32 %v1239, %v1431
        %v1433 = vpop.f32.mrb[0].mxu0
        %1434 = vdwg.mxu0
        %v1436 = vsel %vm1048, %v942, 0
        %v1439 = vsel %vm1048, %v947, 0
        %v1442 = vsel %vm1048, %v952, 0
        %v1445 = vsel %vm1048, %v957, 0
        %v1448 = vsel %vm1048, %v962, 0
        %v1451 = vsel %vm1048, %v967, 0
        %v1454 = vsel %vm1048, %v972, 0
        %v1457 = vsel %vm1048, %v977, 0
        %v1460 = vsel %vm1048, %v982, 0
        %v1463 = vsel %vm1048, %v987, 0
        %v1466 = vsel %vm1048, %v992, 0
        %v1469 = vsel %vm1048, %v997, 0
        %v1472 = vsel %vm1048, %v1002, 0
        %v1475 = vsel %vm1048, %v1007, 0
        %v1478 = vsel %vm1048, %v1012, 0
        %v1481 = vsel %vm1048, %v1017, 0
        %1483 = vmatprep.subr.mxu0 0.0
        %1484 = vmatpush1.msra.mxu0 %v1044
        %1485 = vmatprep.subr.mxu0 0.0
        %1486 = vmatpush1.msra.mxu0 %v1045
        %1487 = vmatprep.subr.mxu0 0.0
        %1488 = vmatpush1.msra.mxu0 %v1046
        %1489 = vmatprep.subr.mxu0 0.0
        %1490 = vmatpush1.msra.mxu0 %v1047
        %1491 = vmatprep.subr.mxu0 0.0
        %1492 = vmatpush1.msra.mxu0 0.0
        %1493 = vmatprep.subr.mxu0 0.0
        %1494 = vmatpush1.msra.mxu0 0.0
        %1495 = vmatprep.subr.mxu0 0.0
        %1496 = vmatpush1.msra.mxu0 0.0
        %1497 = vmatprep.subr.mxu0 0.0
        %1498 = vmatpush1.msra.mxu0 0.0
        %1499 = vmatprep.subr.mxu0 0.0
        %1500 = vmatpush1.msra.mxu0 0.0
        %1501 = vmatprep.subr.mxu0 0.0
        %1502 = vmatpush1.msra.mxu0 0.0
        %1503 = vmatprep.subr.mxu0 0.0
        %1504 = vmatpush1.msra.mxu0 0.0
        %1505 = vmatprep.subr.mxu0 0.0
        %1506 = vmatpush1.msra.mxu0 0.0
        %1507 = vmatprep.subr.mxu0 0.0
        %1508 = vmatpush1.msra.mxu0 0.0
        %1509 = vmatprep.subr.mxu0 0.0
        %1510 = vmatpush1.msra.mxu0 0.0
        %1511 = vmatprep.subr.mxu0 0.0
        %1512 = vmatpush1.msra.mxu0 0.0
        %1513 = vmatprep.subr.mxu0 0.0
        %1514 = vmatpush1.msra.mxu0 0.0
        %1515 = vmatprep.subr.mxu0 0.0
        %1516 = vmatpush1.msra.mxu0 0.0
        %1517 = vmatprep.subr.mxu0 0.0
        %1518 = vmatpush1.msra.mxu0 0.0
        %1519 = vmatprep.subr.mxu0 0.0
        %1520 = vmatpush1.msra.mxu0 0.0
        %1521 = vmatprep.subr.mxu0 0.0
        %1522 = vmatpush1.msra.mxu0 0.0
        %1523 = vmatprep.subr.mxu0 0.0
        %1524 = vmatpush1.msra.mxu0 0.0
        %1525 = vmatprep.subr.mxu0 0.0
        %1526 = vmatpush1.msra.mxu0 0.0
        %1527 = vmatprep.subr.mxu0 0.0
        %1528 = vmatpush1.msra.mxu0 0.0
        %1529 = vmatprep.subr.mxu0 0.0
        %1530 = vmatpush1.msra.mxu0 0.0
        %1531 = vmatprep.subr.mxu0 0.0
        %1532 = vmatpush1.msra.mxu0 0.0
        %1533 = vmatprep.subr.mxu0 0.0
        %1534 = vmatpush1.msra.mxu0 0.0
        %1535 = vmatprep.subr.mxu0 0.0
        %1536 = vmatpush1.msra.mxu0 0.0
        %1537 = vmatprep.subr.mxu0 0.0
        %1538 = vmatpush1.msra.mxu0 0.0
        %1539 = vmatprep.subr.mxu0 0.0
        %1540 = vmatpush1.msra.mxu0 0.0
        %1541 = vmatprep.subr.mxu0 0.0
        %1542 = vmatpush1.msra.mxu0 0.0
        %1543 = vmatprep.subr.mxu0 0.0
        %1544 = vmatpush1.msra.mxu0 0.0
        %1545 = vmatprep.subr.mxu0 0.0
        %1546 = vmatpush1.msra.mxu0 0.0
        %1547 = vmatprep.mubr.f32.mxu0 0.0
        %1548 = vmatmul.mubr.f32.gmra.mrb[0].mxu0 %v1436
        %v1549 = vpop.f32.mrb[0].mxu0
        %v1550 = vadd.f32 0.0, %v1549
        %v1551 = vpop.f32.mrb[0].mxu0
        %1552 = vmatprep.mubr.f32.mxu0 0.0
        %1553 = vmatmul.mubr.f32.gmra.mrb[0].mxu0 %v1439
        %v1554 = vpop.f32.mrb[0].mxu0
        %v1555 = vadd.f32 0.0, %v1554
        %v1556 = vpop.f32.mrb[0].mxu0
        %1557 = vmatprep.mubr.f32.mxu0 0.0
        %1558 = vmatmul.mubr.f32.gmra.mrb[0].mxu0 %v1442
        %v1559 = vpop.f32.mrb[0].mxu0
        %v1560 = vadd.f32 0.0, %v1559
        %v1561 = vpop.f32.mrb[0].mxu0
        %1562 = vmatprep.mubr.f32.mxu0 0.0
        %1563 = vmatmul.mubr.f32.gmra.mrb[0].mxu0 %v1445
        %v1564 = vpop.f32.mrb[0].mxu0
        %v1565 = vadd.f32 0.0, %v1564
        %v1566 = vpop.f32.mrb[0].mxu0
        %1567 = vmatprep.mubr.f32.mxu0 0.0
        %1568 = vmatmul.mubr.f32.gmra.mrb[0].mxu0 %v1448
        %v1569 = vpop.f32.mrb[0].mxu0
        %v1570 = vadd.f32 0.0, %v1569
        %v1571 = vpop.f32.mrb[0].mxu0
        %1572 = vmatprep.mubr.f32.mxu0 0.0
        %1573 = vmatmul.mubr.f32.gmra.mrb[0].mxu0 %v1451
        %v1574 = vpop.f32.mrb[0].mxu0
        %v1575 = vadd.f32 0.0, %v1574
        %v1576 = vpop.f32.mrb[0].mxu0
        %1577 = vmatprep.mubr.f32.mxu0 0.0
        %1578 = vmatmul.mubr.f32.gmra.mrb[0].mxu0 %v1454
        %v1579 = vpop.f32.mrb[0].mxu0
        %v1580 = vadd.f32 0.0, %v1579
        %v1581 = vpop.f32.mrb[0].mxu0
        %1582 = vmatprep.mubr.f32.mxu0 0.0
        %1583 = vmatmul.mubr.f32.gmra.mrb[0].mxu0 %v1457
        %v1584 = vpop.f32.mrb[0].mxu0
        %v1585 = vadd.f32 0.0, %v1584
        %v1586 = vpop.f32.mrb[0].mxu0
        %1587 = vmatprep.mubr.f32.mxu0 0.0
        %1588 = vmatmul.mubr.f32.gmra.mrb[0].mxu0 %v1460
        %v1589 = vpop.f32.mrb[0].mxu0
        %v1590 = vadd.f32 0.0, %v1589
        %v1591 = vpop.f32.mrb[0].mxu0
        %1592 = vmatprep.mubr.f32.mxu0 0.0
        %1593 = vmatmul.mubr.f32.gmra.mrb[0].mxu0 %v1463
        %v1594 = vpop.f32.mrb[0].mxu0
        %v1595 = vadd.f32 0.0, %v1594
        %v1596 = vpop.f32.mrb[0].mxu0
        %1597 = vmatprep.mubr.f32.mxu0 0.0
        %1598 = vmatmul.mubr.f32.gmra.mrb[0].mxu0 %v1466
        %v1599 = vpop.f32.mrb[0].mxu0
        %v1600 = vadd.f32 0.0, %v1599
        %v1601 = vpop.f32.mrb[0].mxu0
        %1602 = vmatprep.mubr.f32.mxu0 0.0
        %1603 = vmatmul.mubr.f32.gmra.mrb[0].mxu0 %v1469
        %v1604 = vpop.f32.mrb[0].mxu0
        %v1605 = vadd.f32 0.0, %v1604
        %v1606 = vpop.f32.mrb[0].mxu0
        %1607 = vmatprep.mubr.f32.mxu0 0.0
        %1608 = vmatmul.mubr.f32.gmra.mrb[0].mxu0 %v1472
        %v1609 = vpop.f32.mrb[0].mxu0
        %v1610 = vadd.f32 0.0, %v1609
        %v1611 = vpop.f32.mrb[0].mxu0
        %1612 = vmatprep.mubr.f32.mxu0 0.0
        %1613 = vmatmul.mubr.f32.gmra.mrb[0].mxu0 %v1475
        %v1614 = vpop.f32.mrb[0].mxu0
        %v1615 = vadd.f32 0.0, %v1614
        %v1616 = vpop.f32.mrb[0].mxu0
        %1617 = vmatprep.mubr.f32.mxu0 0.0
        %1618 = vmatmul.mubr.f32.gmra.mrb[0].mxu0 %v1478
        %v1619 = vpop.f32.mrb[0].mxu0
        %v1620 = vadd.f32 0.0, %v1619
        %v1621 = vpop.f32.mrb[0].mxu0
        %1622 = vmatprep.mubr.f32.mxu0 0.0
        %1623 = vmatmul.mubr.f32.gmra.mrb[0].mxu0 %v1481
        %v1624 = vpop.f32.mrb[0].mxu0
        %v1625 = vadd.f32 0.0, %v1624
        %v1626 = vpop.f32.mrb[0].mxu0
        %1627 = vdwg.mxu0
        %v1628 = vadd.f32 %v1357, %v1550
        %v1629 = vadd.f32 %v1362, %v1555
        %v1630 = vadd.f32 %v1367, %v1560
        %v1631 = vadd.f32 %v1372, %v1565
        %v1632 = vadd.f32 %v1377, %v1570
        %v1633 = vadd.f32 %v1382, %v1575
        %v1634 = vadd.f32 %v1387, %v1580
        %v1635 = vadd.f32 %v1392, %v1585
        %v1636 = vadd.f32 %v1397, %v1590
        %v1637 = vadd.f32 %v1402, %v1595
        %v1638 = vadd.f32 %v1407, %v1600
        %v1639 = vadd.f32 %v1412, %v1605
        %v1640 = vadd.f32 %v1417, %v1610
        %v1641 = vadd.f32 %v1422, %v1615
        %v1642 = vadd.f32 %v1427, %v1620
        %v1643 = vadd.f32 %v1432, %v1625
        %v1644 = vld [vmem:[%s6] sm:$0x1]
        %v1646 = vlaneseq
        %v1647 = vshrl.u32 %v1646, 7
        %v1648 = vsub.s32 0, %v1647
        %v1649 = vrot.slane %v1644, %v1648
        %v1651 = vadd.f32 %v1628, %v1649
        %v1652 = vadd.f32 %v1629, %v1649
        %v1653 = vadd.f32 %v1630, %v1649
        %v1654 = vadd.f32 %v1631, %v1649
        %v1655 = vadd.f32 %v1632, %v1649
        %v1656 = vadd.f32 %v1633, %v1649
        %v1657 = vadd.f32 %v1634, %v1649
        %v1658 = vadd.f32 %v1635, %v1649
        %v1659 = vadd.f32 %v1636, %v1649
        %v1660 = vadd.f32 %v1637, %v1649
        %v1661 = vadd.f32 %v1638, %v1649
        %v1662 = vadd.f32 %v1639, %v1649
        %v1663 = vadd.f32 %v1640, %v1649
        %v1664 = vadd.f32 %v1641, %v1649
        %v1665 = vadd.f32 %v1642, %v1649
        %v1666 = vadd.f32 %v1643, %v1649
        %v1667 = vld [vmem:[%s7] sm:$0xff]
        %v1668 = vld [vmem:[%s7 + $0x8] sm:$0xff]
        %v1669 = vld [vmem:[%s7 + $0x10] sm:$0xff]
        %v1670 = vld [vmem:[%s7 + $0x18] sm:$0xff]
        %v1672 = vsel %vm1048, %v1651, 0
        %v1675 = vsel %vm1048, %v1652, 0
        %v1678 = vsel %vm1048, %v1653, 0
        %v1681 = vsel %vm1048, %v1654, 0
        %v1684 = vsel %vm1048, %v1655, 0
        %v1687 = vsel %vm1048, %v1656, 0
        %v1690 = vsel %vm1048, %v1657, 0
        %v1693 = vsel %vm1048, %v1658, 0
        %v1696 = vsel %vm1048, %v1659, 0
        %v1699 = vsel %vm1048, %v1660, 0
        %v1702 = vsel %vm1048, %v1661, 0
        %v1705 = vsel %vm1048, %v1662, 0
        %v1708 = vsel %vm1048, %v1663, 0
        %v1711 = vsel %vm1048, %v1664, 0
        %v1714 = vsel %vm1048, %v1665, 0
        %v1717 = vsel %vm1048, %v1666, 0
        %1719 = vmatprep.subr.mxu0 0.0
        %1720 = vmatpush1.msra.mxu0 %v1667
        %1721 = vmatprep.subr.mxu0 0.0
        %1722 = vmatpush1.msra.mxu0 %v1668
        %1723 = vmatprep.subr.mxu0 0.0
        %1724 = vmatpush1.msra.mxu0 %v1669
        %1725 = vmatprep.subr.mxu0 0.0
        %1726 = vmatpush1.msra.mxu0 %v1670
        %1727 = vmatprep.subr.mxu0 0.0
        %1728 = vmatpush1.msra.mxu0 0.0
        %1729 = vmatprep.subr.mxu0 0.0
        %1730 = vmatpush1.msra.mxu0 0.0
        %1731 = vmatprep.subr.mxu0 0.0
        %1732 = vmatpush1.msra.mxu0 0.0
        %1733 = vmatprep.subr.mxu0 0.0
        %1734 = vmatpush1.msra.mxu0 0.0
        %1735 = vmatprep.subr.mxu0 0.0
        %1736 = vmatpush1.msra.mxu0 0.0
        %1737 = vmatprep.subr.mxu0 0.0
        %1738 = vmatpush1.msra.mxu0 0.0
        %1739 = vmatprep.subr.mxu0 0.0
        %1740 = vmatpush1.msra.mxu0 0.0
        %1741 = vmatprep.subr.mxu0 0.0
        %1742 = vmatpush1.msra.mxu0 0.0
        %1743 = vmatprep.subr.mxu0 0.0
        %1744 = vmatpush1.msra.mxu0 0.0
        %1745 = vmatprep.subr.mxu0 0.0
        %1746 = vmatpush1.msra.mxu0 0.0
        %1747 = vmatprep.subr.mxu0 0.0
        %1748 = vmatpush1.msra.mxu0 0.0
        %1749 = vmatprep.subr.mxu0 0.0
        %1750 = vmatpush1.msra.mxu0 0.0
        %1751 = vmatprep.subr.mxu0 0.0
        %1752 = vmatpush1.msra.mxu0 0.0
        %1753 = vmatprep.subr.mxu0 0.0
        %1754 = vmatpush1.msra.mxu0 0.0
        %1755 = vmatprep.subr.mxu0 0.0
        %1756 = vmatpush1.msra.mxu0 0.0
        %1757 = vmatprep.subr.mxu0 0.0
        %1758 = vmatpush1.msra.mxu0 0.0
        %1759 = vmatprep.subr.mxu0 0.0
        %1760 = vmatpush1.msra.mxu0 0.0
        %1761 = vmatprep.subr.mxu0 0.0
        %1762 = vmatpush1.msra.mxu0 0.0
        %1763 = vmatprep.subr.mxu0 0.0
        %1764 = vmatpush1.msra.mxu0 0.0
        %1765 = vmatprep.subr.mxu0 0.0
        %1766 = vmatpush1.msra.mxu0 0.0
        %1767 = vmatprep.subr.mxu0 0.0
        %1768 = vmatpush1.msra.mxu0 0.0
        %1769 = vmatprep.subr.mxu0 0.0
        %1770 = vmatpush1.msra.mxu0 0.0
        %1771 = vmatprep.subr.mxu0 0.0
        %1772 = vmatpush1.msra.mxu0 0.0
        %1773 = vmatprep.subr.mxu0 0.0
        %1774 = vmatpush1.msra.mxu0 0.0
        %1775 = vmatprep.subr.mxu0 0.0
        %1776 = vmatpush1.msra.mxu0 0.0
        %1777 = vmatprep.subr.mxu0 0.0
        %1778 = vmatpush1.msra.mxu0 0.0
        %1779 = vmatprep.subr.mxu0 0.0
        %1780 = vmatpush1.msra.mxu0 0.0
        %1781 = vmatprep.subr.mxu0 0.0
        %1782 = vmatpush1.msra.mxu0 0.0
        %1783 = vmatprep.mubr.f32.mxu0 0.0
        %1784 = vmatmul.mubr.f32.gmra.mrb[0].mxu0 %v1672
        %v1785 = vpop.f32.mrb[0].mxu0
        %v1786 = vadd.f32 0.0, %v1785
        %v1787 = vpop.f32.mrb[0].mxu0
        %1788 = vmatprep.mubr.f32.mxu0 0.0
        %1789 = vmatmul.mubr.f32.gmra.mrb[0].mxu0 %v1675
        %v1790 = vpop.f32.mrb[0].mxu0
        %v1791 = vadd.f32 0.0, %v1790
        %v1792 = vpop.f32.mrb[0].mxu0
        %1793 = vmatprep.mubr.f32.mxu0 0.0
        %1794 = vmatmul.mubr.f32.gmra.mrb[0].mxu0 %v1678
        %v1795 = vpop.f32.mrb[0].mxu0
        %v1796 = vadd.f32 0.0, %v1795
        %v1797 = vpop.f32.mrb[0].mxu0
        %1798 = vmatprep.mubr.f32.mxu0 0.0
        %1799 = vmatmul.mubr.f32.gmra.mrb[0].mxu0 %v1681
        %v1800 = vpop.f32.mrb[0].mxu0
        %v1801 = vadd.f32 0.0, %v1800
        %v1802 = vpop.f32.mrb[0].mxu0
        %1803 = vmatprep.mubr.f32.mxu0 0.0
        %1804 = vmatmul.mubr.f32.gmra.mrb[0].mxu0 %v1684
        %v1805 = vpop.f32.mrb[0].mxu0
        %v1806 = vadd.f32 0.0, %v1805
        %v1807 = vpop.f32.mrb[0].mxu0
        %1808 = vmatprep.mubr.f32.mxu0 0.0
        %1809 = vmatmul.mubr.f32.gmra.mrb[0].mxu0 %v1687
        %v1810 = vpop.f32.mrb[0].mxu0
        %v1811 = vadd.f32 0.0, %v1810
        %v1812 = vpop.f32.mrb[0].mxu0
        %1813 = vmatprep.mubr.f32.mxu0 0.0
        %1814 = vmatmul.mubr.f32.gmra.mrb[0].mxu0 %v1690
        %v1815 = vpop.f32.mrb[0].mxu0
        %v1816 = vadd.f32 0.0, %v1815
        %v1817 = vpop.f32.mrb[0].mxu0
        %1818 = vmatprep.mubr.f32.mxu0 0.0
        %1819 = vmatmul.mubr.f32.gmra.mrb[0].mxu0 %v1693
        %v1820 = vpop.f32.mrb[0].mxu0
        %v1821 = vadd.f32 0.0, %v1820
        %v1822 = vpop.f32.mrb[0].mxu0
        %1823 = vmatprep.mubr.f32.mxu0 0.0
        %1824 = vmatmul.mubr.f32.gmra.mrb[0].mxu0 %v1696
        %v1825 = vpop.f32.mrb[0].mxu0
        %v1826 = vadd.f32 0.0, %v1825
        %v1827 = vpop.f32.mrb[0].mxu0
        %1828 = vmatprep.mubr.f32.mxu0 0.0
        %1829 = vmatmul.mubr.f32.gmra.mrb[0].mxu0 %v1699
        %v1830 = vpop.f32.mrb[0].mxu0
        %v1831 = vadd.f32 0.0, %v1830
        %v1832 = vpop.f32.mrb[0].mxu0
        %1833 = vmatprep.mubr.f32.mxu0 0.0
        %1834 = vmatmul.mubr.f32.gmra.mrb[0].mxu0 %v1702
        %v1835 = vpop.f32.mrb[0].mxu0
        %v1836 = vadd.f32 0.0, %v1835
        %v1837 = vpop.f32.mrb[0].mxu0
        %1838 = vmatprep.mubr.f32.mxu0 0.0
        %1839 = vmatmul.mubr.f32.gmra.mrb[0].mxu0 %v1705
        %v1840 = vpop.f32.mrb[0].mxu0
        %v1841 = vadd.f32 0.0, %v1840
        %v1842 = vpop.f32.mrb[0].mxu0
        %1843 = vmatprep.mubr.f32.mxu0 0.0
        %1844 = vmatmul.mubr.f32.gmra.mrb[0].mxu0 %v1708
        %v1845 = vpop.f32.mrb[0].mxu0
        %v1846 = vadd.f32 0.0, %v1845
        %v1847 = vpop.f32.mrb[0].mxu0
        %1848 = vmatprep.mubr.f32.mxu0 0.0
        %1849 = vmatmul.mubr.f32.gmra.mrb[0].mxu0 %v1711
        %v1850 = vpop.f32.mrb[0].mxu0
        %v1851 = vadd.f32 0.0, %v1850
        %v1852 = vpop.f32.mrb[0].mxu0
        %1853 = vmatprep.mubr.f32.mxu0 0.0
        %1854 = vmatmul.mubr.f32.gmra.mrb[0].mxu0 %v1714
        %v1855 = vpop.f32.mrb[0].mxu0
        %v1856 = vadd.f32 0.0, %v1855
        %v1857 = vpop.f32.mrb[0].mxu0
        %1858 = vmatprep.mubr.f32.mxu0 0.0
        %1859 = vmatmul.mubr.f32.gmra.mrb[0].mxu0 %v1717
        %v1860 = vpop.f32.mrb[0].mxu0
        %v1861 = vadd.f32 0.0, %v1860
        %v1862 = vpop.f32.mrb[0].mxu0
        %1863 = vdwg.mxu0
        %1880 = vrot.lane.b32.xlu0 %v1786, 32
        %v1881 = vpop.permute.xlu0 %1880
        %1882 = vrot.lane.b32.xlu0 %v1791, 32
        %v1883 = vpop.permute.xlu0 %1882
        %1884 = vrot.lane.b32.xlu0 %v1796, 32
        %v1885 = vpop.permute.xlu0 %1884
        %1886 = vrot.lane.b32.xlu0 %v1801, 32
        %v1887 = vpop.permute.xlu0 %1886
        %1888 = vrot.lane.b32.xlu0 %v1806, 32
        %v1889 = vpop.permute.xlu0 %1888
        %1890 = vrot.lane.b32.xlu0 %v1811, 32
        %v1891 = vpop.permute.xlu0 %1890
        %1892 = vrot.lane.b32.xlu0 %v1816, 32
        %v1893 = vpop.permute.xlu0 %1892
        %1894 = vrot.lane.b32.xlu0 %v1821, 32
        %v1895 = vpop.permute.xlu0 %1894
        %1896 = vrot.lane.b32.xlu0 %v1826, 32
        %v1897 = vpop.permute.xlu0 %1896
        %1898 = vrot.lane.b32.xlu0 %v1831, 32
        %v1899 = vpop.permute.xlu0 %1898
        %1900 = vrot.lane.b32.xlu0 %v1836, 32
        %v1901 = vpop.permute.xlu0 %1900
        %1902 = vrot.lane.b32.xlu0 %v1841, 32
        %v1903 = vpop.permute.xlu0 %1902
        %1904 = vrot.lane.b32.xlu0 %v1846, 32
        %v1905 = vpop.permute.xlu0 %1904
        %1906 = vrot.lane.b32.xlu0 %v1851, 32
        %v1907 = vpop.permute.xlu0 %1906
        %1908 = vrot.lane.b32.xlu0 %v1856, 32
        %v1909 = vpop.permute.xlu0 %1908
        %1910 = vrot.lane.b32.xlu0 %v1861, 32
        %v1911 = vpop.permute.xlu0 %1910
        %v1928 = vadd.f32 %v1651, %v1881
        %v1929 = vadd.f32 %v1652, %v1883
        %v1930 = vadd.f32 %v1653, %v1885
        %v1931 = vadd.f32 %v1654, %v1887
        %v1932 = vadd.f32 %v1655, %v1889
        %v1933 = vadd.f32 %v1656, %v1891
        %v1934 = vadd.f32 %v1657, %v1893
        %v1935 = vadd.f32 %v1658, %v1895
        %v1936 = vadd.f32 %v1659, %v1897
        %v1937 = vadd.f32 %v1660, %v1899
        %v1938 = vadd.f32 %v1661, %v1901
        %v1939 = vadd.f32 %v1662, %v1903
        %v1940 = vadd.f32 %v1663, %v1905
        %v1941 = vadd.f32 %v1664, %v1907
        %v1942 = vadd.f32 %v1665, %v1909
        %v1943 = vadd.f32 %v1666, %v1911
        %vm1944 = vcmp.gt.f32.partialorder %v1928, 0.0
        %vm1945 = vcmp.gt.f32.partialorder %v1929, 0.0
        %vm1946 = vcmp.gt.f32.partialorder %v1930, 0.0
        %vm1947 = vcmp.gt.f32.partialorder %v1931, 0.0
        %vm1948 = vcmp.gt.f32.partialorder %v1932, 0.0
        %vm1949 = vcmp.gt.f32.partialorder %v1933, 0.0
        %vm1950 = vcmp.gt.f32.partialorder %v1934, 0.0
        %vm1951 = vcmp.gt.f32.partialorder %v1935, 0.0
        %vm1952 = vcmp.gt.f32.partialorder %v1936, 0.0
        %vm1953 = vcmp.gt.f32.partialorder %v1937, 0.0
        %vm1954 = vcmp.gt.f32.partialorder %v1938, 0.0
        %vm1955 = vcmp.gt.f32.partialorder %v1939, 0.0
        %vm1956 = vcmp.gt.f32.partialorder %v1940, 0.0
        %vm1957 = vcmp.gt.f32.partialorder %v1941, 0.0
        %vm1958 = vcmp.gt.f32.partialorder %v1942, 0.0
        %vm1959 = vcmp.gt.f32.partialorder %v1943, 0.0
        %v1960 = vmul.f32 %v1928, 0.01
        %v1961 = vmul.f32 %v1929, 0.01
        %v1962 = vmul.f32 %v1930, 0.01
        %v1963 = vmul.f32 %v1931, 0.01
        %v1964 = vmul.f32 %v1932, 0.01
        %v1965 = vmul.f32 %v1933, 0.01
        %v1966 = vmul.f32 %v1934, 0.01
        %v1967 = vmul.f32 %v1935, 0.01
        %v1968 = vmul.f32 %v1936, 0.01
        %v1969 = vmul.f32 %v1937, 0.01
        %v1970 = vmul.f32 %v1938, 0.01
        %v1971 = vmul.f32 %v1939, 0.01
        %v1972 = vmul.f32 %v1940, 0.01
        %v1973 = vmul.f32 %v1941, 0.01
        %v1974 = vmul.f32 %v1942, 0.01
        %v1975 = vmul.f32 %v1943, 0.01
        %v1976 = vsel %vm1944, %v1928, %v1960
        %v1977 = vsel %vm1945, %v1929, %v1961
        %v1978 = vsel %vm1946, %v1930, %v1962
        %v1979 = vsel %vm1947, %v1931, %v1963
        %v1980 = vsel %vm1948, %v1932, %v1964
        %v1981 = vsel %vm1949, %v1933, %v1965
        %v1982 = vsel %vm1950, %v1934, %v1966
        %v1983 = vsel %vm1951, %v1935, %v1967
        %v1984 = vsel %vm1952, %v1936, %v1968
        %v1985 = vsel %vm1953, %v1937, %v1969
        %v1986 = vsel %vm1954, %v1938, %v1970
        %v1987 = vsel %vm1955, %v1939, %v1971
        %v1988 = vsel %vm1956, %v1940, %v1972
        %v1989 = vsel %vm1957, %v1941, %v1973
        %v1990 = vsel %vm1958, %v1942, %v1974
        %v1991 = vsel %vm1959, %v1943, %v1975
        %vm1992 = vcmp.lt.s32.totalorder %v407, 16
        %vm1993 = vcmp.lt.s32.totalorder %v408, 16
        %vm1994 = vcmp.lt.s32.totalorder %v409, 16
        %vm1995 = vcmp.lt.s32.totalorder %v410, 16
        %vm1996 = vcmp.lt.s32.totalorder %v411, 16
        %vm1997 = vcmp.lt.s32.totalorder %v412, 16
        %vm1998 = vcmp.lt.s32.totalorder %v413, 16
        %vm1999 = vcmp.lt.s32.totalorder %v414, 16
        %vm2000 = vcmp.lt.s32.totalorder %v415, 16
        %vm2001 = vcmp.lt.s32.totalorder %v416, 16
        %vm2002 = vcmp.lt.s32.totalorder %v417, 16
        %vm2003 = vcmp.lt.s32.totalorder %v418, 16
        %vm2004 = vcmp.lt.s32.totalorder %v419, 16
        %vm2005 = vcmp.lt.s32.totalorder %v420, 16
        %vm2006 = vcmp.lt.s32.totalorder %v421, 16
        %vm2007 = vcmp.lt.s32.totalorder %v422, 16
        %v2008 = vsel %vm1992, 1, 0
        %v2009 = vsel %vm1993, 1, 0
        %v2010 = vsel %vm1994, 1, 0
        %v2011 = vsel %vm1995, 1, 0
        %v2012 = vsel %vm1996, 1, 0
        %v2013 = vsel %vm1997, 1, 0
        %v2014 = vsel %vm1998, 1, 0
        %v2015 = vsel %vm1999, 1, 0
        %v2016 = vsel %vm2000, 1, 0
        %v2017 = vsel %vm2001, 1, 0
        %v2018 = vsel %vm2002, 1, 0
        %v2019 = vsel %vm2003, 1, 0
        %v2020 = vsel %vm2004, 1, 0
        %v2021 = vsel %vm2005, 1, 0
        %v2022 = vsel %vm2006, 1, 0
        %v2023 = vsel %vm2007, 1, 0
        %2024 = vset.pattern.permute.xlu0 0
        %2025 = vperm.xlu0 %2024, %v2008
        %v2026 = vpop.permute.xlu0 %2025
        %2027 = vset.pattern.permute.xlu0 0
        %2028 = vperm.xlu0 %2027, %v2009
        %v2029 = vpop.permute.xlu0 %2028
        %2030 = vset.pattern.permute.xlu0 0
        %2031 = vperm.xlu0 %2030, %v2010
        %v2032 = vpop.permute.xlu0 %2031
        %2033 = vset.pattern.permute.xlu0 0
        %2034 = vperm.xlu0 %2033, %v2011
        %v2035 = vpop.permute.xlu0 %2034
        %2036 = vset.pattern.permute.xlu0 0
        %2037 = vperm.xlu0 %2036, %v2012
        %v2038 = vpop.permute.xlu0 %2037
        %2039 = vset.pattern.permute.xlu0 0
        %2040 = vperm.xlu0 %2039, %v2013
        %v2041 = vpop.permute.xlu0 %2040
        %2042 = vset.pattern.permute.xlu0 0
        %2043 = vperm.xlu0 %2042, %v2014
        %v2044 = vpop.permute.xlu0 %2043
        %2045 = vset.pattern.permute.xlu0 0
        %2046 = vperm.xlu0 %2045, %v2015
        %v2047 = vpop.permute.xlu0 %2046
        %2048 = vset.pattern.permute.xlu0 0
        %2049 = vperm.xlu0 %2048, %v2016
        %v2050 = vpop.permute.xlu0 %2049
        %2051 = vset.pattern.permute.xlu0 0
        %2052 = vperm.xlu0 %2051, %v2017
        %v2053 = vpop.permute.xlu0 %2052
        %2054 = vset.pattern.permute.xlu0 0
        %2055 = vperm.xlu0 %2054, %v2018
        %v2056 = vpop.permute.xlu0 %2055
        %2057 = vset.pattern.permute.xlu0 0
        %2058 = vperm.xlu0 %2057, %v2019
        %v2059 = vpop.permute.xlu0 %2058
        %2060 = vset.pattern.permute.xlu0 0
        %2061 = vperm.xlu0 %2060, %v2020
        %v2062 = vpop.permute.xlu0 %2061
        %2063 = vset.pattern.permute.xlu0 0
        %2064 = vperm.xlu0 %2063, %v2021
        %v2065 = vpop.permute.xlu0 %2064
        %2066 = vset.pattern.permute.xlu0 0
        %2067 = vperm.xlu0 %2066, %v2022
        %v2068 = vpop.permute.xlu0 %2067
        %2069 = vset.pattern.permute.xlu0 0
        %2070 = vperm.xlu0 %2069, %v2023
        %v2071 = vpop.permute.xlu0 %2070
        %vm2072 = vcmp.eq.s32.totalorder %v2026, 1
        %vm2073 = vcmp.eq.s32.totalorder %v2029, 1
        %vm2074 = vcmp.eq.s32.totalorder %v2032, 1
        %vm2075 = vcmp.eq.s32.totalorder %v2035, 1
        %vm2076 = vcmp.eq.s32.totalorder %v2038, 1
        %vm2077 = vcmp.eq.s32.totalorder %v2041, 1
        %vm2078 = vcmp.eq.s32.totalorder %v2044, 1
        %vm2079 = vcmp.eq.s32.totalorder %v2047, 1
        %vm2080 = vcmp.eq.s32.totalorder %v2050, 1
        %vm2081 = vcmp.eq.s32.totalorder %v2053, 1
        %vm2082 = vcmp.eq.s32.totalorder %v2056, 1
        %vm2083 = vcmp.eq.s32.totalorder %v2059, 1
        %vm2084 = vcmp.eq.s32.totalorder %v2062, 1
        %vm2085 = vcmp.eq.s32.totalorder %v2065, 1
        %vm2086 = vcmp.eq.s32.totalorder %v2068, 1
        %vm2087 = vcmp.eq.s32.totalorder %v2071, 1
        %v2088 = vsel %vm2072, %v1976, 0.0
        %v2089 = vsel %vm2073, %v1977, 0.0
        %v2090 = vsel %vm2074, %v1978, 0.0
        %v2091 = vsel %vm2075, %v1979, 0.0
        %v2092 = vsel %vm2076, %v1980, 0.0
        %v2093 = vsel %vm2077, %v1981, 0.0
        %v2094 = vsel %vm2078, %v1982, 0.0
        %v2095 = vsel %vm2079, %v1983, 0.0
        %v2096 = vsel %vm2080, %v1984, 0.0
        %v2097 = vsel %vm2081, %v1985, 0.0
        %v2098 = vsel %vm2082, %v1986, 0.0
        %v2099 = vsel %vm2083, %v1987, 0.0
        %v2100 = vsel %vm2084, %v1988, 0.0
        %v2101 = vsel %vm2085, %v1989, 0.0
        %v2102 = vsel %vm2086, %v1990, 0.0
        %v2103 = vsel %vm2087, %v1991, 0.0
        %vm2104 = vcmp.eq.s32.totalorder %v619, %v425
        %v2105 = vsel %vm2104, 1, 0
        %v2106 = vcvt.s32.f32 %v2105
        %2123 = vrot.lane.b32.xlu0 %v2088, 96
        %v2124 = vpop.permute.xlu0 %2123
        %2125 = vrot.lane.b32.xlu0 %v2089, 96
        %v2126 = vpop.permute.xlu0 %2125
        %2127 = vrot.lane.b32.xlu0 %v2090, 96
        %v2128 = vpop.permute.xlu0 %2127
        %2129 = vrot.lane.b32.xlu0 %v2091, 96
        %v2130 = vpop.permute.xlu0 %2129
        %2131 = vrot.lane.b32.xlu0 %v2092, 96
        %v2132 = vpop.permute.xlu0 %2131
        %2133 = vrot.lane.b32.xlu0 %v2093, 96
        %v2134 = vpop.permute.xlu0 %2133
        %2135 = vrot.lane.b32.xlu0 %v2094, 96
        %v2136 = vpop.permute.xlu0 %2135
        %2137 = vrot.lane.b32.xlu0 %v2095, 96
        %v2138 = vpop.permute.xlu0 %2137
        %2139 = vrot.lane.b32.xlu0 %v2096, 96
        %v2140 = vpop.permute.xlu0 %2139
        %2141 = vrot.lane.b32.xlu0 %v2097, 96
        %v2142 = vpop.permute.xlu0 %2141
        %2143 = vrot.lane.b32.xlu0 %v2098, 96
        %v2144 = vpop.permute.xlu0 %2143
        %2145 = vrot.lane.b32.xlu0 %v2099, 96
        %v2146 = vpop.permute.xlu0 %2145
        %2147 = vrot.lane.b32.xlu0 %v2100, 96
        %v2148 = vpop.permute.xlu0 %2147
        %2149 = vrot.lane.b32.xlu0 %v2101, 96
        %v2150 = vpop.permute.xlu0 %2149
        %2151 = vrot.lane.b32.xlu0 %v2102, 96
        %v2152 = vpop.permute.xlu0 %2151
        %2153 = vrot.lane.b32.xlu0 %v2103, 96
        %v2154 = vpop.permute.xlu0 %2153
        %vm2155 = vcmask 31744
        %v2156 = vsel %vm2155, %v2124, 0
        %v2158 = vsel %vm2155, %v2126, 0
        %v2160 = vsel %vm2155, %v2128, 0
        %v2162 = vsel %vm2155, %v2130, 0
        %v2164 = vsel %vm2155, %v2132, 0
        %v2166 = vsel %vm2155, %v2134, 0
        %v2168 = vsel %vm2155, %v2136, 0
        %v2170 = vsel %vm2155, %v2138, 0
        %v2172 = vsel %vm2155, %v2140, 0
        %v2174 = vsel %vm2155, %v2142, 0
        %v2176 = vsel %vm2155, %v2144, 0
        %v2178 = vsel %vm2155, %v2146, 0
        %v2180 = vsel %vm2155, %v2148, 0
        %v2182 = vsel %vm2155, %v2150, 0
        %v2184 = vsel %vm2155, %v2152, 0
        %v2186 = vsel %vm2155, %v2154, 0
        %vm2188 = vcmask 1043456
        %v2190 = vsel %vm2188, %v2106, 0
        %2192 = vmatprep.subr.mxu0 0.0
        %2193 = vmatpush1.msra.mxu0 %v2190
        %2194 = vmatprep.subr.mxu0 0.0
        %2195 = vmatpush1.msra.mxu0 0.0
        %2196 = vmatprep.subr.mxu0 0.0
        %2197 = vmatpush1.msra.mxu0 0.0
        %2198 = vmatprep.subr.mxu0 0.0
        %2199 = vmatpush1.msra.mxu0 0.0
        %2200 = vmatprep.subr.mxu0 0.0
        %2201 = vmatpush1.msra.mxu0 0.0
        %2202 = vmatprep.subr.mxu0 0.0
        %2203 = vmatpush1.msra.mxu0 0.0
        %2204 = vmatprep.subr.mxu0 0.0
        %2205 = vmatpush1.msra.mxu0 0.0
        %2206 = vmatprep.subr.mxu0 0.0
        %2207 = vmatpush1.msra.mxu0 0.0
        %2208 = vmatprep.subr.mxu0 0.0
        %2209 = vmatpush1.msra.mxu0 0.0
        %2210 = vmatprep.subr.mxu0 0.0
        %2211 = vmatpush1.msra.mxu0 0.0
        %2212 = vmatprep.subr.mxu0 0.0
        %2213 = vmatpush1.msra.mxu0 0.0
        %2214 = vmatprep.subr.mxu0 0.0
        %2215 = vmatpush1.msra.mxu0 0.0
        %2216 = vmatprep.subr.mxu0 0.0
        %2217 = vmatpush1.msra.mxu0 0.0
        %2218 = vmatprep.subr.mxu0 0.0
        %2219 = vmatpush1.msra.mxu0 0.0
        %2220 = vmatprep.subr.mxu0 0.0
        %2221 = vmatpush1.msra.mxu0 0.0
        %2222 = vmatprep.subr.mxu0 0.0
        %2223 = vmatpush1.msra.mxu0 0.0
        %2224 = vmatprep.subr.mxu0 0.0
        %2225 = vmatpush1.msra.mxu0 0.0
        %2226 = vmatprep.subr.mxu0 0.0
        %2227 = vmatpush1.msra.mxu0 0.0
        %2228 = vmatprep.subr.mxu0 0.0
        %2229 = vmatpush1.msra.mxu0 0.0
        %2230 = vmatprep.subr.mxu0 0.0
        %2231 = vmatpush1.msra.mxu0 0.0
        %2232 = vmatprep.subr.mxu0 0.0
        %2233 = vmatpush1.msra.mxu0 0.0
        %2234 = vmatprep.subr.mxu0 0.0
        %2235 = vmatpush1.msra.mxu0 0.0
        %2236 = vmatprep.subr.mxu0 0.0
        %2237 = vmatpush1.msra.mxu0 0.0
        %2238 = vmatprep.subr.mxu0 0.0
        %2239 = vmatpush1.msra.mxu0 0.0
        %2240 = vmatprep.subr.mxu0 0.0
        %2241 = vmatpush1.msra.mxu0 0.0
        %2242 = vmatprep.subr.mxu0 0.0
        %2243 = vmatpush1.msra.mxu0 0.0
        %2244 = vmatprep.subr.mxu0 0.0
        %2245 = vmatpush1.msra.mxu0 0.0
        %2246 = vmatprep.subr.mxu0 0.0
        %2247 = vmatpush1.msra.mxu0 0.0
        %2248 = vmatprep.subr.mxu0 0.0
        %2249 = vmatpush1.msra.mxu0 0.0
        %2250 = vmatprep.subr.mxu0 0.0
        %2251 = vmatpush1.msra.mxu0 0.0
        %2252 = vmatprep.subr.mxu0 0.0
        %2253 = vmatpush1.msra.mxu0 0.0
        %2254 = vmatprep.subr.mxu0 0.0
        %2255 = vmatpush1.msra.mxu0 0.0
        %2256 = vmatprep.mubr.f32.mxu0 0.0
        %2257 = vmatmul.mubr.f32.gmra.mrb[0].mxu0 %v2156
        %v2258 = vpop.f32.mrb[0].mxu0
        %v2259 = vadd.f32 0.0, %v2258
        %v2260 = vpop.f32.mrb[0].mxu0
        %2261 = vmatprep.mubr.f32.mxu0 0.0
        %2262 = vmatmul.mubr.f32.gmra.mrb[0].mxu0 %v2158
        %v2263 = vpop.f32.mrb[0].mxu0
        %v2264 = vadd.f32 0.0, %v2263
        %v2265 = vpop.f32.mrb[0].mxu0
        %2266 = vmatprep.mubr.f32.mxu0 0.0
        %2267 = vmatmul.mubr.f32.gmra.mrb[0].mxu0 %v2160
        %v2268 = vpop.f32.mrb[0].mxu0
        %v2269 = vadd.f32 0.0, %v2268
        %v2270 = vpop.f32.mrb[0].mxu0
        %2271 = vmatprep.mubr.f32.mxu0 0.0
        %2272 = vmatmul.mubr.f32.gmra.mrb[0].mxu0 %v2162
        %v2273 = vpop.f32.mrb[0].mxu0
        %v2274 = vadd.f32 0.0, %v2273
        %v2275 = vpop.f32.mrb[0].mxu0
        %2276 = vmatprep.mubr.f32.mxu0 0.0
        %2277 = vmatmul.mubr.f32.gmra.mrb[0].mxu0 %v2164
        %v2278 = vpop.f32.mrb[0].mxu0
        %v2279 = vadd.f32 0.0, %v2278
        %v2280 = vpop.f32.mrb[0].mxu0
        %2281 = vmatprep.mubr.f32.mxu0 0.0
        %2282 = vmatmul.mubr.f32.gmra.mrb[0].mxu0 %v2166
        %v2283 = vpop.f32.mrb[0].mxu0
        %v2284 = vadd.f32 0.0, %v2283
        %v2285 = vpop.f32.mrb[0].mxu0
        %2286 = vmatprep.mubr.f32.mxu0 0.0
        %2287 = vmatmul.mubr.f32.gmra.mrb[0].mxu0 %v2168
        %v2288 = vpop.f32.mrb[0].mxu0
        %v2289 = vadd.f32 0.0, %v2288
        %v2290 = vpop.f32.mrb[0].mxu0
        %2291 = vmatprep.mubr.f32.mxu0 0.0
        %2292 = vmatmul.mubr.f32.gmra.mrb[0].mxu0 %v2170
        %v2293 = vpop.f32.mrb[0].mxu0
        %v2294 = vadd.f32 0.0, %v2293
        %v2295 = vpop.f32.mrb[0].mxu0
        %2296 = vmatprep.mubr.f32.mxu0 0.0
        %2297 = vmatmul.mubr.f32.gmra.mrb[0].mxu0 %v2172
        %v2298 = vpop.f32.mrb[0].mxu0
        %v2299 = vadd.f32 0.0, %v2298
        %v2300 = vpop.f32.mrb[0].mxu0
        %2301 = vmatprep.mubr.f32.mxu0 0.0
        %2302 = vmatmul.mubr.f32.gmra.mrb[0].mxu0 %v2174
        %v2303 = vpop.f32.mrb[0].mxu0
        %v2304 = vadd.f32 0.0, %v2303
        %v2305 = vpop.f32.mrb[0].mxu0
        %2306 = vmatprep.mubr.f32.mxu0 0.0
        %2307 = vmatmul.mubr.f32.gmra.mrb[0].mxu0 %v2176
        %v2308 = vpop.f32.mrb[0].mxu0
        %v2309 = vadd.f32 0.0, %v2308
        %v2310 = vpop.f32.mrb[0].mxu0
        %2311 = vmatprep.mubr.f32.mxu0 0.0
        %2312 = vmatmul.mubr.f32.gmra.mrb[0].mxu0 %v2178
        %v2313 = vpop.f32.mrb[0].mxu0
        %v2314 = vadd.f32 0.0, %v2313
        %v2315 = vpop.f32.mrb[0].mxu0
        %2316 = vmatprep.mubr.f32.mxu0 0.0
        %2317 = vmatmul.mubr.f32.gmra.mrb[0].mxu0 %v2180
        %v2318 = vpop.f32.mrb[0].mxu0
        %v2319 = vadd.f32 0.0, %v2318
        %v2320 = vpop.f32.mrb[0].mxu0
        %2321 = vmatprep.mubr.f32.mxu0 0.0
        %2322 = vmatmul.mubr.f32.gmra.mrb[0].mxu0 %v2182
        %v2323 = vpop.f32.mrb[0].mxu0
        %v2324 = vadd.f32 0.0, %v2323
        %v2325 = vpop.f32.mrb[0].mxu0
        %2326 = vmatprep.mubr.f32.mxu0 0.0
        %2327 = vmatmul.mubr.f32.gmra.mrb[0].mxu0 %v2184
        %v2328 = vpop.f32.mrb[0].mxu0
        %v2329 = vadd.f32 0.0, %v2328
        %v2330 = vpop.f32.mrb[0].mxu0
        %2331 = vmatprep.mubr.f32.mxu0 0.0
        %2332 = vmatmul.mubr.f32.gmra.mrb[0].mxu0 %v2186
        %v2333 = vpop.f32.mrb[0].mxu0
        %v2334 = vadd.f32 0.0, %v2333
        %v2335 = vpop.f32.mrb[0].mxu0
        %2336 = vdwg.mxu0
        %2337 = vxpose.xlu0.b32.start [1/16] %v2259, 128
        %2338 = vxpose.xlu0.b32.cont [2/16] %v2264, 128
        %2339 = vxpose.xlu0.b32.cont [3/16] %v2269, 128
        %2340 = vxpose.xlu0.b32.cont [4/16] %v2274, 128
        %2341 = vxpose.xlu0.b32.cont [5/16] %v2279, 128
        %2342 = vxpose.xlu0.b32.cont [6/16] %v2284, 128
        %2343 = vxpose.xlu0.b32.cont [7/16] %v2289, 128
        %2344 = vxpose.xlu0.b32.cont [8/16] %v2294, 128
        %2345 = vxpose.xlu0.b32.cont [9/16] %v2299, 128
        %2346 = vxpose.xlu0.b32.cont [10/16] %v2304, 128
        %2347 = vxpose.xlu0.b32.cont [11/16] %v2309, 128
        %2348 = vxpose.xlu0.b32.cont [12/16] %v2314, 128
        %2349 = vxpose.xlu0.b32.cont [13/16] %v2319, 128
        %2350 = vxpose.xlu0.b32.cont [14/16] %v2324, 128
        %2351 = vxpose.xlu0.b32.cont [15/16] %v2329, 128
        %2352 = vxpose.xlu0.b32.end [16/16] %v2334, 128
        %v2353 = vpop.trf.xlu0
        %v2354 = vpop.trf.xlu0
        %v2355 = vpop.trf.xlu0
        %v2356 = vpop.trf.xlu0
        %v2357 = vpop.trf.xlu0
        %v2358 = vpop.trf.xlu0
        %v2359 = vpop.trf.xlu0
        %v2360 = vpop.trf.xlu0
        %v2361 = vpop.trf.xlu0
        %v2362 = vpop.trf.xlu0
        %v2363 = vpop.trf.xlu0
        %v2364 = vpop.trf.xlu0
        %v2365 = vpop.trf.xlu0
        %v2366 = vpop.trf.xlu0
        %v2367 = vpop.trf.xlu0
        %v2368 = vpop.trf.xlu0
        %vm2369 = vcmp.gt.f32.partialorder %v629, 0.5
        %vm2370 = vcmp.gt.f32.partialorder %v630, 0.5
        %v2371 = vlaneseq
        %v2372 = vshrl.u32 %v2371, 7
        %v2373 = vsub.s32 0, %v2372
        %v2374 = vrot.slane %v2353, %v2373
        %v2375 = vsel %vm2369, %v2374, -1e+30
        %v2376 = vsel %vm2370, %v2374, -1e+30
        %2377 = vmax.xlane.f32.xlu0 %v2375
        %v2378 = vpop.xlane.xlu0 %2377
        %2379 = vmax.xlane.f32.xlu0 %v2376
        %v2380 = vpop.xlane.xlu0 %2379
        %vm2381 = vcmp.eq.s32.totalorder %v425, 0
        %v2382 = vsel %vm2381, %v2378, -1e+30
        %v2383 = vsel %vm2381, %v2380, -1e+30
        %v2384 = vlaneseq
        %v2385 = vshrl.u32 %v2384, 7
        %v2386 = vsub.s32 1, %v2385
        %v2387 = vrot.slane %v2353, %v2386
        %v2388 = vsel %vm2369, %v2387, -1e+30
        %v2389 = vsel %vm2370, %v2387, -1e+30
        %2390 = vmax.xlane.f32.xlu0 %v2388
        %v2391 = vpop.xlane.xlu0 %2390
        %2392 = vmax.xlane.f32.xlu0 %v2389
        %v2393 = vpop.xlane.xlu0 %2392
        %vm2394 = vcmp.eq.s32.totalorder %v425, 1
        %v2395 = vsel %vm2394, %v2391, %v2382
        %v2396 = vsel %vm2394, %v2393, %v2383
        %v2397 = vlaneseq
        %v2398 = vshrl.u32 %v2397, 7
        %v2399 = vsub.s32 2, %v2398
        %v2400 = vrot.slane %v2353, %v2399
        %v2401 = vsel %vm2369, %v2400, -1e+30
        %v2402 = vsel %vm2370, %v2400, -1e+30
        %2403 = vmax.xlane.f32.xlu0 %v2401
        %v2404 = vpop.xlane.xlu0 %2403
        %2405 = vmax.xlane.f32.xlu0 %v2402
        %v2406 = vpop.xlane.xlu0 %2405
        %vm2407 = vcmp.eq.s32.totalorder %v425, 2
        %v2408 = vsel %vm2407, %v2404, %v2395
        %v2409 = vsel %vm2407, %v2406, %v2396
        %v2410 = vlaneseq
        %v2411 = vshrl.u32 %v2410, 7
        %v2412 = vsub.s32 3, %v2411
        %v2413 = vrot.slane %v2353, %v2412
        %v2414 = vsel %vm2369, %v2413, -1e+30
        %v2415 = vsel %vm2370, %v2413, -1e+30
        %2416 = vmax.xlane.f32.xlu0 %v2414
        %v2417 = vpop.xlane.xlu0 %2416
        %2418 = vmax.xlane.f32.xlu0 %v2415
        %v2419 = vpop.xlane.xlu0 %2418
        %vm2420 = vcmp.eq.s32.totalorder %v425, 3
        %v2421 = vsel %vm2420, %v2417, %v2408
        %v2422 = vsel %vm2420, %v2419, %v2409
        %v2423 = vld [vmem:[#allocation2] sm:$0xff]
        %v2424 = vld [vmem:[#allocation2 + $0x8] sm:$0xff]
        %v2425 = vmax.f32 %v2423, %v2421
        %v2426 = vmax.f32 %v2424, %v2422
        %2427 = vst.msk [vmem:[#allocation2] sm:$0xff] %vm2155, %v2425
        %2428 = vst.msk [vmem:[#allocation2 + $0x8] sm:$0xff] %vm2155, %v2426
        %v2429 = vsub.f32 %v2423, %v2425
        %v2430 = vsub.f32 %v2424, %v2426
        %v2431 = vmul.f32 %v2429, 1.442695
        %v2432 = vpow.pop %v2431
        %v2433 = vmul.f32 %v2430, 1.442695
        %v2434 = vpow.pop %v2433
        %v2435 = vld [vmem:[%s8] sm:$0xf]
        %v2437 = vsel %vm2155, %v2432, 0
        %v2440 = vsel %vm2155, %v2434, 0
        %v2443 = vsel %vm2188, %v2435, 0
        %2445 = vmatprep.subr.mxu0 0.0
        %2446 = vmatpush1.msra.mxu0 %v2443
        %2447 = vmatprep.subr.mxu0 0.0
        %2448 = vmatpush1.msra.mxu0 0.0
        %2449 = vmatprep.subr.mxu0 0.0
        %2450 = vmatpush1.msra.mxu0 0.0
        %2451 = vmatprep.subr.mxu0 0.0
        %2452 = vmatpush1.msra.mxu0 0.0
        %2453 = vmatprep.subr.mxu0 0.0
        %2454 = vmatpush1.msra.mxu0 0.0
        %2455 = vmatprep.subr.mxu0 0.0
        %2456 = vmatpush1.msra.mxu0 0.0
        %2457 = vmatprep.subr.mxu0 0.0
        %2458 = vmatpush1.msra.mxu0 0.0
        %2459 = vmatprep.subr.mxu0 0.0
        %2460 = vmatpush1.msra.mxu0 0.0
        %2461 = vmatprep.subr.mxu0 0.0
        %2462 = vmatpush1.msra.mxu0 0.0
        %2463 = vmatprep.subr.mxu0 0.0
        %2464 = vmatpush1.msra.mxu0 0.0
        %2465 = vmatprep.subr.mxu0 0.0
        %2466 = vmatpush1.msra.mxu0 0.0
        %2467 = vmatprep.subr.mxu0 0.0
        %2468 = vmatpush1.msra.mxu0 0.0
        %2469 = vmatprep.subr.mxu0 0.0
        %2470 = vmatpush1.msra.mxu0 0.0
        %2471 = vmatprep.subr.mxu0 0.0
        %2472 = vmatpush1.msra.mxu0 0.0
        %2473 = vmatprep.subr.mxu0 0.0
        %2474 = vmatpush1.msra.mxu0 0.0
        %2475 = vmatprep.subr.mxu0 0.0
        %2476 = vmatpush1.msra.mxu0 0.0
        %2477 = vmatprep.subr.mxu0 0.0
        %2478 = vmatpush1.msra.mxu0 0.0
        %2479 = vmatprep.subr.mxu0 0.0
        %2480 = vmatpush1.msra.mxu0 0.0
        %2481 = vmatprep.subr.mxu0 0.0
        %2482 = vmatpush1.msra.mxu0 0.0
        %2483 = vmatprep.subr.mxu0 0.0
        %2484 = vmatpush1.msra.mxu0 0.0
        %2485 = vmatprep.subr.mxu0 0.0
        %2486 = vmatpush1.msra.mxu0 0.0
        %2487 = vmatprep.subr.mxu0 0.0
        %2488 = vmatpush1.msra.mxu0 0.0
        %2489 = vmatprep.subr.mxu0 0.0
        %2490 = vmatpush1.msra.mxu0 0.0
        %2491 = vmatprep.subr.mxu0 0.0
        %2492 = vmatpush1.msra.mxu0 0.0
        %2493 = vmatprep.subr.mxu0 0.0
        %2494 = vmatpush1.msra.mxu0 0.0
        %2495 = vmatprep.subr.mxu0 0.0
        %2496 = vmatpush1.msra.mxu0 0.0
        %2497 = vmatprep.subr.mxu0 0.0
        %2498 = vmatpush1.msra.mxu0 0.0
        %2499 = vmatprep.subr.mxu0 0.0
        %2500 = vmatpush1.msra.mxu0 0.0
        %2501 = vmatprep.subr.mxu0 0.0
        %2502 = vmatpush1.msra.mxu0 0.0
        %2503 = vmatprep.subr.mxu0 0.0
        %2504 = vmatpush1.msra.mxu0 0.0
        %2505 = vmatprep.subr.mxu0 0.0
        %2506 = vmatpush1.msra.mxu0 0.0
        %2507 = vmatprep.subr.mxu0 0.0
        %2508 = vmatpush1.msra.mxu0 0.0
        %2509 = vmatprep.mubr.f32.mxu0 0.0
        %2510 = vmatmul.mubr.f32.gmra.mrb[0].mxu0 %v2437
        %v2511 = vpop.f32.mrb[0].mxu0
        %v2512 = vadd.f32 0.0, %v2511
        %v2513 = vpop.f32.mrb[0].mxu0
        %2514 = vmatprep.mubr.f32.mxu0 0.0
        %2515 = vmatmul.mubr.f32.gmra.mrb[0].mxu0 %v2440
        %v2516 = vpop.f32.mrb[0].mxu0
        %v2517 = vadd.f32 0.0, %v2516
        %v2518 = vpop.f32.mrb[0].mxu0
        %2519 = vdwg.mxu0
        %2520 = vmatprep.subr.mxu0 0.0
        %2521 = vmatpush1.msra.mxu0 %v2425
        %2522 = vmatprep.subr.mxu0 0.0
        %2523 = vmatpush1.msra.mxu0 %v2426
        %2524 = vmatprep.subr.mxu0 0.0
        %2525 = vmatpush1.msra.mxu0 0.0
        %2526 = vmatprep.subr.mxu0 0.0
        %2527 = vmatpush1.msra.mxu0 0.0
        %2528 = vmatprep.subr.mxu0 0.0
        %2529 = vmatpush1.msra.mxu0 0.0
        %2530 = vmatprep.subr.mxu0 0.0
        %2531 = vmatpush1.msra.mxu0 0.0
        %2532 = vmatprep.subr.mxu0 0.0
        %2533 = vmatpush1.msra.mxu0 0.0
        %2534 = vmatprep.subr.mxu0 0.0
        %2535 = vmatpush1.msra.mxu0 0.0
        %2536 = vmatprep.subr.mxu0 0.0
        %2537 = vmatpush1.msra.mxu0 0.0
        %2538 = vmatprep.subr.mxu0 0.0
        %2539 = vmatpush1.msra.mxu0 0.0
        %2540 = vmatprep.subr.mxu0 0.0
        %2541 = vmatpush1.msra.mxu0 0.0
        %2542 = vmatprep.subr.mxu0 0.0
        %2543 = vmatpush1.msra.mxu0 0.0
        %2544 = vmatprep.subr.mxu0 0.0
        %2545 = vmatpush1.msra.mxu0 0.0
        %2546 = vmatprep.subr.mxu0 0.0
        %2547 = vmatpush1.msra.mxu0 0.0
        %2548 = vmatprep.subr.mxu0 0.0
        %2549 = vmatpush1.msra.mxu0 0.0
        %2550 = vmatprep.subr.mxu0 0.0
        %2551 = vmatpush1.msra.mxu0 0.0
        %2552 = vmatprep.subr.mxu0 0.0
        %2553 = vmatpush1.msra.mxu0 0.0
        %2554 = vmatprep.subr.mxu0 0.0
        %2555 = vmatpush1.msra.mxu0 0.0
        %2556 = vmatprep.subr.mxu0 0.0
        %2557 = vmatpush1.msra.mxu0 0.0
        %2558 = vmatprep.subr.mxu0 0.0
        %2559 = vmatpush1.msra.mxu0 0.0
        %2560 = vmatprep.subr.mxu0 0.0
        %2561 = vmatpush1.msra.mxu0 0.0
        %2562 = vmatprep.subr.mxu0 0.0
        %2563 = vmatpush1.msra.mxu0 0.0
        %2564 = vmatprep.subr.mxu0 0.0
        %2565 = vmatpush1.msra.mxu0 0.0
        %2566 = vmatprep.subr.mxu0 0.0
        %2567 = vmatpush1.msra.mxu0 0.0
        %2568 = vmatprep.subr.mxu0 0.0
        %2569 = vmatpush1.msra.mxu0 0.0
        %2570 = vmatprep.subr.mxu0 0.0
        %2571 = vmatpush1.msra.mxu0 0.0
        %2572 = vmatprep.subr.mxu0 0.0
        %2573 = vmatpush1.msra.mxu0 0.0
        %2574 = vmatprep.subr.mxu0 0.0
        %2575 = vmatpush1.msra.mxu0 0.0
        %2576 = vmatprep.subr.mxu0 0.0
        %2577 = vmatpush1.msra.mxu0 0.0
        %2578 = vmatprep.subr.mxu0 0.0
        %2579 = vmatpush1.msra.mxu0 0.0
        %2580 = vmatprep.subr.mxu0 0.0
        %2581 = vmatpush1.msra.mxu0 0.0
        %2582 = vmatprep.subr.mxu0 0.0
        %2583 = vmatpush1.msra.mxu0 0.0
        %2584 = vmatprep.mubr.f32.mxu0 0.0
        %2585 = vmatmul.mubr.f32.gmra.mrb[0].mxu0 %v828
        %v2586 = vpop.f32.mrb[0].mxu0
        %v2587 = vadd.f32 0.0, %v2586
        %v2588 = vpop.f32.mrb[0].mxu0
        %2589 = vmatprep.mubr.f32.mxu0 0.0
        %2590 = vmatmul.mubr.f32.gmra.mrb[0].mxu0 %v831
        %v2591 = vpop.f32.mrb[0].mxu0
        %v2592 = vadd.f32 0.0, %v2591
        %v2593 = vpop.f32.mrb[0].mxu0
        %2594 = vmatprep.mubr.f32.mxu0 0.0
        %2595 = vmatmul.mubr.f32.gmra.mrb[0].mxu0 %v834
        %v2596 = vpop.f32.mrb[0].mxu0
        %v2597 = vadd.f32 0.0, %v2596
        %v2598 = vpop.f32.mrb[0].mxu0
        %2599 = vmatprep.mubr.f32.mxu0 0.0
        %2600 = vmatmul.mubr.f32.gmra.mrb[0].mxu0 %v837
        %v2601 = vpop.f32.mrb[0].mxu0
        %v2602 = vadd.f32 0.0, %v2601
        %v2603 = vpop.f32.mrb[0].mxu0
        %2604 = vmatprep.mubr.f32.mxu0 0.0
        %2605 = vmatmul.mubr.f32.gmra.mrb[0].mxu0 %v840
        %v2606 = vpop.f32.mrb[0].mxu0
        %v2607 = vadd.f32 0.0, %v2606
        %v2608 = vpop.f32.mrb[0].mxu0
        %2609 = vmatprep.mubr.f32.mxu0 0.0
        %2610 = vmatmul.mubr.f32.gmra.mrb[0].mxu0 %v843
        %v2611 = vpop.f32.mrb[0].mxu0
        %v2612 = vadd.f32 0.0, %v2611
        %v2613 = vpop.f32.mrb[0].mxu0
        %2614 = vmatprep.mubr.f32.mxu0 0.0
        %2615 = vmatmul.mubr.f32.gmra.mrb[0].mxu0 %v846
        %v2616 = vpop.f32.mrb[0].mxu0
        %v2617 = vadd.f32 0.0, %v2616
        %v2618 = vpop.f32.mrb[0].mxu0
        %2619 = vmatprep.mubr.f32.mxu0 0.0
        %2620 = vmatmul.mubr.f32.gmra.mrb[0].mxu0 %v849
        %v2621 = vpop.f32.mrb[0].mxu0
        %v2622 = vadd.f32 0.0, %v2621
        %v2623 = vpop.f32.mrb[0].mxu0
        %2624 = vmatprep.mubr.f32.mxu0 0.0
        %2625 = vmatmul.mubr.f32.gmra.mrb[0].mxu0 %v852
        %v2626 = vpop.f32.mrb[0].mxu0
        %v2627 = vadd.f32 0.0, %v2626
        %v2628 = vpop.f32.mrb[0].mxu0
        %2629 = vmatprep.mubr.f32.mxu0 0.0
        %2630 = vmatmul.mubr.f32.gmra.mrb[0].mxu0 %v855
        %v2631 = vpop.f32.mrb[0].mxu0
        %v2632 = vadd.f32 0.0, %v2631
        %v2633 = vpop.f32.mrb[0].mxu0
        %2634 = vmatprep.mubr.f32.mxu0 0.0
        %2635 = vmatmul.mubr.f32.gmra.mrb[0].mxu0 %v858
        %v2636 = vpop.f32.mrb[0].mxu0
        %v2637 = vadd.f32 0.0, %v2636
        %v2638 = vpop.f32.mrb[0].mxu0
        %2639 = vmatprep.mubr.f32.mxu0 0.0
        %2640 = vmatmul.mubr.f32.gmra.mrb[0].mxu0 %v861
        %v2641 = vpop.f32.mrb[0].mxu0
        %v2642 = vadd.f32 0.0, %v2641
        %v2643 = vpop.f32.mrb[0].mxu0
        %2644 = vmatprep.mubr.f32.mxu0 0.0
        %2645 = vmatmul.mubr.f32.gmra.mrb[0].mxu0 %v864
        %v2646 = vpop.f32.mrb[0].mxu0
        %v2647 = vadd.f32 0.0, %v2646
        %v2648 = vpop.f32.mrb[0].mxu0
        %2649 = vmatprep.mubr.f32.mxu0 0.0
        %2650 = vmatmul.mubr.f32.gmra.mrb[0].mxu0 %v867
        %v2651 = vpop.f32.mrb[0].mxu0
        %v2652 = vadd.f32 0.0, %v2651
        %v2653 = vpop.f32.mrb[0].mxu0
        %2654 = vmatprep.mubr.f32.mxu0 0.0
        %2655 = vmatmul.mubr.f32.gmra.mrb[0].mxu0 %v870
        %v2656 = vpop.f32.mrb[0].mxu0
        %v2657 = vadd.f32 0.0, %v2656
        %v2658 = vpop.f32.mrb[0].mxu0
        %2659 = vmatprep.mubr.f32.mxu0 0.0
        %2660 = vmatmul.mubr.f32.gmra.mrb[0].mxu0 %v873
        %v2661 = vpop.f32.mrb[0].mxu0
        %v2662 = vadd.f32 0.0, %v2661
        %v2663 = vpop.f32.mrb[0].mxu0
        %2664 = vdwg.mxu0
        %2681 = vrot.lane.b32.xlu0 %v2587, 32
        %v2682 = vpop.permute.xlu0 %2681
        %2683 = vrot.lane.b32.xlu0 %v2592, 32
        %v2684 = vpop.permute.xlu0 %2683
        %2685 = vrot.lane.b32.xlu0 %v2597, 32
        %v2686 = vpop.permute.xlu0 %2685
        %2687 = vrot.lane.b32.xlu0 %v2602, 32
        %v2688 = vpop.permute.xlu0 %2687
        %2689 = vrot.lane.b32.xlu0 %v2607, 32
        %v2690 = vpop.permute.xlu0 %2689
        %2691 = vrot.lane.b32.xlu0 %v2612, 32
        %v2692 = vpop.permute.xlu0 %2691
        %2693 = vrot.lane.b32.xlu0 %v2617, 32
        %v2694 = vpop.permute.xlu0 %2693
        %2695 = vrot.lane.b32.xlu0 %v2622, 32
        %v2696 = vpop.permute.xlu0 %2695
        %2697 = vrot.lane.b32.xlu0 %v2627, 32
        %v2698 = vpop.permute.xlu0 %2697
        %2699 = vrot.lane.b32.xlu0 %v2632, 32
        %v2700 = vpop.permute.xlu0 %2699
        %2701 = vrot.lane.b32.xlu0 %v2637, 32
        %v2702 = vpop.permute.xlu0 %2701
        %2703 = vrot.lane.b32.xlu0 %v2642, 32
        %v2704 = vpop.permute.xlu0 %2703
        %2705 = vrot.lane.b32.xlu0 %v2647, 32
        %v2706 = vpop.permute.xlu0 %2705
        %2707 = vrot.lane.b32.xlu0 %v2652, 32
        %v2708 = vpop.permute.xlu0 %2707
        %2709 = vrot.lane.b32.xlu0 %v2657, 32
        %v2710 = vpop.permute.xlu0 %2709
        %2711 = vrot.lane.b32.xlu0 %v2662, 32
        %v2712 = vpop.permute.xlu0 %2711
        %v2729 = vsub.f32 %v2088, %v2682
        %v2730 = vsub.f32 %v2089, %v2684
        %v2731 = vsub.f32 %v2090, %v2686
        %v2732 = vsub.f32 %v2091, %v2688
        %v2733 = vsub.f32 %v2092, %v2690
        %v2734 = vsub.f32 %v2093, %v2692
        %v2735 = vsub.f32 %v2094, %v2694
        %v2736 = vsub.f32 %v2095, %v2696
        %v2737 = vsub.f32 %v2096, %v2698
        %v2738 = vsub.f32 %v2097, %v2700
        %v2739 = vsub.f32 %v2098, %v2702
        %v2740 = vsub.f32 %v2099, %v2704
        %v2741 = vsub.f32 %v2100, %v2706
        %v2742 = vsub.f32 %v2101, %v2708
        %v2743 = vsub.f32 %v2102, %v2710
        %v2744 = vsub.f32 %v2103, %v2712
        %v2745 = vmul.f32 %v2729, 1.442695
        %v2746 = vpow.pop %v2745
        %v2747 = vmul.f32 %v2730, 1.442695
        %v2748 = vpow.pop %v2747
        %v2749 = vmul.f32 %v2731, 1.442695
        %v2750 = vpow.pop %v2749
        %v2751 = vmul.f32 %v2732, 1.442695
        %v2752 = vpow.pop %v2751
        %v2753 = vmul.f32 %v2733, 1.442695
        %v2754 = vpow.pop %v2753
        %v2755 = vmul.f32 %v2734, 1.442695
        %v2756 = vpow.pop %v2755
        %v2757 = vmul.f32 %v2735, 1.442695
        %v2758 = vpow.pop %v2757
        %v2759 = vmul.f32 %v2736, 1.442695
        %v2760 = vpow.pop %v2759
        %v2761 = vmul.f32 %v2737, 1.442695
        %v2762 = vpow.pop %v2761
        %v2763 = vmul.f32 %v2738, 1.442695
        %v2764 = vpow.pop %v2763
        %v2765 = vmul.f32 %v2739, 1.442695
        %v2766 = vpow.pop %v2765
        %v2767 = vmul.f32 %v2740, 1.442695
        %v2768 = vpow.pop %v2767
        %v2769 = vmul.f32 %v2741, 1.442695
        %v2770 = vpow.pop %v2769
        %v2771 = vmul.f32 %v2742, 1.442695
        %v2772 = vpow.pop %v2771
        %v2773 = vmul.f32 %v2743, 1.442695
        %v2774 = vpow.pop %v2773
        %v2775 = vmul.f32 %v2744, 1.442695
        %v2776 = vpow.pop %v2775
        %2793 = vrot.lane.b32.xlu0 %v2746, 96
        %v2794 = vpop.permute.xlu0 %2793
        %2795 = vrot.lane.b32.xlu0 %v2748, 96
        %v2796 = vpop.permute.xlu0 %2795
        %2797 = vrot.lane.b32.xlu0 %v2750, 96
        %v2798 = vpop.permute.xlu0 %2797
        %2799 = vrot.lane.b32.xlu0 %v2752, 96
        %v2800 = vpop.permute.xlu0 %2799
        %2801 = vrot.lane.b32.xlu0 %v2754, 96
        %v2802 = vpop.permute.xlu0 %2801
        %2803 = vrot.lane.b32.xlu0 %v2756, 96
        %v2804 = vpop.permute.xlu0 %2803
        %2805 = vrot.lane.b32.xlu0 %v2758, 96
        %v2806 = vpop.permute.xlu0 %2805
        %2807 = vrot.lane.b32.xlu0 %v2760, 96
        %v2808 = vpop.permute.xlu0 %2807
        %2809 = vrot.lane.b32.xlu0 %v2762, 96
        %v2810 = vpop.permute.xlu0 %2809
        %2811 = vrot.lane.b32.xlu0 %v2764, 96
        %v2812 = vpop.permute.xlu0 %2811
        %2813 = vrot.lane.b32.xlu0 %v2766, 96
        %v2814 = vpop.permute.xlu0 %2813
        %2815 = vrot.lane.b32.xlu0 %v2768, 96
        %v2816 = vpop.permute.xlu0 %2815
        %2817 = vrot.lane.b32.xlu0 %v2770, 96
        %v2818 = vpop.permute.xlu0 %2817
        %2819 = vrot.lane.b32.xlu0 %v2772, 96
        %v2820 = vpop.permute.xlu0 %2819
        %2821 = vrot.lane.b32.xlu0 %v2774, 96
        %v2822 = vpop.permute.xlu0 %2821
        %2823 = vrot.lane.b32.xlu0 %v2776, 96
        %v2824 = vpop.permute.xlu0 %2823
        %v2825 = vsel %vm2155, %v2794, 0
        %v2827 = vsel %vm2155, %v2796, 0
        %v2829 = vsel %vm2155, %v2798, 0
        %v2831 = vsel %vm2155, %v2800, 0
        %v2833 = vsel %vm2155, %v2802, 0
        %v2835 = vsel %vm2155, %v2804, 0
        %v2837 = vsel %vm2155, %v2806, 0
        %v2839 = vsel %vm2155, %v2808, 0
        %v2841 = vsel %vm2155, %v2810, 0
        %v2843 = vsel %vm2155, %v2812, 0
        %v2845 = vsel %vm2155, %v2814, 0
        %v2847 = vsel %vm2155, %v2816, 0
        %v2849 = vsel %vm2155, %v2818, 0
        %v2851 = vsel %vm2155, %v2820, 0
        %v2853 = vsel %vm2155, %v2822, 0
        %v2855 = vsel %vm2155, %v2824, 0
        %2857 = vmatprep.subr.mxu0 0.0
        %2858 = vmatpush1.msra.mxu0 %v2443
        %2859 = vmatprep.subr.mxu0 0.0
        %2860 = vmatpush1.msra.mxu0 0.0
        %2861 = vmatprep.subr.mxu0 0.0
        %2862 = vmatpush1.msra.mxu0 0.0
        %2863 = vmatprep.subr.mxu0 0.0
        %2864 = vmatpush1.msra.mxu0 0.0
        %2865 = vmatprep.subr.mxu0 0.0
        %2866 = vmatpush1.msra.mxu0 0.0
        %2867 = vmatprep.subr.mxu0 0.0
        %2868 = vmatpush1.msra.mxu0 0.0
        %2869 = vmatprep.subr.mxu0 0.0
        %2870 = vmatpush1.msra.mxu0 0.0
        %2871 = vmatprep.subr.mxu0 0.0
        %2872 = vmatpush1.msra.mxu0 0.0
        %2873 = vmatprep.subr.mxu0 0.0
        %2874 = vmatpush1.msra.mxu0 0.0
        %2875 = vmatprep.subr.mxu0 0.0
        %2876 = vmatpush1.msra.mxu0 0.0
        %2877 = vmatprep.subr.mxu0 0.0
        %2878 = vmatpush1.msra.mxu0 0.0
        %2879 = vmatprep.subr.mxu0 0.0
        %2880 = vmatpush1.msra.mxu0 0.0
        %2881 = vmatprep.subr.mxu0 0.0
        %2882 = vmatpush1.msra.mxu0 0.0
        %2883 = vmatprep.subr.mxu0 0.0
        %2884 = vmatpush1.msra.mxu0 0.0
        %2885 = vmatprep.subr.mxu0 0.0
        %2886 = vmatpush1.msra.mxu0 0.0
        %2887 = vmatprep.subr.mxu0 0.0
        %2888 = vmatpush1.msra.mxu0 0.0
        %2889 = vmatprep.subr.mxu0 0.0
        %2890 = vmatpush1.msra.mxu0 0.0
        %2891 = vmatprep.subr.mxu0 0.0
        %2892 = vmatpush1.msra.mxu0 0.0
        %2893 = vmatprep.subr.mxu0 0.0
        %2894 = vmatpush1.msra.mxu0 0.0
        %2895 = vmatprep.subr.mxu0 0.0
        %2896 = vmatpush1.msra.mxu0 0.0
        %2897 = vmatprep.subr.mxu0 0.0
        %2898 = vmatpush1.msra.mxu0 0.0
        %2899 = vmatprep.subr.mxu0 0.0
        %2900 = vmatpush1.msra.mxu0 0.0
        %2901 = vmatprep.subr.mxu0 0.0
        %2902 = vmatpush1.msra.mxu0 0.0
        %2903 = vmatprep.subr.mxu0 0.0
        %2904 = vmatpush1.msra.mxu0 0.0
        %2905 = vmatprep.subr.mxu0 0.0
        %2906 = vmatpush1.msra.mxu0 0.0
        %2907 = vmatprep.subr.mxu0 0.0
        %2908 = vmatpush1.msra.mxu0 0.0
        %2909 = vmatprep.subr.mxu0 0.0
        %2910 = vmatpush1.msra.mxu0 0.0
        %2911 = vmatprep.subr.mxu0 0.0
        %2912 = vmatpush1.msra.mxu0 0.0
        %2913 = vmatprep.subr.mxu0 0.0
        %2914 = vmatpush1.msra.mxu0 0.0
        %2915 = vmatprep.subr.mxu0 0.0
        %2916 = vmatpush1.msra.mxu0 0.0
        %2917 = vmatprep.subr.mxu0 0.0
        %2918 = vmatpush1.msra.mxu0 0.0
        %2919 = vmatprep.subr.mxu0 0.0
        %2920 = vmatpush1.msra.mxu0 0.0
        %2921 = vmatprep.mubr.f32.mxu0 0.0
        %2922 = vmatmul.mubr.f32.gmra.mrb[0].mxu0 %v2825
        %v2923 = vpop.f32.mrb[0].mxu0
        %v2924 = vadd.f32 0.0, %v2923
        %v2925 = vpop.f32.mrb[0].mxu0
        %2926 = vmatprep.mubr.f32.mxu0 0.0
        %2927 = vmatmul.mubr.f32.gmra.mrb[0].mxu0 %v2827
        %v2928 = vpop.f32.mrb[0].mxu0
        %v2929 = vadd.f32 0.0, %v2928
        %v2930 = vpop.f32.mrb[0].mxu0
        %2931 = vmatprep.mubr.f32.mxu0 0.0
        %2932 = vmatmul.mubr.f32.gmra.mrb[0].mxu0 %v2829
        %v2933 = vpop.f32.mrb[0].mxu0
        %v2934 = vadd.f32 0.0, %v2933
        %v2935 = vpop.f32.mrb[0].mxu0
        %2936 = vmatprep.mubr.f32.mxu0 0.0
        %2937 = vmatmul.mubr.f32.gmra.mrb[0].mxu0 %v2831
        %v2938 = vpop.f32.mrb[0].mxu0
        %v2939 = vadd.f32 0.0, %v2938
        %v2940 = vpop.f32.mrb[0].mxu0
        %2941 = vmatprep.mubr.f32.mxu0 0.0
        %2942 = vmatmul.mubr.f32.gmra.mrb[0].mxu0 %v2833
        %v2943 = vpop.f32.mrb[0].mxu0
        %v2944 = vadd.f32 0.0, %v2943
        %v2945 = vpop.f32.mrb[0].mxu0
        %2946 = vmatprep.mubr.f32.mxu0 0.0
        %2947 = vmatmul.mubr.f32.gmra.mrb[0].mxu0 %v2835
        %v2948 = vpop.f32.mrb[0].mxu0
        %v2949 = vadd.f32 0.0, %v2948
        %v2950 = vpop.f32.mrb[0].mxu0
        %2951 = vmatprep.mubr.f32.mxu0 0.0
        %2952 = vmatmul.mubr.f32.gmra.mrb[0].mxu0 %v2837
        %v2953 = vpop.f32.mrb[0].mxu0
        %v2954 = vadd.f32 0.0, %v2953
        %v2955 = vpop.f32.mrb[0].mxu0
        %2956 = vmatprep.mubr.f32.mxu0 0.0
        %2957 = vmatmul.mubr.f32.gmra.mrb[0].mxu0 %v2839
        %v2958 = vpop.f32.mrb[0].mxu0
        %v2959 = vadd.f32 0.0, %v2958
        %v2960 = vpop.f32.mrb[0].mxu0
        %2961 = vmatprep.mubr.f32.mxu0 0.0
        %2962 = vmatmul.mubr.f32.gmra.mrb[0].mxu0 %v2841
        %v2963 = vpop.f32.mrb[0].mxu0
        %v2964 = vadd.f32 0.0, %v2963
        %v2965 = vpop.f32.mrb[0].mxu0
        %2966 = vmatprep.mubr.f32.mxu0 0.0
        %2967 = vmatmul.mubr.f32.gmra.mrb[0].mxu0 %v2843
        %v2968 = vpop.f32.mrb[0].mxu0
        %v2969 = vadd.f32 0.0, %v2968
        %v2970 = vpop.f32.mrb[0].mxu0
        %2971 = vmatprep.mubr.f32.mxu0 0.0
        %2972 = vmatmul.mubr.f32.gmra.mrb[0].mxu0 %v2845
        %v2973 = vpop.f32.mrb[0].mxu0
        %v2974 = vadd.f32 0.0, %v2973
        %v2975 = vpop.f32.mrb[0].mxu0
        %2976 = vmatprep.mubr.f32.mxu0 0.0
        %2977 = vmatmul.mubr.f32.gmra.mrb[0].mxu0 %v2847
        %v2978 = vpop.f32.mrb[0].mxu0
        %v2979 = vadd.f32 0.0, %v2978
        %v2980 = vpop.f32.mrb[0].mxu0
        %2981 = vmatprep.mubr.f32.mxu0 0.0
        %2982 = vmatmul.mubr.f32.gmra.mrb[0].mxu0 %v2849
        %v2983 = vpop.f32.mrb[0].mxu0
        %v2984 = vadd.f32 0.0, %v2983
        %v2985 = vpop.f32.mrb[0].mxu0
        %2986 = vmatprep.mubr.f32.mxu0 0.0
        %2987 = vmatmul.mubr.f32.gmra.mrb[0].mxu0 %v2851
        %v2988 = vpop.f32.mrb[0].mxu0
        %v2989 = vadd.f32 0.0, %v2988
        %v2990 = vpop.f32.mrb[0].mxu0
        %2991 = vmatprep.mubr.f32.mxu0 0.0
        %2992 = vmatmul.mubr.f32.gmra.mrb[0].mxu0 %v2853
        %v2993 = vpop.f32.mrb[0].mxu0
        %v2994 = vadd.f32 0.0, %v2993
        %v2995 = vpop.f32.mrb[0].mxu0
        %2996 = vmatprep.mubr.f32.mxu0 0.0
        %2997 = vmatmul.mubr.f32.gmra.mrb[0].mxu0 %v2855
        %v2998 = vpop.f32.mrb[0].mxu0
        %v2999 = vadd.f32 0.0, %v2998
        %v3000 = vpop.f32.mrb[0].mxu0
        %3001 = vdwg.mxu0
        %v3002 = vld [vmem:[#allocation3] sm:$0xff]
        %v3003 = vld [vmem:[#allocation3 + $0x8] sm:$0xff]
        %v3004 = vmul.f32 %v3002, %v2512
        %v3005 = vmul.f32 %v3003, %v2517
        %v3006 = vmul.f32 %v1651, %v2924
        %v3007 = vmul.f32 %v1652, %v2929
        %v3008 = vmul.f32 %v1653, %v2934
        %v3009 = vmul.f32 %v1654, %v2939
        %v3010 = vmul.f32 %v1655, %v2944
        %v3011 = vmul.f32 %v1656, %v2949
        %v3012 = vmul.f32 %v1657, %v2954
        %v3013 = vmul.f32 %v1658, %v2959
        %v3014 = vmul.f32 %v1659, %v2964
        %v3015 = vmul.f32 %v1660, %v2969
        %v3016 = vmul.f32 %v1661, %v2974
        %v3017 = vmul.f32 %v1662, %v2979
        %v3018 = vmul.f32 %v1663, %v2984
        %v3019 = vmul.f32 %v1664, %v2989
        %v3020 = vmul.f32 %v1665, %v2994
        %v3021 = vmul.f32 %v1666, %v2999
        %3022 = vmatprep.subr.mxu0 0.0
        %3023 = vmatpush1.msra.mxu0 %v3006
        %3024 = vmatprep.subr.mxu0 0.0
        %3025 = vmatpush1.msra.mxu0 %v3007
        %3026 = vmatprep.subr.mxu0 0.0
        %3027 = vmatpush1.msra.mxu0 %v3008
        %3028 = vmatprep.subr.mxu0 0.0
        %3029 = vmatpush1.msra.mxu0 %v3009
        %3030 = vmatprep.subr.mxu0 0.0
        %3031 = vmatpush1.msra.mxu0 %v3010
        %3032 = vmatprep.subr.mxu0 0.0
        %3033 = vmatpush1.msra.mxu0 %v3011
        %3034 = vmatprep.subr.mxu0 0.0
        %3035 = vmatpush1.msra.mxu0 %v3012
        %3036 = vmatprep.subr.mxu0 0.0
        %3037 = vmatpush1.msra.mxu0 %v3013
        %3038 = vmatprep.subr.mxu0 0.0
        %3039 = vmatpush1.msra.mxu0 %v3014
        %3040 = vmatprep.subr.mxu0 0.0
        %3041 = vmatpush1.msra.mxu0 %v3015
        %3042 = vmatprep.subr.mxu0 0.0
        %3043 = vmatpush1.msra.mxu0 %v3016
        %3044 = vmatprep.subr.mxu0 0.0
        %3045 = vmatpush1.msra.mxu0 %v3017
        %3046 = vmatprep.subr.mxu0 0.0
        %3047 = vmatpush1.msra.mxu0 %v3018
        %3048 = vmatprep.subr.mxu0 0.0
        %3049 = vmatpush1.msra.mxu0 %v3019
        %3050 = vmatprep.subr.mxu0 0.0
        %3051 = vmatpush1.msra.mxu0 %v3020
        %3052 = vmatprep.subr.mxu0 0.0
        %3053 = vmatpush1.msra.mxu0 %v3021
        %3054 = vmatprep.subr.mxu0 0.0
        %3055 = vmatpush1.msra.mxu0 0.0
        %3056 = vmatprep.subr.mxu0 0.0
        %3057 = vmatpush1.msra.mxu0 0.0
        %3058 = vmatprep.subr.mxu0 0.0
        %3059 = vmatpush1.msra.mxu0 0.0
        %3060 = vmatprep.subr.mxu0 0.0
        %3061 = vmatpush1.msra.mxu0 0.0
        %3062 = vmatprep.subr.mxu0 0.0
        %3063 = vmatpush1.msra.mxu0 0.0
        %3064 = vmatprep.subr.mxu0 0.0
        %3065 = vmatpush1.msra.mxu0 0.0
        %3066 = vmatprep.subr.mxu0 0.0
        %3067 = vmatpush1.msra.mxu0 0.0
        %3068 = vmatprep.subr.mxu0 0.0
        %3069 = vmatpush1.msra.mxu0 0.0
        %3070 = vmatprep.subr.mxu0 0.0
        %3071 = vmatpush1.msra.mxu0 0.0
        %3072 = vmatprep.subr.mxu0 0.0
        %3073 = vmatpush1.msra.mxu0 0.0
        %3074 = vmatprep.subr.mxu0 0.0
        %3075 = vmatpush1.msra.mxu0 0.0
        %3076 = vmatprep.subr.mxu0 0.0
        %3077 = vmatpush1.msra.mxu0 0.0
        %3078 = vmatprep.subr.mxu0 0.0
        %3079 = vmatpush1.msra.mxu0 0.0
        %3080 = vmatprep.subr.mxu0 0.0
        %3081 = vmatpush1.msra.mxu0 0.0
        %3082 = vmatprep.subr.mxu0 0.0
        %3083 = vmatpush1.msra.mxu0 0.0
        %3084 = vmatprep.subr.mxu0 0.0
        %3085 = vmatpush1.msra.mxu0 0.0
        %3086 = vmatprep.mubr.f32.mxu0 0.0
        %3087 = vmatmul.mubr.f32.gmra.mrb[0].mxu0 %v629
        %v3088 = vpop.f32.mrb[0].mxu0
        %v3089 = vadd.f32 0.0, %v3088
        %v3090 = vpop.f32.mrb[0].mxu0
        %3091 = vmatprep.mubr.f32.mxu0 0.0
        %3092 = vmatmul.mubr.f32.gmra.mrb[0].mxu0 %v630
        %v3093 = vpop.f32.mrb[0].mxu0
        %v3094 = vadd.f32 0.0, %v3093
        %v3095 = vpop.f32.mrb[0].mxu0
        %3096 = vdwg.mxu0
        %v3097 = vadd.f32 %v3004, %v3089
        %v3098 = vadd.f32 %v3005, %v3094
        %3099 = vst.msk [vmem:[#allocation3] sm:$0xff] %vm1048, %v3097
        %3100 = vst.msk [vmem:[#allocation3 + $0x8] sm:$0xff] %vm1048, %v3098
        %v3101 = vld [vmem:[#allocation4] sm:$0xff]
        %v3102 = vld [vmem:[#allocation4 + $0x8] sm:$0xff]
        %v3103 = vmul.f32 %v3101, %v2432
        %v3104 = vmul.f32 %v3102, %v2434
        %3121 = vmatprep.subr.mxu0 0.0
        %3122 = vmatpush1.msra.mxu0 %v2794
        %3123 = vmatprep.subr.mxu0 0.0
        %3124 = vmatpush1.msra.mxu0 %v2796
        %3125 = vmatprep.subr.mxu0 0.0
        %3126 = vmatpush1.msra.mxu0 %v2798
        %3127 = vmatprep.subr.mxu0 0.0
        %3128 = vmatpush1.msra.mxu0 %v2800
        %3129 = vmatprep.subr.mxu0 0.0
        %3130 = vmatpush1.msra.mxu0 %v2802
        %3131 = vmatprep.subr.mxu0 0.0
        %3132 = vmatpush1.msra.mxu0 %v2804
        %3133 = vmatprep.subr.mxu0 0.0
        %3134 = vmatpush1.msra.mxu0 %v2806
        %3135 = vmatprep.subr.mxu0 0.0
        %3136 = vmatpush1.msra.mxu0 %v2808
        %3137 = vmatprep.subr.mxu0 0.0
        %3138 = vmatpush1.msra.mxu0 %v2810
        %3139 = vmatprep.subr.mxu0 0.0
        %3140 = vmatpush1.msra.mxu0 %v2812
        %3141 = vmatprep.subr.mxu0 0.0
        %3142 = vmatpush1.msra.mxu0 %v2814
        %3143 = vmatprep.subr.mxu0 0.0
        %3144 = vmatpush1.msra.mxu0 %v2816
        %3145 = vmatprep.subr.mxu0 0.0
        %3146 = vmatpush1.msra.mxu0 %v2818
        %3147 = vmatprep.subr.mxu0 0.0
        %3148 = vmatpush1.msra.mxu0 %v2820
        %3149 = vmatprep.subr.mxu0 0.0
        %3150 = vmatpush1.msra.mxu0 %v2822
        %3151 = vmatprep.subr.mxu0 0.0
        %3152 = vmatpush1.msra.mxu0 %v2824
        %3153 = vmatprep.subr.mxu0 0.0
        %3154 = vmatpush1.msra.mxu0 0.0
        %3155 = vmatprep.subr.mxu0 0.0
        %3156 = vmatpush1.msra.mxu0 0.0
        %3157 = vmatprep.subr.mxu0 0.0
        %3158 = vmatpush1.msra.mxu0 0.0
        %3159 = vmatprep.subr.mxu0 0.0
        %3160 = vmatpush1.msra.mxu0 0.0
        %3161 = vmatprep.subr.mxu0 0.0
        %3162 = vmatpush1.msra.mxu0 0.0
        %3163 = vmatprep.subr.mxu0 0.0
        %3164 = vmatpush1.msra.mxu0 0.0
        %3165 = vmatprep.subr.mxu0 0.0
        %3166 = vmatpush1.msra.mxu0 0.0
        %3167 = vmatprep.subr.mxu0 0.0
        %3168 = vmatpush1.msra.mxu0 0.0
        %3169 = vmatprep.subr.mxu0 0.0
        %3170 = vmatpush1.msra.mxu0 0.0
        %3171 = vmatprep.subr.mxu0 0.0
        %3172 = vmatpush1.msra.mxu0 0.0
        %3173 = vmatprep.subr.mxu0 0.0
        %3174 = vmatpush1.msra.mxu0 0.0
        %3175 = vmatprep.subr.mxu0 0.0
        %3176 = vmatpush1.msra.mxu0 0.0
        %3177 = vmatprep.subr.mxu0 0.0
        %3178 = vmatpush1.msra.mxu0 0.0
        %3179 = vmatprep.subr.mxu0 0.0
        %3180 = vmatpush1.msra.mxu0 0.0
        %3181 = vmatprep.subr.mxu0 0.0
        %3182 = vmatpush1.msra.mxu0 0.0
        %3183 = vmatprep.subr.mxu0 0.0
        %3184 = vmatpush1.msra.mxu0 0.0
        %3185 = vmatprep.mubr.f32.mxu0 0.0
        %3186 = vmatmul.mubr.f32.gmra.mrb[0].mxu0 %v629
        %v3187 = vpop.f32.mrb[0].mxu0
        %v3188 = vadd.f32 0.0, %v3187
        %v3189 = vpop.f32.mrb[0].mxu0
        %3190 = vmatprep.mubr.f32.mxu0 0.0
        %3191 = vmatmul.mubr.f32.gmra.mrb[0].mxu0 %v630
        %v3192 = vpop.f32.mrb[0].mxu0
        %v3193 = vadd.f32 0.0, %v3192
        %v3194 = vpop.f32.mrb[0].mxu0
        %3195 = vdwg.mxu0
        %v3196 = vadd.f32 %v3103, %v3188
        %v3197 = vadd.f32 %v3104, %v3193
        %3198 = vst.msk [vmem:[#allocation4] sm:$0xff] %vm2155, %v3196
        %3199 = vst.msk [vmem:[#allocation4 + $0x8] sm:$0xff] %vm2155, %v3197
        %p3200 = scmp.eq.s32.totalorder %s21, 2
        // Predicated region
        $region61: #{tpu_custom_call.1} parent=55 // pred_check
          %p3201 = pneg %p3200
        $region62: #{tpu_custom_call.1} parent=55 // pred_check_branch
          %3203 = sbr.rel (%p3201) target = $region64
        $region63: #{tpu_custom_call.1} parent=55 // pred_region
          %v3204 = vld [vmem:[#allocation4] sm:$0xff]
          %v3205 = vld [vmem:[#allocation4 + $0x8] sm:$0xff]
          %vm3206 = vcmp.gt.f32.partialorder %v3204, 0.0
          %vm3207 = vcmp.gt.f32.partialorder %v3205, 0.0
          %v3208 = vsel %vm3206, %v3204, 1.0
          %v3209 = vsel %vm3207, %v3205, 1.0
          %v3210 = vrcp.pop %v3208
          %v3211 = vrcp.pop %v3209
          %v3213 = vsel %vm2155, %v3210, 0
          %v3216 = vsel %vm2155, %v3211, 0
          %3218 = vmatprep.subr.mxu0 0.0
          %3219 = vmatpush1.msra.mxu0 %v2443
          %3220 = vmatprep.subr.mxu0 0.0
          %3221 = vmatpush1.msra.mxu0 0.0
          %3222 = vmatprep.subr.mxu0 0.0
          %3223 = vmatpush1.msra.mxu0 0.0
          %3224 = vmatprep.subr.mxu0 0.0
          %3225 = vmatpush1.msra.mxu0 0.0
          %3226 = vmatprep.subr.mxu0 0.0
          %3227 = vmatpush1.msra.mxu0 0.0
          %3228 = vmatprep.subr.mxu0 0.0
          %3229 = vmatpush1.msra.mxu0 0.0
          %3230 = vmatprep.subr.mxu0 0.0
          %3231 = vmatpush1.msra.mxu0 0.0
          %3232 = vmatprep.subr.mxu0 0.0
          %3233 = vmatpush1.msra.mxu0 0.0
          %3234 = vmatprep.subr.mxu0 0.0
          %3235 = vmatpush1.msra.mxu0 0.0
          %3236 = vmatprep.subr.mxu0 0.0
          %3237 = vmatpush1.msra.mxu0 0.0
          %3238 = vmatprep.subr.mxu0 0.0
          %3239 = vmatpush1.msra.mxu0 0.0
          %3240 = vmatprep.subr.mxu0 0.0
          %3241 = vmatpush1.msra.mxu0 0.0
          %3242 = vmatprep.subr.mxu0 0.0
          %3243 = vmatpush1.msra.mxu0 0.0
          %3244 = vmatprep.subr.mxu0 0.0
          %3245 = vmatpush1.msra.mxu0 0.0
          %3246 = vmatprep.subr.mxu0 0.0
          %3247 = vmatpush1.msra.mxu0 0.0
          %3248 = vmatprep.subr.mxu0 0.0
          %3249 = vmatpush1.msra.mxu0 0.0
          %3250 = vmatprep.subr.mxu0 0.0
          %3251 = vmatpush1.msra.mxu0 0.0
          %3252 = vmatprep.subr.mxu0 0.0
          %3253 = vmatpush1.msra.mxu0 0.0
          %3254 = vmatprep.subr.mxu0 0.0
          %3255 = vmatpush1.msra.mxu0 0.0
          %3256 = vmatprep.subr.mxu0 0.0
          %3257 = vmatpush1.msra.mxu0 0.0
          %3258 = vmatprep.subr.mxu0 0.0
          %3259 = vmatpush1.msra.mxu0 0.0
          %3260 = vmatprep.subr.mxu0 0.0
          %3261 = vmatpush1.msra.mxu0 0.0
          %3262 = vmatprep.subr.mxu0 0.0
          %3263 = vmatpush1.msra.mxu0 0.0
          %3264 = vmatprep.subr.mxu0 0.0
          %3265 = vmatpush1.msra.mxu0 0.0
          %3266 = vmatprep.subr.mxu0 0.0
          %3267 = vmatpush1.msra.mxu0 0.0
          %3268 = vmatprep.subr.mxu0 0.0
          %3269 = vmatpush1.msra.mxu0 0.0
          %3270 = vmatprep.subr.mxu0 0.0
          %3271 = vmatpush1.msra.mxu0 0.0
          %3272 = vmatprep.subr.mxu0 0.0
          %3273 = vmatpush1.msra.mxu0 0.0
          %3274 = vmatprep.subr.mxu0 0.0
          %3275 = vmatpush1.msra.mxu0 0.0
          %3276 = vmatprep.subr.mxu0 0.0
          %3277 = vmatpush1.msra.mxu0 0.0
          %3278 = vmatprep.subr.mxu0 0.0
          %3279 = vmatpush1.msra.mxu0 0.0
          %3280 = vmatprep.subr.mxu0 0.0
          %3281 = vmatpush1.msra.mxu0 0.0
          %3282 = vmatprep.mubr.f32.mxu0 0.0
          %3283 = vmatmul.mubr.f32.gmra.mrb[0].mxu0 %v3213
          %v3284 = vpop.f32.mrb[0].mxu0
          %v3285 = vadd.f32 0.0, %v3284
          %v3286 = vpop.f32.mrb[0].mxu0
          %3287 = vmatprep.mubr.f32.mxu0 0.0
          %3288 = vmatmul.mubr.f32.gmra.mrb[0].mxu0 %v3216
          %v3289 = vpop.f32.mrb[0].mxu0
          %v3290 = vadd.f32 0.0, %v3289
          %v3291 = vpop.f32.mrb[0].mxu0
          %3292 = vdwg.mxu0
          %v3293 = vld [vmem:[#allocation3] sm:$0xff]
          %v3294 = vld [vmem:[#allocation3 + $0x8] sm:$0xff]
          %v3295 = vmul.f32 %v3293, %v3285
          %v3296 = vmul.f32 %v3294, %v3290
          %v3297 = vadd.f32 %v3295, %v631
          %v3298 = vadd.f32 %v3296, %v632
          %v3299 = vmax.f32 %v3297, 0.0
          %v3300 = vmax.f32 %v3298, 0.0
          %3301 = vst.msk [vmem:[#allocation5] sm:$0xff] %vm1048, %v3299
          %3302 = vst.msk [vmem:[#allocation5 + $0x8] sm:$0xff] %vm1048, %v3300
        $region64: #{tpu_custom_call.1} parent=55 // pred_fallthru
          _
        // Predicated region
        $region65: #{tpu_custom_call.1} parent=55 // pred_check
          %p3303 = pneg %p243
        $region66: #{tpu_custom_call.1} parent=55 // pred_check_branch
          %3305 = sbr.rel (%p3303) target = $region68
        $region67: #{tpu_custom_call.1} parent=55 // pred_region
          %s3307 = ssub.s32 256, 256
          %3308 = vsyncadd [#allocation6], %s3307
          %s3309 = sshll.u32 [#allocation5], 4
          %s3310 = int_to_ptr.vmem [resolvable:$true] %s3309
          %3315 = dma.vmem_to_hbm [thread:$0]  %s3310, 256, %s9, [#allocation6], 128, 128, 8
        $region68: #{tpu_custom_call.1} parent=55 // pred_fallthru
          _
        // Predicated region
        $region69: #{tpu_custom_call.1} parent=55 // pred_check
          %p3316 = pneg %p243
        $region70: #{tpu_custom_call.1} parent=55 // pred_check_branch
          %3318 = sbr.rel (%p3316) target = $region72
        $region71: #{tpu_custom_call.1} parent=55 // pred_region
          %3319 = dma.done [#allocation6], 256
        $region72: #{tpu_custom_call.1} parent=55 // pred_fallthru
          _
      $region56: #{tpu_custom_call.1} parent=5 // pred_fallthru
        _
      %p3320 = scmp.le.s32.totalorder 2, %s16
      // Predicated region
      $region73: #{tpu_custom_call.1} parent=5 // pred_check
        %p3321 = pneg %p3320
      $region74: #{tpu_custom_call.1} parent=5 // pred_check_branch
        %3323 = sbr.rel (%p3321) target = $region76
      $region75: #{tpu_custom_call.1} parent=5 // pred_region
        %s3324 = ssub.s32 %s16, 2
      $region76: #{tpu_custom_call.1} parent=5 // pred_fallthru
        _
    $region6: #{tpu_custom_call.1} parent=1 // loop_footer
      %s20 = sadd.s32 1, %s16
    $region7: #{tpu_custom_call.1} parent=1 // loop_footer_branch
      %15 = sbr.rel target = $region3
    $region8: #{tpu_custom_call.1} parent=1 // loop_exit
      _
    %3325 = vsyncpa [#allocation6], 1
    %s3326 = scalar_lea.sflag [#allocation6], 1
    %3327 = vsyncpa %s3326, 1

</llo_original>
